<compile_context>
chip_gen: v7x
topology: tpu7x:2x2x1
jax: 0.10.0
libtpu: 0.0.40
codegen_flags: <defaults>
</compile_context>

<pallas_src>
import functools
import math

import jax
import jax.numpy as jnp
from jax.experimental import pallas as pl
from jax.experimental.pallas import tpu as pltpu


def _classifier_head_kernel(x_ref, w1_ref, b1_ref, w2_ref, b2_ref, o_ref, *, inv_hw):
    # x_ref: [tb, HW, C] float32 feature-map tile (C on lanes, HW on sublanes).
    # AdaptiveAvgPool2d((1,1)) + Flatten == mean over spatial: dense cross-sublane sum,
    # with the 1/HW scale folded in.
    pooled = jnp.sum(x_ref[...], axis=1) * inv_hw                       # [tb, C] f32
    # Linear(2048, 512): bf16 x bf16 on the MXU, f32 accumulate.
    h = jnp.dot(pooled.astype(jnp.bfloat16), w1_ref[...],
                preferred_element_type=jnp.float32)                     # [tb, 512]
    h = jnp.maximum(h + b1_ref[...], 0.0)                               # bias + ReLU; Dropout(0.5)=identity (eval)
    out = jnp.dot(h, w2_ref[...], preferred_element_type=jnp.float32)   # Linear(512, 2)
    out = out + b2_ref[...]
    o_ref[...] = out[:, None, :].astype(o_ref.dtype)                    # [tb, 1, 2]


def deepfake_detector_head(feat_nhwc, w1_bf16, b1, w2, b2):
    """Classifier head of DeepFakeDetector.

    feat_nhwc: [B, H, W, C] or [B, H*W, C] float32 feature map (resnet50 backbone output,
               NHWC -- the layout a TPU backbone emits natively).
    w1_bf16:   [2048, 512] bfloat16 (converted once; lives bf16 in the param tree).
    b1:        [1, 512]  float32.
    w2:        [512, 2]  float32.
    b2:        [1, 2]    float32.
    Linear weights are stored [in, out] (transposed vs. PyTorch's [out, in]).
    """
    if feat_nhwc.ndim == 4:
        B, H, W, C = feat_nhwc.shape
        x = feat_nhwc.reshape(B, H * W, C)      # metadata-only reshape (NHWC contiguous)
    else:
        x = feat_nhwc
    B, HW, C = x.shape
    assert C == w1_bf16.shape[0] and C % 128 == 0, (C, w1_bf16.shape)
    n_hidden = w1_bf16.shape[1]
    n_out = w2.shape[1]

    # Batch tiling: >= 2 blocks so both v7x TensorCores get work; tb <= 8 keeps the f32
    # activation double-buffers (2 * tb * HW * C * 4B ~ 6.4 MiB at tb=8, HW=49) plus the
    # resident bf16 W1 (~4 MiB double-buffered) inside even v5e's 16 MiB scoped default.
    tb = 1 if B <= 1 else min(pl.cdiv(B, 2), 8)
    grid = (pl.cdiv(B, tb),)

    cost = pl.CostEstimate(
        flops=2 * B * C * n_hidden + 2 * B * n_hidden * n_out + B * HW * C,
        transcendentals=0,
        bytes_accessed=(x.nbytes + w1_bf16.nbytes + b1.nbytes + w2.nbytes + b2.nbytes
                        + B * n_out * 4),
    )

    kernel = functools.partial(_classifier_head_kernel, inv_hw=1.0 / HW)

    out = pl.pallas_call(
        kernel,
        out_shape=jax.ShapeDtypeStruct((B, 1, n_out), jnp.float32),
        grid_spec=pltpu.PrefetchScalarGridSpec(
            num_scalar_prefetch=0,
            grid=grid,
            in_specs=[
                pl.BlockSpec((tb, HW, C), lambda b: (b, 0, 0)),       # f32 feature tile
                pl.BlockSpec((C, n_hidden), lambda b: (0, 0)),        # W1 bf16, resident
                pl.BlockSpec((1, n_hidden), lambda b: (0, 0)),        # b1, resident
                pl.BlockSpec((n_hidden, n_out), lambda b: (0, 0)),    # W2, resident
                pl.BlockSpec((1, n_out), lambda b: (0, 0)),           # b2, resident
            ],
            out_specs=pl.BlockSpec((tb, 1, n_out), lambda b: (b, 0, 0)),
        ),
        compiler_params=pltpu.CompilerParams(
            dimension_semantics=("parallel",),
        ),
        cost_estimate=cost,
    )(x, w1_bf16, b1, w2, b2)
    return out.reshape(B, n_out)


def _reference(feat_nhwc, w1, b1, w2, b2):
    # Mirrors the kernel's precision: f32 pooling, pooled vector + W1 rounded to bf16,
    # f32 accumulation on the 2048-deep contraction, f32 second Linear.
    pooled = jnp.mean(feat_nhwc, axis=(1, 2))                         # [B, 2048]
    pooled = pooled.astype(jnp.bfloat16).astype(jnp.float32)
    w1f = w1.astype(jnp.bfloat16).astype(jnp.float32)
    h = jnp.maximum(pooled @ w1f + b1, 0.0)
    return h @ w2 + b2


if __name__ == "__main__":
    key = jax.random.PRNGKey(0)
    k_feat, k_w1, k_b1, k_w2, k_b2 = jax.random.split(key, 5)

    # Linear(2048, 512) forces C=2048; 7x7 spatial is what resnet50 emits for 224x224
    # input. NHWC layout (what a TPU backbone produces).
    B, H, W, C = 2, 7, 7, 2048
    feat = jax.random.normal(k_feat, (B, H, W, C), dtype=jnp.float32)

    # nn.Linear default init: U(-1/sqrt(fan_in), +1/sqrt(fan_in)); weights stored [in, out].
    bound1 = 1.0 / math.sqrt(2048.0)
    w1 = jax.random.uniform(k_w1, (2048, 512), jnp.float32, -bound1, bound1)
    b1 = jax.random.uniform(k_b1, (1, 512), jnp.float32, -bound1, bound1)
    bound2 = 1.0 / math.sqrt(512.0)
    w2 = jax.random.uniform(k_w2, (512, 2), jnp.float32, -bound2, bound2)
    b2 = jax.random.uniform(k_b2, (1, 2), jnp.float32, -bound2, bound2)

    # One-time conversion: W1 lives in the param tree as bf16 (not a per-call cast).
    w1_bf16 = w1.astype(jnp.bfloat16)

    out = deepfake_detector_head(feat, w1_bf16, b1, w2, b2)
    out = jax.block_until_ready(out)

    ref = _reference(feat, w1, b1, w2, b2)
    assert out.shape == (B, 2), out.shape
    assert jnp.allclose(out, ref, atol=2e-3, rtol=2e-3), (out, ref)

    print("KERNEL_OK")
</pallas_src>

<mosaic_0001>
module attributes {stable_mosaic.version = 11 : i64} {
  func.func @_classifier_head_kernel(%arg0: i32, %arg1: memref<1x49x2048xf32, #tpu.memory_space<vmem>>, %arg2: memref<2048x512xbf16, #tpu.memory_space<vmem>>, %arg3: memref<1x512xf32, #tpu.memory_space<vmem>>, %arg4: memref<512x2xf32, #tpu.memory_space<vmem>>, %arg5: memref<1x2xf32, #tpu.memory_space<vmem>>, %arg6: memref<1x1x2xf32, #tpu.memory_space<vmem>>) attributes {dimension_semantics = [#tpu.dimension_semantics<parallel>], iteration_bounds = array<i64: 2>, scalar_prefetch = 0 : i64, scratch_operands = 0 : i64, tpu.core_type = #tpu.core_type<tc>, window_params = [{transform_indices = @transform_0, window_bounds = array<i64: 1, 49, 2048>}, {pipeline_mode = #tpu.pipeline_mode<synchronous>, transform_indices = @transform_1, window_bounds = array<i64: 2048, 512>}, {pipeline_mode = #tpu.pipeline_mode<synchronous>, transform_indices = @transform_2, window_bounds = array<i64: 1, 512>}, {pipeline_mode = #tpu.pipeline_mode<synchronous>, transform_indices = @transform_3, window_bounds = array<i64: 512, 2>}, {pipeline_mode = #tpu.pipeline_mode<synchronous>, transform_indices = @transform_4, window_bounds = array<i64: 1, 2>}, {transform_indices = @transform_5, window_bounds = array<i64: 1, 1, 2>}]} {
    %c0 = arith.constant 0 : index
    %c0_0 = arith.constant 0 : index
    %c0_1 = arith.constant 0 : index
    %0 = vector.load %arg1[%c0, %c0_0, %c0_1] : memref<1x49x2048xf32, #tpu.memory_space<vmem>>, vector<1x49x2048xf32>
    %cst = arith.constant dense<0.000000e+00> : vector<1x2048xf32>
    %1 = vector.multi_reduction <add>, %0, %cst [1] : vector<1x49x2048xf32> to vector<1x2048xf32>
    %cst_2 = arith.constant 0.0204081628 : f32
    %2 = vector.broadcast %cst_2 : f32 to vector<1x2048xf32>
    %3 = arith.mulf %1, %2 : vector<1x2048xf32>
    %4 = arith.truncf %3 : vector<1x2048xf32> to vector<1x2048xbf16>
    %c0_3 = arith.constant 0 : index
    %c0_4 = arith.constant 0 : index
    %5 = vector.load %arg2[%c0_3, %c0_4] : memref<2048x512xbf16, #tpu.memory_space<vmem>>, vector<2048x512xbf16>
    %cst_5 = arith.constant dense<0.000000e+00> : vector<1x512xf32>
    %6 = tpu.matmul %4, %5, %cst_5 {dimension_numbers = #tpu.dot_dimension_numbers<[1], [0], [0], [1], [0, 0, 1, 1], [], []>} : vector<1x2048xbf16>, vector<2048x512xbf16>, vector<1x512xf32> -> vector<1x512xf32>
    %c0_6 = arith.constant 0 : index
    %c0_7 = arith.constant 0 : index
    %7 = vector.load %arg3[%c0_6, %c0_7] : memref<1x512xf32, #tpu.memory_space<vmem>>, vector<1x512xf32>
    %8 = arith.addf %6, %7 : vector<1x512xf32>
    %cst_8 = arith.constant 0.000000e+00 : f32
    %9 = vector.broadcast %cst_8 : f32 to vector<1x512xf32>
    %10 = arith.maximumf %8, %9 : vector<1x512xf32>
    %c0_9 = arith.constant 0 : index
    %c0_10 = arith.constant 0 : index
    %11 = vector.load %arg4[%c0_9, %c0_10] : memref<512x2xf32, #tpu.memory_space<vmem>>, vector<512x2xf32>
    %cst_11 = arith.constant dense<0.000000e+00> : vector<1x2xf32>
    %12 = tpu.matmul %10, %11, %cst_11 {dimension_numbers = #tpu.dot_dimension_numbers<[1], [0], [0], [1], [0, 0, 1, 1], [], []>} : vector<1x512xf32>, vector<512x2xf32>, vector<1x2xf32> -> vector<1x2xf32>
    %c0_12 = arith.constant 0 : index
    %c0_13 = arith.constant 0 : index
    %13 = vector.load %arg5[%c0_12, %c0_13] : memref<1x2xf32, #tpu.memory_space<vmem>>, vector<1x2xf32>
    %14 = arith.addf %12, %13 : vector<1x2xf32>
    %15 = vector.shape_cast %14 : vector<1x2xf32> to vector<1x1x2xf32>
    %c0_14 = arith.constant 0 : index
    %c0_15 = arith.constant 0 : index
    %c0_16 = arith.constant 0 : index
    %16 = vector.load %arg6[%c0_14, %c0_15, %c0_16] : memref<1x1x2xf32, #tpu.memory_space<vmem>>, vector<1x1x2xf32>
    tpu.vector_store %arg6[%c0_14, %c0_15, %c0_16], %15 {strides = array<i32>} : memref<1x1x2xf32, #tpu.memory_space<vmem>>, vector<1x1x2xf32>,
    return
  }
  func.func @transform_0(%arg0: i32) -> (i32, i32, i32) {
    %c0_i32 = arith.constant 0 : i32
    %c0_i32_0 = arith.constant 0 : i32
    %c0_i32_1 = arith.constant 0 : i32
    return %arg0, %c0_i32, %c0_i32_0 : i32, i32, i32
  }
  func.func @transform_1(%arg0: i32) -> (i32, i32) {
    %c0_i32 = arith.constant 0 : i32
    %c0_i32_0 = arith.constant 0 : i32
    %c0_i32_1 = arith.constant 0 : i32
    return %c0_i32, %c0_i32_0 : i32, i32
  }
  func.func @transform_2(%arg0: i32) -> (i32, i32) {
    %c0_i32 = arith.constant 0 : i32
    %c0_i32_0 = arith.constant 0 : i32
    %c0_i32_1 = arith.constant 0 : i32
    return %c0_i32, %c0_i32_0 : i32, i32
  }
  func.func @transform_3(%arg0: i32) -> (i32, i32) {
    %c0_i32 = arith.constant 0 : i32
    %c0_i32_0 = arith.constant 0 : i32
    %c0_i32_1 = arith.constant 0 : i32
    return %c0_i32, %c0_i32_0 : i32, i32
  }
  func.func @transform_4(%arg0: i32) -> (i32, i32) {
    %c0_i32 = arith.constant 0 : i32
    %c0_i32_0 = arith.constant 0 : i32
    %c0_i32_1 = arith.constant 0 : i32
    return %c0_i32, %c0_i32_0 : i32, i32
  }
  func.func @transform_5(%arg0: i32) -> (i32, i32, i32) {
    %c0_i32 = arith.constant 0 : i32
    %c0_i32_0 = arith.constant 0 : i32
    %c0_i32_1 = arith.constant 0 : i32
    return %arg0, %c0_i32, %c0_i32_0 : i32, i32, i32
  }
}

</mosaic_0001>

<llo_original>
// kernel: tpu_custom_call.1
$region0: #{tpu_custom_call.1}
  #allocation0 [shape = 'u32[]', space=smem, size = 0x4, offset = 0x4, fixed_abs, tag = 'smem constant byte address 0x4 - core index']
  #allocation1 [shape = 'u32[144,128]{1,0:T(1,128)}', space=vmem, size = 0x12000, scoped, tag = 'internal scratch']
  %s0 = inlined_call_operand.vmem [shape: f32[2,49,2048], index: 0, kind: input, shape index: {}]
  %s1 = inlined_call_operand.hbm [shape: bf16[2048,512], index: 1, kind: input, shape index: {}]
  %s2 = inlined_call_operand.hbm [shape: f32[1,512], index: 2, kind: input, shape index: {}]
  %s3 = inlined_call_operand.vmem [shape: f32[512,2], index: 3, kind: input, shape index: {}]
  %s4 = inlined_call_operand.hbm [shape: f32[1,2], index: 4, kind: input, shape index: {}]
  %s5 = inlined_call_operand.hbm [shape: f32[2,1,2], index: 5, kind: output, shape index: {}]
  %s6 = sld [smem:[#allocation0]]
  $region65: #{tpu_custom_call.1} parent=0
    _
  %s8 = ssub.s32 1, %s6
  %s9 = scalar_select 0, %s8, %s6
  $region1: #{tpu_custom_call.1} parent=0
    #allocation2 [shape = 'u8[2097152]{0}', space=vmem, size = 0x200000, scoped, tag = 'input window, operand 1, single buffered']
    #allocation3 [shape = 's32[2]{0}', space=sflag, size = 0x8, scoped, tag = 'scoped memory for tpu_custom_call.1']
    #allocation4 [shape = 's32[2]{0}', space=sflag, size = 0x8, scoped, tag = 'scoped memory for tpu_custom_call.1']
    #allocation5 [shape = 'u8[2048]{0}', space=vmem, size = 0x800, scoped, tag = 'input window, operand 2, single buffered']
    #allocation6 [shape = 's32[1]{0}', space=sflag, size = 0x4, scoped, tag = 'scoped memory for tpu_custom_call.1']
    #allocation7 [shape = 'u8[512]{0}', space=vmem, size = 0x400, scoped, tag = 'input window, operand 4, single buffered']
    #allocation8 [shape = 'u8[1024]{0}', space=vmem, size = 0x400, scoped, tag = 'output window, operand 0']
    %10 = vsyncpa [#allocation3], 0
    %11 = vsyncpa [#allocation6], 0
    %12 = vsyncpa [#allocation4], 0
    %s13 = scalar_lea.sflag [#allocation4], 1
    %14 = vsyncpa %s13, 0
    loop: start=0, step=1, limit=4
    $region2: #{tpu_custom_call.1} parent=1 // loop_pre_header
      _
    $region3: #{tpu_custom_call.1} parent=1 // loop_header
      %s16 = sphi 0, %s20
      %p17 = scmp.ge.s32.totalorder %s16, 4
      %s26 = sphi 0, %s28
      %s29 = sphi 0, %s26
      %s30 = sphi 0, %s29
      %s46 = sphi 0, %s30
      %s50 = sphi 0, %s50
      %s52 = sphi 0, %s50
      %s53 = sphi 0, %s52
      %s67 = sphi 0, %s53
      %s71 = sphi 0, %s71
      %s73 = sphi 0, %s71
      %s74 = sphi 0, %s73
      %s88 = sphi 0, %s74
      %s92 = sphi 0, %s92
      %s94 = sphi 0, %s92
      %s95 = sphi 0, %s94
      %s109 = sphi 0, %s95
      %s113 = sphi 0, %s113
      %s115 = sphi 0, %s113
      %s116 = sphi 0, %s115
      %s130 = sphi 0, %s116
      %s136 = sphi 0, %s138
      %s139 = sphi 0, %s136
      %s140 = sphi 0, %s139
      %s156 = sphi 0, %s140
    $region4: #{tpu_custom_call.1} parent=1 // loop_header_branch
      %19 = sbr.rel (%p17) target = $region8
    $region5: #{tpu_custom_call.1} parent=1 // loop_body
      %s21 = ssub.s32 %s16, 1
      %s22 = ssub.s32 %s16, 2
      %s23 = sadd.s32 %s16, 1
      %s24 = ssub.s32 %s16, %s23
      %p25 = scmp.eq.s32.totalorder %s24, 0
      %s27 = sadd.s32 %s26, 1
      %s28 = scalar_select %p25, %s26, %s27
      %p31 = pneg %p25
      %p32 = scmp.eq.s32.totalorder %s16, 1
      %p33 = por %p31, %p32
      %p34 = scmp.ne.s32.totalorder %s26, %s29
      %p35 = scmp.eq.s32.totalorder %s16, 0
      %p36 = por %p34, %p35
      %p37 = scmp.ne.s32.totalorder %s26, %s29
      %p38 = scmp.eq.s32.totalorder %s21, 1
      %p39 = por %p37, %p38
      %p40 = scmp.ne.s32.totalorder %s29, %s30
      %p41 = scmp.eq.s32.totalorder %s21, 0
      %p42 = por %p40, %p41
      %p43 = scmp.ne.s32.totalorder %s29, %s30
      %p44 = scmp.eq.s32.totalorder %s22, 1
      %p45 = por %p43, %p44
      %p47 = scmp.ne.s32.totalorder %s30, %s46
      %p48 = scmp.eq.s32.totalorder %s22, 0
      %p49 = por %p47, %p48
      %s51 = sadd.s32 %s50, 1
      %p54 = scmp.eq.s32.totalorder %s16, 1
      %p55 = scmp.ne.s32.totalorder %s50, %s52
      %p56 = scmp.eq.s32.totalorder %s16, 0
      %p57 = por %p55, %p56
      %p58 = scmp.ne.s32.totalorder %s50, %s52
      %p59 = scmp.eq.s32.totalorder %s21, 1
      %p60 = por %p58, %p59
      %p61 = scmp.ne.s32.totalorder %s52, %s53
      %p62 = scmp.eq.s32.totalorder %s21, 0
      %p63 = por %p61, %p62
      %p64 = scmp.ne.s32.totalorder %s52, %s53
      %p65 = scmp.eq.s32.totalorder %s22, 1
      %p66 = por %p64, %p65
      %p68 = scmp.ne.s32.totalorder %s53, %s67
      %p69 = scmp.eq.s32.totalorder %s22, 0
      %p70 = por %p68, %p69
      %s72 = sadd.s32 %s71, 1
      %p75 = scmp.eq.s32.totalorder %s16, 1
      %p76 = scmp.ne.s32.totalorder %s71, %s73
      %p77 = scmp.eq.s32.totalorder %s16, 0
      %p78 = por %p76, %p77
      %p79 = scmp.ne.s32.totalorder %s71, %s73
      %p80 = scmp.eq.s32.totalorder %s21, 1
      %p81 = por %p79, %p80
      %p82 = scmp.ne.s32.totalorder %s73, %s74
      %p83 = scmp.eq.s32.totalorder %s21, 0
      %p84 = por %p82, %p83
      %p85 = scmp.ne.s32.totalorder %s73, %s74
      %p86 = scmp.eq.s32.totalorder %s22, 1
      %p87 = por %p85, %p86
      %p89 = scmp.ne.s32.totalorder %s74, %s88
      %p90 = scmp.eq.s32.totalorder %s22, 0
      %p91 = por %p89, %p90
      %s93 = sadd.s32 %s92, 1
      %p96 = scmp.eq.s32.totalorder %s16, 1
      %p97 = scmp.ne.s32.totalorder %s92, %s94
      %p98 = scmp.eq.s32.totalorder %s16, 0
      %p99 = por %p97, %p98
      %p100 = scmp.ne.s32.totalorder %s92, %s94
      %p101 = scmp.eq.s32.totalorder %s21, 1
      %p102 = por %p100, %p101
      %p103 = scmp.ne.s32.totalorder %s94, %s95
      %p104 = scmp.eq.s32.totalorder %s21, 0
      %p105 = por %p103, %p104
      %p106 = scmp.ne.s32.totalorder %s94, %s95
      %p107 = scmp.eq.s32.totalorder %s22, 1
      %p108 = por %p106, %p107
      %p110 = scmp.ne.s32.totalorder %s95, %s109
      %p111 = scmp.eq.s32.totalorder %s22, 0
      %p112 = por %p110, %p111
      %s114 = sadd.s32 %s113, 1
      %p117 = scmp.eq.s32.totalorder %s16, 1
      %p118 = scmp.ne.s32.totalorder %s113, %s115
      %p119 = scmp.eq.s32.totalorder %s16, 0
      %p120 = por %p118, %p119
      %p121 = scmp.ne.s32.totalorder %s113, %s115
      %p122 = scmp.eq.s32.totalorder %s21, 1
      %p123 = por %p121, %p122
      %p124 = scmp.ne.s32.totalorder %s115, %s116
      %p125 = scmp.eq.s32.totalorder %s21, 0
      %p126 = por %p124, %p125
      %p127 = scmp.ne.s32.totalorder %s115, %s116
      %p128 = scmp.eq.s32.totalorder %s22, 1
      %p129 = por %p127, %p128
      %p131 = scmp.ne.s32.totalorder %s116, %s130
      %p132 = scmp.eq.s32.totalorder %s22, 0
      %p133 = por %p131, %p132
      %s134 = ssub.s32 %s16, %s23
      %p135 = scmp.eq.s32.totalorder %s134, 0
      %s137 = sadd.s32 %s136, 1
      %s138 = scalar_select %p135, %s136, %s137
      %p141 = pneg %p135
      %p142 = scmp.eq.s32.totalorder %s16, 1
      %p143 = por %p141, %p142
      %p144 = scmp.ne.s32.totalorder %s136, %s139
      %p145 = scmp.eq.s32.totalorder %s16, 0
      %p146 = por %p144, %p145
      %p147 = scmp.ne.s32.totalorder %s136, %s139
      %p148 = scmp.eq.s32.totalorder %s21, 1
      %p149 = por %p147, %p148
      %p150 = scmp.ne.s32.totalorder %s139, %s140
      %p151 = scmp.eq.s32.totalorder %s21, 0
      %p152 = por %p150, %p151
      %p153 = scmp.ne.s32.totalorder %s139, %s140
      %p154 = scmp.eq.s32.totalorder %s22, 1
      %p155 = por %p153, %p154
      %p157 = scmp.ne.s32.totalorder %s140, %s156
      %p158 = scmp.eq.s32.totalorder %s22, 0
      %p159 = por %p157, %p158
      %p160 = scmp.le.s32.totalorder 1, %s16
      %p161 = scmp.lt.s32.totalorder %s16, 3
      %p162 = pnand %p160, %p161
      %p163 = pneg %p162
      // Predicated region
      $region9: #{tpu_custom_call.1} parent=5 // pred_check
        _
      $region10: #{tpu_custom_call.1} parent=5 // pred_check_branch
        %165 = sbr.rel (%p162) target = $region12
      $region11: #{tpu_custom_call.1} parent=5 // pred_region
        %s166 = ssub.s32 %s16, 1
        // Predicated region
        $region13: #{tpu_custom_call.1} parent=11 // pred_check
          %p167 = pneg %p63
        $region14: #{tpu_custom_call.1} parent=11 // pred_check_branch
          %169 = sbr.rel (%p167) target = $region16
        $region15: #{tpu_custom_call.1} parent=11 // pred_region
          %s171 = ssub.s32 65536, 65536
          %172 = vsyncadd [#allocation3], %s171
          %s173 = sshll.u32 [#allocation2], 4
          %s174 = int_to_ptr.vmem [resolvable:$true] %s173
          %179 = dma.hbm_to_vmem [thread:$0]  %s1, 65536, %s174, [#allocation3], 256, 256, 16
        $region16: #{tpu_custom_call.1} parent=11 // pred_fallthru
          _
        // Predicated region
        $region17: #{tpu_custom_call.1} parent=11 // pred_check
          %p180 = pneg %p84
        $region18: #{tpu_custom_call.1} parent=11 // pred_check_branch
          %182 = sbr.rel (%p180) target = $region20
        $region19: #{tpu_custom_call.1} parent=11 // pred_region
          %s184 = ssub.s32 64, 64
          %185 = vsyncadd [#allocation6], %s184
          %s187 = sshll.u32 [#allocation5], 4
          %s188 = int_to_ptr.vmem [resolvable:$true] %s187
          %190 = dma.hbm_to_vmem [thread:$0]  %s2, 64, %s188, [#allocation6]
        $region20: #{tpu_custom_call.1} parent=11 // pred_fallthru
          _
        // Predicated region
        $region21: #{tpu_custom_call.1} parent=11 // pred_check
          %p191 = pneg %p105
        $region22: #{tpu_custom_call.1} parent=11 // pred_check_branch
          %193 = sbr.rel (%p191) target = $region24
        $region23: #{tpu_custom_call.1} parent=11 // pred_region
          _
        $region24: #{tpu_custom_call.1} parent=11 // pred_fallthru
          _
        // Predicated region
        $region25: #{tpu_custom_call.1} parent=11 // pred_check
          %p194 = pneg %p126
        $region26: #{tpu_custom_call.1} parent=11 // pred_check_branch
          %196 = sbr.rel (%p194) target = $region28
        $region27: #{tpu_custom_call.1} parent=11 // pred_region
          %s198 = ssub.s32 16, 16
          %199 = vsyncadd [#allocation6], %s198
          %s201 = sshll.u32 [#allocation7], 4
          %s202 = int_to_ptr.vmem [resolvable:$true] %s201
          %204 = dma.hbm_to_vmem [thread:$0]  %s4, 16, %s202, [#allocation6]
        $region28: #{tpu_custom_call.1} parent=11 // pred_fallthru
          _
      $region12: #{tpu_custom_call.1} parent=5 // pred_fallthru
        _
      %p205 = scmp.lt.s32.totalorder %s16, 2
      // Predicated region
      $region29: #{tpu_custom_call.1} parent=5 // pred_check
        %p206 = pneg %p205
      $region30: #{tpu_custom_call.1} parent=5 // pred_check_branch
        %208 = sbr.rel (%p206) target = $region32
      $region31: #{tpu_custom_call.1} parent=5 // pred_region
        // Predicated region
        $region33: #{tpu_custom_call.1} parent=31 // pred_check
          %p209 = pneg %p36
        $region34: #{tpu_custom_call.1} parent=31 // pred_check_branch
          %211 = sbr.rel (%p209) target = $region36
        $region35: #{tpu_custom_call.1} parent=31 // pred_region
          %p212 = scmp.lt.s32.totalorder %s16, 1
          %s213 = scalar_select %p212, %s16, 1
          %s214 = smul.addr %s213, 112
          %s215 = smul.addr %s214, 8
          %s216 = scalar_lea.vmem %s0, %s215
        $region36: #{tpu_custom_call.1} parent=31 // pred_fallthru
          _
      $region32: #{tpu_custom_call.1} parent=5 // pred_fallthru
        _
      %p217 = scmp.le.s32.totalorder 1, %s16
      %p218 = scmp.lt.s32.totalorder %s16, 3
      %p219 = pnand %p217, %p218
      %p220 = pneg %p219
      // Predicated region
      $region37: #{tpu_custom_call.1} parent=5 // pred_check
        _
      $region38: #{tpu_custom_call.1} parent=5 // pred_check_branch
        %222 = sbr.rel (%p219) target = $region40
      $region39: #{tpu_custom_call.1} parent=5 // pred_region
        %s223 = ssub.s32 %s16, 1
        // Predicated region
        $region41: #{tpu_custom_call.1} parent=39 // pred_check
          %p224 = pneg %p63
        $region42: #{tpu_custom_call.1} parent=39 // pred_check_branch
          %226 = sbr.rel (%p224) target = $region44
        $region43: #{tpu_custom_call.1} parent=39 // pred_region
          %227 = dma.done [#allocation3], 65536
        $region44: #{tpu_custom_call.1} parent=39 // pred_fallthru
          _
        // Predicated region
        $region45: #{tpu_custom_call.1} parent=39 // pred_check
          %p228 = pneg %p84
        $region46: #{tpu_custom_call.1} parent=39 // pred_check_branch
          %230 = sbr.rel (%p228) target = $region48
        $region47: #{tpu_custom_call.1} parent=39 // pred_region
          %231 = dma.done [#allocation6], 64
        $region48: #{tpu_custom_call.1} parent=39 // pred_fallthru
          _
        // Predicated region
        $region49: #{tpu_custom_call.1} parent=39 // pred_check
          %p232 = pneg %p126
        $region50: #{tpu_custom_call.1} parent=39 // pred_check_branch
          %234 = sbr.rel (%p232) target = $region52
        $region51: #{tpu_custom_call.1} parent=39 // pred_region
          %235 = dma.done [#allocation6], 16
        $region52: #{tpu_custom_call.1} parent=39 // pred_fallthru
          _
        %p236 = scmp.lt.s32.totalorder %s21, 1
        %s237 = scalar_select %p236, %s21, 1
        %s238 = smul.addr %s237, 112
        %s239 = smul.addr %s238, 8
        %s240 = scalar_lea.vmem %s0, %s239
        %p241 = pneg %p42
        %p242 = pneg %p39
        %p243 = pneg %p63
        %p244 = pneg %p60
        %p245 = pneg %p84
        %p246 = pneg %p81
        %p247 = pneg %p105
        %p248 = pneg %p102
        %p249 = pneg %p126
        %p250 = pneg %p123
        %p251 = pneg %p152
        %p252 = pneg %p149
        %s253 = sand.u32 %s139, 1
        %s254 = scalar_lea.sflag [#allocation4], %s253
        %s255 = sand.u32 %s139, 1
        %s256 = scalar_lea.vmem [#allocation8], %s255
        %p257 = scmp.lt.s32.totalorder %s21, 1
        %s258 = scalar_select %p257, %s21, 1
        %s259 = smul.addr %s258, 112
        %s260 = smul.addr %s259, 8
        %s261 = scalar_lea.vmem %s0, %s260
        %v262 = vld [vmem:[%s261] sm:$0xff]
        %v263 = vld [vmem:[%s261 + $0x8] sm:$0xff]
        %v264 = vld [vmem:[%s261 + $0x10] sm:$0xff]
        %v265 = vld [vmem:[%s261 + $0x18] sm:$0xff]
        %v266 = vld [vmem:[%s261 + $0x20] sm:$0xff]
        %v267 = vld [vmem:[%s261 + $0x28] sm:$0xff]
        %v268 = vld [vmem:[%s261 + $0x30] sm:$0xff]
        %v269 = vld [vmem:[%s261 + $0x38] sm:$0xff]
        %v270 = vld [vmem:[%s261 + $0x40] sm:$0xff]
        %v271 = vld [vmem:[%s261 + $0x48] sm:$0xff]
        %v272 = vld [vmem:[%s261 + $0x50] sm:$0xff]
        %v273 = vld [vmem:[%s261 + $0x58] sm:$0xff]
        %v274 = vld [vmem:[%s261 + $0x60] sm:$0xff]
        %v275 = vld [vmem:[%s261 + $0x68] sm:$0xff]
        %v276 = vld [vmem:[%s261 + $0x70] sm:$0xff]
        %v277 = vld [vmem:[%s261 + $0x78] sm:$0xff]
        %v278 = vld [vmem:[%s261 + $0x80] sm:$0xff]
        %v279 = vld [vmem:[%s261 + $0x88] sm:$0xff]
        %v280 = vld [vmem:[%s261 + $0x90] sm:$0xff]
        %v281 = vld [vmem:[%s261 + $0x98] sm:$0xff]
        %v282 = vld [vmem:[%s261 + $0xa0] sm:$0xff]
        %v283 = vld [vmem:[%s261 + $0xa8] sm:$0xff]
        %v284 = vld [vmem:[%s261 + $0xb0] sm:$0xff]
        %v285 = vld [vmem:[%s261 + $0xb8] sm:$0xff]
        %v286 = vld [vmem:[%s261 + $0xc0] sm:$0xff]
        %v287 = vld [vmem:[%s261 + $0xc8] sm:$0xff]
        %v288 = vld [vmem:[%s261 + $0xd0] sm:$0xff]
        %v289 = vld [vmem:[%s261 + $0xd8] sm:$0xff]
        %v290 = vld [vmem:[%s261 + $0xe0] sm:$0xff]
        %v291 = vld [vmem:[%s261 + $0xe8] sm:$0xff]
        %v292 = vld [vmem:[%s261 + $0xf0] sm:$0xff]
        %v293 = vld [vmem:[%s261 + $0xf8] sm:$0xff]
        %v294 = vld [vmem:[%s261 + $0x100] sm:$0xff]
        %v295 = vld [vmem:[%s261 + $0x108] sm:$0xff]
        %v296 = vld [vmem:[%s261 + $0x110] sm:$0xff]
        %v297 = vld [vmem:[%s261 + $0x118] sm:$0xff]
        %v298 = vld [vmem:[%s261 + $0x120] sm:$0xff]
        %v299 = vld [vmem:[%s261 + $0x128] sm:$0xff]
        %v300 = vld [vmem:[%s261 + $0x130] sm:$0xff]
        %v301 = vld [vmem:[%s261 + $0x138] sm:$0xff]
        %v302 = vld [vmem:[%s261 + $0x140] sm:$0xff]
        %v303 = vld [vmem:[%s261 + $0x148] sm:$0xff]
        %v304 = vld [vmem:[%s261 + $0x150] sm:$0xff]
        %v305 = vld [vmem:[%s261 + $0x158] sm:$0xff]
        %v306 = vld [vmem:[%s261 + $0x160] sm:$0xff]
        %v307 = vld [vmem:[%s261 + $0x168] sm:$0xff]
        %v308 = vld [vmem:[%s261 + $0x170] sm:$0xff]
        %v309 = vld [vmem:[%s261 + $0x178] sm:$0xff]
        %v310 = vld [vmem:[%s261 + $0x180] sm:$0xff]
        %v311 = vld [vmem:[%s261 + $0x188] sm:$0xff]
        %v312 = vld [vmem:[%s261 + $0x190] sm:$0xff]
        %v313 = vld [vmem:[%s261 + $0x198] sm:$0xff]
        %v314 = vld [vmem:[%s261 + $0x1a0] sm:$0xff]
        %v315 = vld [vmem:[%s261 + $0x1a8] sm:$0xff]
        %v316 = vld [vmem:[%s261 + $0x1b0] sm:$0xff]
        %v317 = vld [vmem:[%s261 + $0x1b8] sm:$0xff]
        %v318 = vld [vmem:[%s261 + $0x1c0] sm:$0xff]
        %v319 = vld [vmem:[%s261 + $0x1c8] sm:$0xff]
        %v320 = vld [vmem:[%s261 + $0x1d0] sm:$0xff]
        %v321 = vld [vmem:[%s261 + $0x1d8] sm:$0xff]
        %v322 = vld [vmem:[%s261 + $0x1e0] sm:$0xff]
        %v323 = vld [vmem:[%s261 + $0x1e8] sm:$0xff]
        %v324 = vld [vmem:[%s261 + $0x1f0] sm:$0xff]
        %v325 = vld [vmem:[%s261 + $0x1f8] sm:$0xff]
        %v326 = vld [vmem:[%s261 + $0x200] sm:$0xff]
        %v327 = vld [vmem:[%s261 + $0x208] sm:$0xff]
        %v328 = vld [vmem:[%s261 + $0x210] sm:$0xff]
        %v329 = vld [vmem:[%s261 + $0x218] sm:$0xff]
        %v330 = vld [vmem:[%s261 + $0x220] sm:$0xff]
        %v331 = vld [vmem:[%s261 + $0x228] sm:$0xff]
        %v332 = vld [vmem:[%s261 + $0x230] sm:$0xff]
        %v333 = vld [vmem:[%s261 + $0x238] sm:$0xff]
        %v334 = vld [vmem:[%s261 + $0x240] sm:$0xff]
        %v335 = vld [vmem:[%s261 + $0x248] sm:$0xff]
        %v336 = vld [vmem:[%s261 + $0x250] sm:$0xff]
        %v337 = vld [vmem:[%s261 + $0x258] sm:$0xff]
        %v338 = vld [vmem:[%s261 + $0x260] sm:$0xff]
        %v339 = vld [vmem:[%s261 + $0x268] sm:$0xff]
        %v340 = vld [vmem:[%s261 + $0x270] sm:$0xff]
        %v341 = vld [vmem:[%s261 + $0x278] sm:$0xff]
        %v342 = vld [vmem:[%s261 + $0x280] sm:$0xff]
        %v343 = vld [vmem:[%s261 + $0x288] sm:$0xff]
        %v344 = vld [vmem:[%s261 + $0x290] sm:$0xff]
        %v345 = vld [vmem:[%s261 + $0x298] sm:$0xff]
        %v346 = vld [vmem:[%s261 + $0x2a0] sm:$0xff]
        %v347 = vld [vmem:[%s261 + $0x2a8] sm:$0xff]
        %v348 = vld [vmem:[%s261 + $0x2b0] sm:$0xff]
        %v349 = vld [vmem:[%s261 + $0x2b8] sm:$0xff]
        %v350 = vld [vmem:[%s261 + $0x2c0] sm:$0xff]
        %v351 = vld [vmem:[%s261 + $0x2c8] sm:$0xff]
        %v352 = vld [vmem:[%s261 + $0x2d0] sm:$0xff]
        %v353 = vld [vmem:[%s261 + $0x2d8] sm:$0xff]
        %v354 = vld [vmem:[%s261 + $0x2e0] sm:$0xff]
        %v355 = vld [vmem:[%s261 + $0x2e8] sm:$0xff]
        %v356 = vld [vmem:[%s261 + $0x2f0] sm:$0xff]
        %v357 = vld [vmem:[%s261 + $0x2f8] sm:$0xff]
        %v358 = vld [vmem:[%s261 + $0x300] sm:$0x1]
        %v359 = vld [vmem:[%s261 + $0x308] sm:$0x1]
        %v360 = vld [vmem:[%s261 + $0x310] sm:$0x1]
        %v361 = vld [vmem:[%s261 + $0x318] sm:$0x1]
        %v362 = vld [vmem:[%s261 + $0x320] sm:$0x1]
        %v363 = vld [vmem:[%s261 + $0x328] sm:$0x1]
        %v364 = vld [vmem:[%s261 + $0x330] sm:$0x1]
        %v365 = vld [vmem:[%s261 + $0x338] sm:$0x1]
        %v366 = vld [vmem:[%s261 + $0x340] sm:$0x1]
        %v367 = vld [vmem:[%s261 + $0x348] sm:$0x1]
        %v368 = vld [vmem:[%s261 + $0x350] sm:$0x1]
        %v369 = vld [vmem:[%s261 + $0x358] sm:$0x1]
        %v370 = vld [vmem:[%s261 + $0x360] sm:$0x1]
        %v371 = vld [vmem:[%s261 + $0x368] sm:$0x1]
        %v372 = vld [vmem:[%s261 + $0x370] sm:$0x1]
        %v373 = vld [vmem:[%s261 + $0x378] sm:$0x1]
        %v374 = vadd.f32 %v262, %v278
        %v375 = vadd.f32 %v374, %v294
        %v376 = vadd.f32 %v375, %v310
        %v377 = vadd.f32 %v376, %v326
        %v378 = vadd.f32 %v377, %v342
        %vm379 = vcmask 1040384
        %v380 = vsel %vm379, %v358, 0.0
        %v381 = vadd.f32 %v378, %v380
        %v382 = vrot.slane %v381, 4
        %v383 = vadd.f32 %v381, %v382
        %v384 = vrot.slane %v383, 2
        %v385 = vadd.f32 %v383, %v384
        %v386 = vrot.slane %v385, 1
        %v387 = vadd.f32 %v385, %v386
        %v388 = vadd.f32 %v263, %v279
        %v389 = vadd.f32 %v388, %v295
        %v390 = vadd.f32 %v389, %v311
        %v391 = vadd.f32 %v390, %v327
        %v392 = vadd.f32 %v391, %v343
        %v393 = vsel %vm379, %v359, 0.0
        %v394 = vadd.f32 %v392, %v393
        %v395 = vrot.slane %v394, 4
        %v396 = vadd.f32 %v394, %v395
        %v397 = vrot.slane %v396, 2
        %v398 = vadd.f32 %v396, %v397
        %v399 = vrot.slane %v398, 1
        %v400 = vadd.f32 %v398, %v399
        %v401 = vadd.f32 %v264, %v280
        %v402 = vadd.f32 %v401, %v296
        %v403 = vadd.f32 %v402, %v312
        %v404 = vadd.f32 %v403, %v328
        %v405 = vadd.f32 %v404, %v344
        %v406 = vsel %vm379, %v360, 0.0
        %v407 = vadd.f32 %v405, %v406
        %v408 = vrot.slane %v407, 4
        %v409 = vadd.f32 %v407, %v408
        %v410 = vrot.slane %v409, 2
        %v411 = vadd.f32 %v409, %v410
        %v412 = vrot.slane %v411, 1
        %v413 = vadd.f32 %v411, %v412
        %v414 = vadd.f32 %v265, %v281
        %v415 = vadd.f32 %v414, %v297
        %v416 = vadd.f32 %v415, %v313
        %v417 = vadd.f32 %v416, %v329
        %v418 = vadd.f32 %v417, %v345
        %v419 = vsel %vm379, %v361, 0.0
        %v420 = vadd.f32 %v418, %v419
        %v421 = vrot.slane %v420, 4
        %v422 = vadd.f32 %v420, %v421
        %v423 = vrot.slane %v422, 2
        %v424 = vadd.f32 %v422, %v423
        %v425 = vrot.slane %v424, 1
        %v426 = vadd.f32 %v424, %v425
        %v427 = vadd.f32 %v266, %v282
        %v428 = vadd.f32 %v427, %v298
        %v429 = vadd.f32 %v428, %v314
        %v430 = vadd.f32 %v429, %v330
        %v431 = vadd.f32 %v430, %v346
        %v432 = vsel %vm379, %v362, 0.0
        %v433 = vadd.f32 %v431, %v432
        %v434 = vrot.slane %v433, 4
        %v435 = vadd.f32 %v433, %v434
        %v436 = vrot.slane %v435, 2
        %v437 = vadd.f32 %v435, %v436
        %v438 = vrot.slane %v437, 1
        %v439 = vadd.f32 %v437, %v438
        %v440 = vadd.f32 %v267, %v283
        %v441 = vadd.f32 %v440, %v299
        %v442 = vadd.f32 %v441, %v315
        %v443 = vadd.f32 %v442, %v331
        %v444 = vadd.f32 %v443, %v347
        %v445 = vsel %vm379, %v363, 0.0
        %v446 = vadd.f32 %v444, %v445
        %v447 = vrot.slane %v446, 4
        %v448 = vadd.f32 %v446, %v447
        %v449 = vrot.slane %v448, 2
        %v450 = vadd.f32 %v448, %v449
        %v451 = vrot.slane %v450, 1
        %v452 = vadd.f32 %v450, %v451
        %v453 = vadd.f32 %v268, %v284
        %v454 = vadd.f32 %v453, %v300
        %v455 = vadd.f32 %v454, %v316
        %v456 = vadd.f32 %v455, %v332
        %v457 = vadd.f32 %v456, %v348
        %v458 = vsel %vm379, %v364, 0.0
        %v459 = vadd.f32 %v457, %v458
        %v460 = vrot.slane %v459, 4
        %v461 = vadd.f32 %v459, %v460
        %v462 = vrot.slane %v461, 2
        %v463 = vadd.f32 %v461, %v462
        %v464 = vrot.slane %v463, 1
        %v465 = vadd.f32 %v463, %v464
        %v466 = vadd.f32 %v269, %v285
        %v467 = vadd.f32 %v466, %v301
        %v468 = vadd.f32 %v467, %v317
        %v469 = vadd.f32 %v468, %v333
        %v470 = vadd.f32 %v469, %v349
        %v471 = vsel %vm379, %v365, 0.0
        %v472 = vadd.f32 %v470, %v471
        %v473 = vrot.slane %v472, 4
        %v474 = vadd.f32 %v472, %v473
        %v475 = vrot.slane %v474, 2
        %v476 = vadd.f32 %v474, %v475
        %v477 = vrot.slane %v476, 1
        %v478 = vadd.f32 %v476, %v477
        %v479 = vadd.f32 %v270, %v286
        %v480 = vadd.f32 %v479, %v302
        %v481 = vadd.f32 %v480, %v318
        %v482 = vadd.f32 %v481, %v334
        %v483 = vadd.f32 %v482, %v350
        %v484 = vsel %vm379, %v366, 0.0
        %v485 = vadd.f32 %v483, %v484
        %v486 = vrot.slane %v485, 4
        %v487 = vadd.f32 %v485, %v486
        %v488 = vrot.slane %v487, 2
        %v489 = vadd.f32 %v487, %v488
        %v490 = vrot.slane %v489, 1
        %v491 = vadd.f32 %v489, %v490
        %v492 = vadd.f32 %v271, %v287
        %v493 = vadd.f32 %v492, %v303
        %v494 = vadd.f32 %v493, %v319
        %v495 = vadd.f32 %v494, %v335
        %v496 = vadd.f32 %v495, %v351
        %v497 = vsel %vm379, %v367, 0.0
        %v498 = vadd.f32 %v496, %v497
        %v499 = vrot.slane %v498, 4
        %v500 = vadd.f32 %v498, %v499
        %v501 = vrot.slane %v500, 2
        %v502 = vadd.f32 %v500, %v501
        %v503 = vrot.slane %v502, 1
        %v504 = vadd.f32 %v502, %v503
        %v505 = vadd.f32 %v272, %v288
        %v506 = vadd.f32 %v505, %v304
        %v507 = vadd.f32 %v506, %v320
        %v508 = vadd.f32 %v507, %v336
        %v509 = vadd.f32 %v508, %v352
        %v510 = vsel %vm379, %v368, 0.0
        %v511 = vadd.f32 %v509, %v510
        %v512 = vrot.slane %v511, 4
        %v513 = vadd.f32 %v511, %v512
        %v514 = vrot.slane %v513, 2
        %v515 = vadd.f32 %v513, %v514
        %v516 = vrot.slane %v515, 1
        %v517 = vadd.f32 %v515, %v516
        %v518 = vadd.f32 %v273, %v289
        %v519 = vadd.f32 %v518, %v305
        %v520 = vadd.f32 %v519, %v321
        %v521 = vadd.f32 %v520, %v337
        %v522 = vadd.f32 %v521, %v353
        %v523 = vsel %vm379, %v369, 0.0
        %v524 = vadd.f32 %v522, %v523
        %v525 = vrot.slane %v524, 4
        %v526 = vadd.f32 %v524, %v525
        %v527 = vrot.slane %v526, 2
        %v528 = vadd.f32 %v526, %v527
        %v529 = vrot.slane %v528, 1
        %v530 = vadd.f32 %v528, %v529
        %v531 = vadd.f32 %v274, %v290
        %v532 = vadd.f32 %v531, %v306
        %v533 = vadd.f32 %v532, %v322
        %v534 = vadd.f32 %v533, %v338
        %v535 = vadd.f32 %v534, %v354
        %v536 = vsel %vm379, %v370, 0.0
        %v537 = vadd.f32 %v535, %v536
        %v538 = vrot.slane %v537, 4
        %v539 = vadd.f32 %v537, %v538
        %v540 = vrot.slane %v539, 2
        %v541 = vadd.f32 %v539, %v540
        %v542 = vrot.slane %v541, 1
        %v543 = vadd.f32 %v541, %v542
        %v544 = vadd.f32 %v275, %v291
        %v545 = vadd.f32 %v544, %v307
        %v546 = vadd.f32 %v545, %v323
        %v547 = vadd.f32 %v546, %v339
        %v548 = vadd.f32 %v547, %v355
        %v549 = vsel %vm379, %v371, 0.0
        %v550 = vadd.f32 %v548, %v549
        %v551 = vrot.slane %v550, 4
        %v552 = vadd.f32 %v550, %v551
        %v553 = vrot.slane %v552, 2
        %v554 = vadd.f32 %v552, %v553
        %v555 = vrot.slane %v554, 1
        %v556 = vadd.f32 %v554, %v555
        %v557 = vadd.f32 %v276, %v292
        %v558 = vadd.f32 %v557, %v308
        %v559 = vadd.f32 %v558, %v324
        %v560 = vadd.f32 %v559, %v340
        %v561 = vadd.f32 %v560, %v356
        %v562 = vsel %vm379, %v372, 0.0
        %v563 = vadd.f32 %v561, %v562
        %v564 = vrot.slane %v563, 4
        %v565 = vadd.f32 %v563, %v564
        %v566 = vrot.slane %v565, 2
        %v567 = vadd.f32 %v565, %v566
        %v568 = vrot.slane %v567, 1
        %v569 = vadd.f32 %v567, %v568
        %v570 = vadd.f32 %v277, %v293
        %v571 = vadd.f32 %v570, %v309
        %v572 = vadd.f32 %v571, %v325
        %v573 = vadd.f32 %v572, %v341
        %v574 = vadd.f32 %v573, %v357
        %v575 = vsel %vm379, %v373, 0.0
        %v576 = vadd.f32 %v574, %v575
        %v577 = vrot.slane %v576, 4
        %v578 = vadd.f32 %v576, %v577
        %v579 = vrot.slane %v578, 2
        %v580 = vadd.f32 %v578, %v579
        %v581 = vrot.slane %v580, 1
        %v582 = vadd.f32 %v580, %v581
        %v583 = vmul.f32 %v387, 0.020408163
        %v584 = vmul.f32 %v400, 0.020408163
        %v585 = vmul.f32 %v413, 0.020408163
        %v586 = vmul.f32 %v426, 0.020408163
        %v587 = vmul.f32 %v439, 0.020408163
        %v588 = vmul.f32 %v452, 0.020408163
        %v589 = vmul.f32 %v465, 0.020408163
        %v590 = vmul.f32 %v478, 0.020408163
        %v591 = vmul.f32 %v491, 0.020408163
        %v592 = vmul.f32 %v504, 0.020408163
        %v593 = vmul.f32 %v517, 0.020408163
        %v594 = vmul.f32 %v530, 0.020408163
        %v595 = vmul.f32 %v543, 0.020408163
        %v596 = vmul.f32 %v556, 0.020408163
        %v597 = vmul.f32 %v569, 0.020408163
        %v598 = vmul.f32 %v582, 0.020408163
        %v599 = vpack.c.bf16 %v583, %v583
        %v600 = vpack.c.bf16 %v584, %v584
        %v601 = vpack.c.bf16 %v585, %v585
        %v602 = vpack.c.bf16 %v586, %v586
        %v603 = vpack.c.bf16 %v587, %v587
        %v604 = vpack.c.bf16 %v588, %v588
        %v605 = vpack.c.bf16 %v589, %v589
        %v606 = vpack.c.bf16 %v590, %v590
        %v607 = vpack.c.bf16 %v591, %v591
        %v608 = vpack.c.bf16 %v592, %v592
        %v609 = vpack.c.bf16 %v593, %v593
        %v610 = vpack.c.bf16 %v594, %v594
        %v611 = vpack.c.bf16 %v595, %v595
        %v612 = vpack.c.bf16 %v596, %v596
        %v613 = vpack.c.bf16 %v597, %v597
        %v614 = vpack.c.bf16 %v598, %v598
        %v615 = vld [vmem:[#allocation2] sm:$0xff]
        %v616 = vld [vmem:[#allocation2 + $0x8] sm:$0xff]
        %v617 = vld [vmem:[#allocation2 + $0x10] sm:$0xff]
        %v618 = vld [vmem:[#allocation2 + $0x18] sm:$0xff]
        %v619 = vld [vmem:[#allocation2 + $0x20] sm:$0xff]
        %v620 = vld [vmem:[#allocation2 + $0x28] sm:$0xff]
        %v621 = vld [vmem:[#allocation2 + $0x30] sm:$0xff]
        %v622 = vld [vmem:[#allocation2 + $0x38] sm:$0xff]
        %v623 = vld [vmem:[#allocation2 + $0x40] sm:$0xff]
        %v624 = vld [vmem:[#allocation2 + $0x48] sm:$0xff]
        %v625 = vld [vmem:[#allocation2 + $0x50] sm:$0xff]
        %v626 = vld [vmem:[#allocation2 + $0x58] sm:$0xff]
        %v627 = vld [vmem:[#allocation2 + $0x60] sm:$0xff]
        %v628 = vld [vmem:[#allocation2 + $0x68] sm:$0xff]
        %v629 = vld [vmem:[#allocation2 + $0x70] sm:$0xff]
        %v630 = vld [vmem:[#allocation2 + $0x78] sm:$0xff]
        %v631 = vld [vmem:[#allocation2 + $0x80] sm:$0xff]
        %v632 = vld [vmem:[#allocation2 + $0x88] sm:$0xff]
        %v633 = vld [vmem:[#allocation2 + $0x90] sm:$0xff]
        %v634 = vld [vmem:[#allocation2 + $0x98] sm:$0xff]
        %v635 = vld [vmem:[#allocation2 + $0xa0] sm:$0xff]
        %v636 = vld [vmem:[#allocation2 + $0xa8] sm:$0xff]
        %v637 = vld [vmem:[#allocation2 + $0xb0] sm:$0xff]
        %v638 = vld [vmem:[#allocation2 + $0xb8] sm:$0xff]
        %v639 = vld [vmem:[#allocation2 + $0xc0] sm:$0xff]
        %v640 = vld [vmem:[#allocation2 + $0xc8] sm:$0xff]
        %v641 = vld [vmem:[#allocation2 + $0xd0] sm:$0xff]
        %v642 = vld [vmem:[#allocation2 + $0xd8] sm:$0xff]
        %v643 = vld [vmem:[#allocation2 + $0xe0] sm:$0xff]
        %v644 = vld [vmem:[#allocation2 + $0xe8] sm:$0xff]
        %v645 = vld [vmem:[#allocation2 + $0xf0] sm:$0xff]
        %v646 = vld [vmem:[#allocation2 + $0xf8] sm:$0xff]
        %v647 = vld [vmem:[#allocation2 + $0x100] sm:$0xff]
        %v648 = vld [vmem:[#allocation2 + $0x108] sm:$0xff]
        %v649 = vld [vmem:[#allocation2 + $0x110] sm:$0xff]
        %v650 = vld [vmem:[#allocation2 + $0x118] sm:$0xff]
        %v651 = vld [vmem:[#allocation2 + $0x120] sm:$0xff]
        %v652 = vld [vmem:[#allocation2 + $0x128] sm:$0xff]
        %v653 = vld [vmem:[#allocation2 + $0x130] sm:$0xff]
        %v654 = vld [vmem:[#allocation2 + $0x138] sm:$0xff]
        %v655 = vld [vmem:[#allocation2 + $0x140] sm:$0xff]
        %v656 = vld [vmem:[#allocation2 + $0x148] sm:$0xff]
        %v657 = vld [vmem:[#allocation2 + $0x150] sm:$0xff]
        %v658 = vld [vmem:[#allocation2 + $0x158] sm:$0xff]
        %v659 = vld [vmem:[#allocation2 + $0x160] sm:$0xff]
        %v660 = vld [vmem:[#allocation2 + $0x168] sm:$0xff]
        %v661 = vld [vmem:[#allocation2 + $0x170] sm:$0xff]
        %v662 = vld [vmem:[#allocation2 + $0x178] sm:$0xff]
        %v663 = vld [vmem:[#allocation2 + $0x180] sm:$0xff]
        %v664 = vld [vmem:[#allocation2 + $0x188] sm:$0xff]
        %v665 = vld [vmem:[#allocation2 + $0x190] sm:$0xff]
        %v666 = vld [vmem:[#allocation2 + $0x198] sm:$0xff]
        %v667 = vld [vmem:[#allocation2 + $0x1a0] sm:$0xff]
        %v668 = vld [vmem:[#allocation2 + $0x1a8] sm:$0xff]
        %v669 = vld [vmem:[#allocation2 + $0x1b0] sm:$0xff]
        %v670 = vld [vmem:[#allocation2 + $0x1b8] sm:$0xff]
        %v671 = vld [vmem:[#allocation2 + $0x1c0] sm:$0xff]
        %v672 = vld [vmem:[#allocation2 + $0x1c8] sm:$0xff]
        %v673 = vld [vmem:[#allocation2 + $0x1d0] sm:$0xff]
        %v674 = vld [vmem:[#allocation2 + $0x1d8] sm:$0xff]
        %v675 = vld [vmem:[#allocation2 + $0x1e0] sm:$0xff]
        %v676 = vld [vmem:[#allocation2 + $0x1e8] sm:$0xff]
        %v677 = vld [vmem:[#allocation2 + $0x1f0] sm:$0xff]
        %v678 = vld [vmem:[#allocation2 + $0x1f8] sm:$0xff]
        %v679 = vld [vmem:[#allocation2 + $0x200] sm:$0xff]
        %v680 = vld [vmem:[#allocation2 + $0x208] sm:$0xff]
        %v681 = vld [vmem:[#allocation2 + $0x210] sm:$0xff]
        %v682 = vld [vmem:[#allocation2 + $0x218] sm:$0xff]
        %v683 = vld [vmem:[#allocation2 + $0x220] sm:$0xff]
        %v684 = vld [vmem:[#allocation2 + $0x228] sm:$0xff]
        %v685 = vld [vmem:[#allocation2 + $0x230] sm:$0xff]
        %v686 = vld [vmem:[#allocation2 + $0x238] sm:$0xff]
        %v687 = vld [vmem:[#allocation2 + $0x240] sm:$0xff]
        %v688 = vld [vmem:[#allocation2 + $0x248] sm:$0xff]
        %v689 = vld [vmem:[#allocation2 + $0x250] sm:$0xff]
        %v690 = vld [vmem:[#allocation2 + $0x258] sm:$0xff]
        %v691 = vld [vmem:[#allocation2 + $0x260] sm:$0xff]
        %v692 = vld [vmem:[#allocation2 + $0x268] sm:$0xff]
        %v693 = vld [vmem:[#allocation2 + $0x270] sm:$0xff]
        %v694 = vld [vmem:[#allocation2 + $0x278] sm:$0xff]
        %v695 = vld [vmem:[#allocation2 + $0x280] sm:$0xff]
        %v696 = vld [vmem:[#allocation2 + $0x288] sm:$0xff]
        %v697 = vld [vmem:[#allocation2 + $0x290] sm:$0xff]
        %v698 = vld [vmem:[#allocation2 + $0x298] sm:$0xff]
        %v699 = vld [vmem:[#allocation2 + $0x2a0] sm:$0xff]
        %v700 = vld [vmem:[#allocation2 + $0x2a8] sm:$0xff]
        %v701 = vld [vmem:[#allocation2 + $0x2b0] sm:$0xff]
        %v702 = vld [vmem:[#allocation2 + $0x2b8] sm:$0xff]
        %v703 = vld [vmem:[#allocation2 + $0x2c0] sm:$0xff]
        %v704 = vld [vmem:[#allocation2 + $0x2c8] sm:$0xff]
        %v705 = vld [vmem:[#allocation2 + $0x2d0] sm:$0xff]
        %v706 = vld [vmem:[#allocation2 + $0x2d8] sm:$0xff]
        %v707 = vld [vmem:[#allocation2 + $0x2e0] sm:$0xff]
        %v708 = vld [vmem:[#allocation2 + $0x2e8] sm:$0xff]
        %v709 = vld [vmem:[#allocation2 + $0x2f0] sm:$0xff]
        %v710 = vld [vmem:[#allocation2 + $0x2f8] sm:$0xff]
        %v711 = vld [vmem:[#allocation2 + $0x300] sm:$0xff]
        %v712 = vld [vmem:[#allocation2 + $0x308] sm:$0xff]
        %v713 = vld [vmem:[#allocation2 + $0x310] sm:$0xff]
        %v714 = vld [vmem:[#allocation2 + $0x318] sm:$0xff]
        %v715 = vld [vmem:[#allocation2 + $0x320] sm:$0xff]
        %v716 = vld [vmem:[#allocation2 + $0x328] sm:$0xff]
        %v717 = vld [vmem:[#allocation2 + $0x330] sm:$0xff]
        %v718 = vld [vmem:[#allocation2 + $0x338] sm:$0xff]
        %v719 = vld [vmem:[#allocation2 + $0x340] sm:$0xff]
        %v720 = vld [vmem:[#allocation2 + $0x348] sm:$0xff]
        %v721 = vld [vmem:[#allocation2 + $0x350] sm:$0xff]
        %v722 = vld [vmem:[#allocation2 + $0x358] sm:$0xff]
        %v723 = vld [vmem:[#allocation2 + $0x360] sm:$0xff]
        %v724 = vld [vmem:[#allocation2 + $0x368] sm:$0xff]
        %v725 = vld [vmem:[#allocation2 + $0x370] sm:$0xff]
        %v726 = vld [vmem:[#allocation2 + $0x378] sm:$0xff]
        %v727 = vld [vmem:[#allocation2 + $0x380] sm:$0xff]
        %v728 = vld [vmem:[#allocation2 + $0x388] sm:$0xff]
        %v729 = vld [vmem:[#allocation2 + $0x390] sm:$0xff]
        %v730 = vld [vmem:[#allocation2 + $0x398] sm:$0xff]
        %v731 = vld [vmem:[#allocation2 + $0x3a0] sm:$0xff]
        %v732 = vld [vmem:[#allocation2 + $0x3a8] sm:$0xff]
        %v733 = vld [vmem:[#allocation2 + $0x3b0] sm:$0xff]
        %v734 = vld [vmem:[#allocation2 + $0x3b8] sm:$0xff]
        %v735 = vld [vmem:[#allocation2 + $0x3c0] sm:$0xff]
        %v736 = vld [vmem:[#allocation2 + $0x3c8] sm:$0xff]
        %v737 = vld [vmem:[#allocation2 + $0x3d0] sm:$0xff]
        %v738 = vld [vmem:[#allocation2 + $0x3d8] sm:$0xff]
        %v739 = vld [vmem:[#allocation2 + $0x3e0] sm:$0xff]
        %v740 = vld [vmem:[#allocation2 + $0x3e8] sm:$0xff]
        %v741 = vld [vmem:[#allocation2 + $0x3f0] sm:$0xff]
        %v742 = vld [vmem:[#allocation2 + $0x3f8] sm:$0xff]
        %v743 = vld [vmem:[#allocation2 + $0x400] sm:$0xff]
        %v744 = vld [vmem:[#allocation2 + $0x408] sm:$0xff]
        %v745 = vld [vmem:[#allocation2 + $0x410] sm:$0xff]
        %v746 = vld [vmem:[#allocation2 + $0x418] sm:$0xff]
        %v747 = vld [vmem:[#allocation2 + $0x420] sm:$0xff]
        %v748 = vld [vmem:[#allocation2 + $0x428] sm:$0xff]
        %v749 = vld [vmem:[#allocation2 + $0x430] sm:$0xff]
        %v750 = vld [vmem:[#allocation2 + $0x438] sm:$0xff]
        %v751 = vld [vmem:[#allocation2 + $0x440] sm:$0xff]
        %v752 = vld [vmem:[#allocation2 + $0x448] sm:$0xff]
        %v753 = vld [vmem:[#allocation2 + $0x450] sm:$0xff]
        %v754 = vld [vmem:[#allocation2 + $0x458] sm:$0xff]
        %v755 = vld [vmem:[#allocation2 + $0x460] sm:$0xff]
        %v756 = vld [vmem:[#allocation2 + $0x468] sm:$0xff]
        %v757 = vld [vmem:[#allocation2 + $0x470] sm:$0xff]
        %v758 = vld [vmem:[#allocation2 + $0x478] sm:$0xff]
        %v759 = vld [vmem:[#allocation2 + $0x480] sm:$0xff]
        %v760 = vld [vmem:[#allocation2 + $0x488] sm:$0xff]
        %v761 = vld [vmem:[#allocation2 + $0x490] sm:$0xff]
        %v762 = vld [vmem:[#allocation2 + $0x498] sm:$0xff]
        %v763 = vld [vmem:[#allocation2 + $0x4a0] sm:$0xff]
        %v764 = vld [vmem:[#allocation2 + $0x4a8] sm:$0xff]
        %v765 = vld [vmem:[#allocation2 + $0x4b0] sm:$0xff]
        %v766 = vld [vmem:[#allocation2 + $0x4b8] sm:$0xff]
        %v767 = vld [vmem:[#allocation2 + $0x4c0] sm:$0xff]
        %v768 = vld [vmem:[#allocation2 + $0x4c8] sm:$0xff]
        %v769 = vld [vmem:[#allocation2 + $0x4d0] sm:$0xff]
        %v770 = vld [vmem:[#allocation2 + $0x4d8] sm:$0xff]
        %v771 = vld [vmem:[#allocation2 + $0x4e0] sm:$0xff]
        %v772 = vld [vmem:[#allocation2 + $0x4e8] sm:$0xff]
        %v773 = vld [vmem:[#allocation2 + $0x4f0] sm:$0xff]
        %v774 = vld [vmem:[#allocation2 + $0x4f8] sm:$0xff]
        %v775 = vld [vmem:[#allocation2 + $0x500] sm:$0xff]
        %v776 = vld [vmem:[#allocation2 + $0x508] sm:$0xff]
        %v777 = vld [vmem:[#allocation2 + $0x510] sm:$0xff]
        %v778 = vld [vmem:[#allocation2 + $0x518] sm:$0xff]
        %v779 = vld [vmem:[#allocation2 + $0x520] sm:$0xff]
        %v780 = vld [vmem:[#allocation2 + $0x528] sm:$0xff]
        %v781 = vld [vmem:[#allocation2 + $0x530] sm:$0xff]
        %v782 = vld [vmem:[#allocation2 + $0x538] sm:$0xff]
        %v783 = vld [vmem:[#allocation2 + $0x540] sm:$0xff]
        %v784 = vld [vmem:[#allocation2 + $0x548] sm:$0xff]
        %v785 = vld [vmem:[#allocation2 + $0x550] sm:$0xff]
        %v786 = vld [vmem:[#allocation2 + $0x558] sm:$0xff]
        %v787 = vld [vmem:[#allocation2 + $0x560] sm:$0xff]
        %v788 = vld [vmem:[#allocation2 + $0x568] sm:$0xff]
        %v789 = vld [vmem:[#allocation2 + $0x570] sm:$0xff]
        %v790 = vld [vmem:[#allocation2 + $0x578] sm:$0xff]
        %v791 = vld [vmem:[#allocation2 + $0x580] sm:$0xff]
        %v792 = vld [vmem:[#allocation2 + $0x588] sm:$0xff]
        %v793 = vld [vmem:[#allocation2 + $0x590] sm:$0xff]
        %v794 = vld [vmem:[#allocation2 + $0x598] sm:$0xff]
        %v795 = vld [vmem:[#allocation2 + $0x5a0] sm:$0xff]
        %v796 = vld [vmem:[#allocation2 + $0x5a8] sm:$0xff]
        %v797 = vld [vmem:[#allocation2 + $0x5b0] sm:$0xff]
        %v798 = vld [vmem:[#allocation2 + $0x5b8] sm:$0xff]
        %v799 = vld [vmem:[#allocation2 + $0x5c0] sm:$0xff]
        %v800 = vld [vmem:[#allocation2 + $0x5c8] sm:$0xff]
        %v801 = vld [vmem:[#allocation2 + $0x5d0] sm:$0xff]
        %v802 = vld [vmem:[#allocation2 + $0x5d8] sm:$0xff]
        %v803 = vld [vmem:[#allocation2 + $0x5e0] sm:$0xff]
        %v804 = vld [vmem:[#allocation2 + $0x5e8] sm:$0xff]
        %v805 = vld [vmem:[#allocation2 + $0x5f0] sm:$0xff]
        %v806 = vld [vmem:[#allocation2 + $0x5f8] sm:$0xff]
        %v807 = vld [vmem:[#allocation2 + $0x600] sm:$0xff]
        %v808 = vld [vmem:[#allocation2 + $0x608] sm:$0xff]
        %v809 = vld [vmem:[#allocation2 + $0x610] sm:$0xff]
        %v810 = vld [vmem:[#allocation2 + $0x618] sm:$0xff]
        %v811 = vld [vmem:[#allocation2 + $0x620] sm:$0xff]
        %v812 = vld [vmem:[#allocation2 + $0x628] sm:$0xff]
        %v813 = vld [vmem:[#allocation2 + $0x630] sm:$0xff]
        %v814 = vld [vmem:[#allocation2 + $0x638] sm:$0xff]
        %v815 = vld [vmem:[#allocation2 + $0x640] sm:$0xff]
        %v816 = vld [vmem:[#allocation2 + $0x648] sm:$0xff]
        %v817 = vld [vmem:[#allocation2 + $0x650] sm:$0xff]
        %v818 = vld [vmem:[#allocation2 + $0x658] sm:$0xff]
        %v819 = vld [vmem:[#allocation2 + $0x660] sm:$0xff]
        %v820 = vld [vmem:[#allocation2 + $0x668] sm:$0xff]
        %v821 = vld [vmem:[#allocation2 + $0x670] sm:$0xff]
        %v822 = vld [vmem:[#allocation2 + $0x678] sm:$0xff]
        %v823 = vld [vmem:[#allocation2 + $0x680] sm:$0xff]
        %v824 = vld [vmem:[#allocation2 + $0x688] sm:$0xff]
        %v825 = vld [vmem:[#allocation2 + $0x690] sm:$0xff]
        %v826 = vld [vmem:[#allocation2 + $0x698] sm:$0xff]
        %v827 = vld [vmem:[#allocation2 + $0x6a0] sm:$0xff]
        %v828 = vld [vmem:[#allocation2 + $0x6a8] sm:$0xff]
        %v829 = vld [vmem:[#allocation2 + $0x6b0] sm:$0xff]
        %v830 = vld [vmem:[#allocation2 + $0x6b8] sm:$0xff]
        %v831 = vld [vmem:[#allocation2 + $0x6c0] sm:$0xff]
        %v832 = vld [vmem:[#allocation2 + $0x6c8] sm:$0xff]
        %v833 = vld [vmem:[#allocation2 + $0x6d0] sm:$0xff]
        %v834 = vld [vmem:[#allocation2 + $0x6d8] sm:$0xff]
        %v835 = vld [vmem:[#allocation2 + $0x6e0] sm:$0xff]
        %v836 = vld [vmem:[#allocation2 + $0x6e8] sm:$0xff]
        %v837 = vld [vmem:[#allocation2 + $0x6f0] sm:$0xff]
        %v838 = vld [vmem:[#allocation2 + $0x6f8] sm:$0xff]
        %v839 = vld [vmem:[#allocation2 + $0x700] sm:$0xff]
        %v840 = vld [vmem:[#allocation2 + $0x708] sm:$0xff]
        %v841 = vld [vmem:[#allocation2 + $0x710] sm:$0xff]
        %v842 = vld [vmem:[#allocation2 + $0x718] sm:$0xff]
        %v843 = vld [vmem:[#allocation2 + $0x720] sm:$0xff]
        %v844 = vld [vmem:[#allocation2 + $0x728] sm:$0xff]
        %v845 = vld [vmem:[#allocation2 + $0x730] sm:$0xff]
        %v846 = vld [vmem:[#allocation2 + $0x738] sm:$0xff]
        %v847 = vld [vmem:[#allocation2 + $0x740] sm:$0xff]
        %v848 = vld [vmem:[#allocation2 + $0x748] sm:$0xff]
        %v849 = vld [vmem:[#allocation2 + $0x750] sm:$0xff]
        %v850 = vld [vmem:[#allocation2 + $0x758] sm:$0xff]
        %v851 = vld [vmem:[#allocation2 + $0x760] sm:$0xff]
        %v852 = vld [vmem:[#allocation2 + $0x768] sm:$0xff]
        %v853 = vld [vmem:[#allocation2 + $0x770] sm:$0xff]
        %v854 = vld [vmem:[#allocation2 + $0x778] sm:$0xff]
        %v855 = vld [vmem:[#allocation2 + $0x780] sm:$0xff]
        %v856 = vld [vmem:[#allocation2 + $0x788] sm:$0xff]
        %v857 = vld [vmem:[#allocation2 + $0x790] sm:$0xff]
        %v858 = vld [vmem:[#allocation2 + $0x798] sm:$0xff]
        %v859 = vld [vmem:[#allocation2 + $0x7a0] sm:$0xff]
        %v860 = vld [vmem:[#allocation2 + $0x7a8] sm:$0xff]
        %v861 = vld [vmem:[#allocation2 + $0x7b0] sm:$0xff]
        %v862 = vld [vmem:[#allocation2 + $0x7b8] sm:$0xff]
        %v863 = vld [vmem:[#allocation2 + $0x7c0] sm:$0xff]
        %v864 = vld [vmem:[#allocation2 + $0x7c8] sm:$0xff]
        %v865 = vld [vmem:[#allocation2 + $0x7d0] sm:$0xff]
        %v866 = vld [vmem:[#allocation2 + $0x7d8] sm:$0xff]
        %v867 = vld [vmem:[#allocation2 + $0x7e0] sm:$0xff]
        %v868 = vld [vmem:[#allocation2 + $0x7e8] sm:$0xff]
        %v869 = vld [vmem:[#allocation2 + $0x7f0] sm:$0xff]
        %v870 = vld [vmem:[#allocation2 + $0x7f8] sm:$0xff]
        %v871 = vld [vmem:[#allocation2 + $0x800] sm:$0xff]
        %v872 = vld [vmem:[#allocation2 + $0x808] sm:$0xff]
        %v873 = vld [vmem:[#allocation2 + $0x810] sm:$0xff]
        %v874 = vld [vmem:[#allocation2 + $0x818] sm:$0xff]
        %v875 = vld [vmem:[#allocation2 + $0x820] sm:$0xff]
        %v876 = vld [vmem:[#allocation2 + $0x828] sm:$0xff]
        %v877 = vld [vmem:[#allocation2 + $0x830] sm:$0xff]
        %v878 = vld [vmem:[#allocation2 + $0x838] sm:$0xff]
        %v879 = vld [vmem:[#allocation2 + $0x840] sm:$0xff]
        %v880 = vld [vmem:[#allocation2 + $0x848] sm:$0xff]
        %v881 = vld [vmem:[#allocation2 + $0x850] sm:$0xff]
        %v882 = vld [vmem:[#allocation2 + $0x858] sm:$0xff]
        %v883 = vld [vmem:[#allocation2 + $0x860] sm:$0xff]
        %v884 = vld [vmem:[#allocation2 + $0x868] sm:$0xff]
        %v885 = vld [vmem:[#allocation2 + $0x870] sm:$0xff]
        %v886 = vld [vmem:[#allocation2 + $0x878] sm:$0xff]
        %v887 = vld [vmem:[#allocation2 + $0x880] sm:$0xff]
        %v888 = vld [vmem:[#allocation2 + $0x888] sm:$0xff]
        %v889 = vld [vmem:[#allocation2 + $0x890] sm:$0xff]
        %v890 = vld [vmem:[#allocation2 + $0x898] sm:$0xff]
        %v891 = vld [vmem:[#allocation2 + $0x8a0] sm:$0xff]
        %v892 = vld [vmem:[#allocation2 + $0x8a8] sm:$0xff]
        %v893 = vld [vmem:[#allocation2 + $0x8b0] sm:$0xff]
        %v894 = vld [vmem:[#allocation2 + $0x8b8] sm:$0xff]
        %v895 = vld [vmem:[#allocation2 + $0x8c0] sm:$0xff]
        %v896 = vld [vmem:[#allocation2 + $0x8c8] sm:$0xff]
        %v897 = vld [vmem:[#allocation2 + $0x8d0] sm:$0xff]
        %v898 = vld [vmem:[#allocation2 + $0x8d8] sm:$0xff]
        %v899 = vld [vmem:[#allocation2 + $0x8e0] sm:$0xff]
        %v900 = vld [vmem:[#allocation2 + $0x8e8] sm:$0xff]
        %v901 = vld [vmem:[#allocation2 + $0x8f0] sm:$0xff]
        %v902 = vld [vmem:[#allocation2 + $0x8f8] sm:$0xff]
        %v903 = vld [vmem:[#allocation2 + $0x900] sm:$0xff]
        %v904 = vld [vmem:[#allocation2 + $0x908] sm:$0xff]
        %v905 = vld [vmem:[#allocation2 + $0x910] sm:$0xff]
        %v906 = vld [vmem:[#allocation2 + $0x918] sm:$0xff]
        %v907 = vld [vmem:[#allocation2 + $0x920] sm:$0xff]
        %v908 = vld [vmem:[#allocation2 + $0x928] sm:$0xff]
        %v909 = vld [vmem:[#allocation2 + $0x930] sm:$0xff]
        %v910 = vld [vmem:[#allocation2 + $0x938] sm:$0xff]
        %v911 = vld [vmem:[#allocation2 + $0x940] sm:$0xff]
        %v912 = vld [vmem:[#allocation2 + $0x948] sm:$0xff]
        %v913 = vld [vmem:[#allocation2 + $0x950] sm:$0xff]
        %v914 = vld [vmem:[#allocation2 + $0x958] sm:$0xff]
        %v915 = vld [vmem:[#allocation2 + $0x960] sm:$0xff]
        %v916 = vld [vmem:[#allocation2 + $0x968] sm:$0xff]
        %v917 = vld [vmem:[#allocation2 + $0x970] sm:$0xff]
        %v918 = vld [vmem:[#allocation2 + $0x978] sm:$0xff]
        %v919 = vld [vmem:[#allocation2 + $0x980] sm:$0xff]
        %v920 = vld [vmem:[#allocation2 + $0x988] sm:$0xff]
        %v921 = vld [vmem:[#allocation2 + $0x990] sm:$0xff]
        %v922 = vld [vmem:[#allocation2 + $0x998] sm:$0xff]
        %v923 = vld [vmem:[#allocation2 + $0x9a0] sm:$0xff]
        %v924 = vld [vmem:[#allocation2 + $0x9a8] sm:$0xff]
        %v925 = vld [vmem:[#allocation2 + $0x9b0] sm:$0xff]
        %v926 = vld [vmem:[#allocation2 + $0x9b8] sm:$0xff]
        %v927 = vld [vmem:[#allocation2 + $0x9c0] sm:$0xff]
        %v928 = vld [vmem:[#allocation2 + $0x9c8] sm:$0xff]
        %v929 = vld [vmem:[#allocation2 + $0x9d0] sm:$0xff]
        %v930 = vld [vmem:[#allocation2 + $0x9d8] sm:$0xff]
        %v931 = vld [vmem:[#allocation2 + $0x9e0] sm:$0xff]
        %v932 = vld [vmem:[#allocation2 + $0x9e8] sm:$0xff]
        %v933 = vld [vmem:[#allocation2 + $0x9f0] sm:$0xff]
        %v934 = vld [vmem:[#allocation2 + $0x9f8] sm:$0xff]
        %v935 = vld [vmem:[#allocation2 + $0xa00] sm:$0xff]
        %v936 = vld [vmem:[#allocation2 + $0xa08] sm:$0xff]
        %v937 = vld [vmem:[#allocation2 + $0xa10] sm:$0xff]
        %v938 = vld [vmem:[#allocation2 + $0xa18] sm:$0xff]
        %v939 = vld [vmem:[#allocation2 + $0xa20] sm:$0xff]
        %v940 = vld [vmem:[#allocation2 + $0xa28] sm:$0xff]
        %v941 = vld [vmem:[#allocation2 + $0xa30] sm:$0xff]
        %v942 = vld [vmem:[#allocation2 + $0xa38] sm:$0xff]
        %v943 = vld [vmem:[#allocation2 + $0xa40] sm:$0xff]
        %v944 = vld [vmem:[#allocation2 + $0xa48] sm:$0xff]
        %v945 = vld [vmem:[#allocation2 + $0xa50] sm:$0xff]
        %v946 = vld [vmem:[#allocation2 + $0xa58] sm:$0xff]
        %v947 = vld [vmem:[#allocation2 + $0xa60] sm:$0xff]
        %v948 = vld [vmem:[#allocation2 + $0xa68] sm:$0xff]
        %v949 = vld [vmem:[#allocation2 + $0xa70] sm:$0xff]
        %v950 = vld [vmem:[#allocation2 + $0xa78] sm:$0xff]
        %v951 = vld [vmem:[#allocation2 + $0xa80] sm:$0xff]
        %v952 = vld [vmem:[#allocation2 + $0xa88] sm:$0xff]
        %v953 = vld [vmem:[#allocation2 + $0xa90] sm:$0xff]
        %v954 = vld [vmem:[#allocation2 + $0xa98] sm:$0xff]
        %v955 = vld [vmem:[#allocation2 + $0xaa0] sm:$0xff]
        %v956 = vld [vmem:[#allocation2 + $0xaa8] sm:$0xff]
        %v957 = vld [vmem:[#allocation2 + $0xab0] sm:$0xff]
        %v958 = vld [vmem:[#allocation2 + $0xab8] sm:$0xff]
        %v959 = vld [vmem:[#allocation2 + $0xac0] sm:$0xff]
        %v960 = vld [vmem:[#allocation2 + $0xac8] sm:$0xff]
        %v961 = vld [vmem:[#allocation2 + $0xad0] sm:$0xff]
        %v962 = vld [vmem:[#allocation2 + $0xad8] sm:$0xff]
        %v963 = vld [vmem:[#allocation2 + $0xae0] sm:$0xff]
        %v964 = vld [vmem:[#allocation2 + $0xae8] sm:$0xff]
        %v965 = vld [vmem:[#allocation2 + $0xaf0] sm:$0xff]
        %v966 = vld [vmem:[#allocation2 + $0xaf8] sm:$0xff]
        %v967 = vld [vmem:[#allocation2 + $0xb00] sm:$0xff]
        %v968 = vld [vmem:[#allocation2 + $0xb08] sm:$0xff]
        %v969 = vld [vmem:[#allocation2 + $0xb10] sm:$0xff]
        %v970 = vld [vmem:[#allocation2 + $0xb18] sm:$0xff]
        %v971 = vld [vmem:[#allocation2 + $0xb20] sm:$0xff]
        %v972 = vld [vmem:[#allocation2 + $0xb28] sm:$0xff]
        %v973 = vld [vmem:[#allocation2 + $0xb30] sm:$0xff]
        %v974 = vld [vmem:[#allocation2 + $0xb38] sm:$0xff]
        %v975 = vld [vmem:[#allocation2 + $0xb40] sm:$0xff]
        %v976 = vld [vmem:[#allocation2 + $0xb48] sm:$0xff]
        %v977 = vld [vmem:[#allocation2 + $0xb50] sm:$0xff]
        %v978 = vld [vmem:[#allocation2 + $0xb58] sm:$0xff]
        %v979 = vld [vmem:[#allocation2 + $0xb60] sm:$0xff]
        %v980 = vld [vmem:[#allocation2 + $0xb68] sm:$0xff]
        %v981 = vld [vmem:[#allocation2 + $0xb70] sm:$0xff]
        %v982 = vld [vmem:[#allocation2 + $0xb78] sm:$0xff]
        %v983 = vld [vmem:[#allocation2 + $0xb80] sm:$0xff]
        %v984 = vld [vmem:[#allocation2 + $0xb88] sm:$0xff]
        %v985 = vld [vmem:[#allocation2 + $0xb90] sm:$0xff]
        %v986 = vld [vmem:[#allocation2 + $0xb98] sm:$0xff]
        %v987 = vld [vmem:[#allocation2 + $0xba0] sm:$0xff]
        %v988 = vld [vmem:[#allocation2 + $0xba8] sm:$0xff]
        %v989 = vld [vmem:[#allocation2 + $0xbb0] sm:$0xff]
        %v990 = vld [vmem:[#allocation2 + $0xbb8] sm:$0xff]
        %v991 = vld [vmem:[#allocation2 + $0xbc0] sm:$0xff]
        %v992 = vld [vmem:[#allocation2 + $0xbc8] sm:$0xff]
        %v993 = vld [vmem:[#allocation2 + $0xbd0] sm:$0xff]
        %v994 = vld [vmem:[#allocation2 + $0xbd8] sm:$0xff]
        %v995 = vld [vmem:[#allocation2 + $0xbe0] sm:$0xff]
        %v996 = vld [vmem:[#allocation2 + $0xbe8] sm:$0xff]
        %v997 = vld [vmem:[#allocation2 + $0xbf0] sm:$0xff]
        %v998 = vld [vmem:[#allocation2 + $0xbf8] sm:$0xff]
        %v999 = vld [vmem:[#allocation2 + $0xc00] sm:$0xff]
        %v1000 = vld [vmem:[#allocation2 + $0xc08] sm:$0xff]
        %v1001 = vld [vmem:[#allocation2 + $0xc10] sm:$0xff]
        %v1002 = vld [vmem:[#allocation2 + $0xc18] sm:$0xff]
        %v1003 = vld [vmem:[#allocation2 + $0xc20] sm:$0xff]
        %v1004 = vld [vmem:[#allocation2 + $0xc28] sm:$0xff]
        %v1005 = vld [vmem:[#allocation2 + $0xc30] sm:$0xff]
        %v1006 = vld [vmem:[#allocation2 + $0xc38] sm:$0xff]
        %v1007 = vld [vmem:[#allocation2 + $0xc40] sm:$0xff]
        %v1008 = vld [vmem:[#allocation2 + $0xc48] sm:$0xff]
        %v1009 = vld [vmem:[#allocation2 + $0xc50] sm:$0xff]
        %v1010 = vld [vmem:[#allocation2 + $0xc58] sm:$0xff]
        %v1011 = vld [vmem:[#allocation2 + $0xc60] sm:$0xff]
        %v1012 = vld [vmem:[#allocation2 + $0xc68] sm:$0xff]
        %v1013 = vld [vmem:[#allocation2 + $0xc70] sm:$0xff]
        %v1014 = vld [vmem:[#allocation2 + $0xc78] sm:$0xff]
        %v1015 = vld [vmem:[#allocation2 + $0xc80] sm:$0xff]
        %v1016 = vld [vmem:[#allocation2 + $0xc88] sm:$0xff]
        %v1017 = vld [vmem:[#allocation2 + $0xc90] sm:$0xff]
        %v1018 = vld [vmem:[#allocation2 + $0xc98] sm:$0xff]
        %v1019 = vld [vmem:[#allocation2 + $0xca0] sm:$0xff]
        %v1020 = vld [vmem:[#allocation2 + $0xca8] sm:$0xff]
        %v1021 = vld [vmem:[#allocation2 + $0xcb0] sm:$0xff]
        %v1022 = vld [vmem:[#allocation2 + $0xcb8] sm:$0xff]
        %v1023 = vld [vmem:[#allocation2 + $0xcc0] sm:$0xff]
        %v1024 = vld [vmem:[#allocation2 + $0xcc8] sm:$0xff]
        %v1025 = vld [vmem:[#allocation2 + $0xcd0] sm:$0xff]
        %v1026 = vld [vmem:[#allocation2 + $0xcd8] sm:$0xff]
        %v1027 = vld [vmem:[#allocation2 + $0xce0] sm:$0xff]
        %v1028 = vld [vmem:[#allocation2 + $0xce8] sm:$0xff]
        %v1029 = vld [vmem:[#allocation2 + $0xcf0] sm:$0xff]
        %v1030 = vld [vmem:[#allocation2 + $0xcf8] sm:$0xff]
        %v1031 = vld [vmem:[#allocation2 + $0xd00] sm:$0xff]
        %v1032 = vld [vmem:[#allocation2 + $0xd08] sm:$0xff]
        %v1033 = vld [vmem:[#allocation2 + $0xd10] sm:$0xff]
        %v1034 = vld [vmem:[#allocation2 + $0xd18] sm:$0xff]
        %v1035 = vld [vmem:[#allocation2 + $0xd20] sm:$0xff]
        %v1036 = vld [vmem:[#allocation2 + $0xd28] sm:$0xff]
        %v1037 = vld [vmem:[#allocation2 + $0xd30] sm:$0xff]
        %v1038 = vld [vmem:[#allocation2 + $0xd38] sm:$0xff]
        %v1039 = vld [vmem:[#allocation2 + $0xd40] sm:$0xff]
        %v1040 = vld [vmem:[#allocation2 + $0xd48] sm:$0xff]
        %v1041 = vld [vmem:[#allocation2 + $0xd50] sm:$0xff]
        %v1042 = vld [vmem:[#allocation2 + $0xd58] sm:$0xff]
        %v1043 = vld [vmem:[#allocation2 + $0xd60] sm:$0xff]
        %v1044 = vld [vmem:[#allocation2 + $0xd68] sm:$0xff]
        %v1045 = vld [vmem:[#allocation2 + $0xd70] sm:$0xff]
        %v1046 = vld [vmem:[#allocation2 + $0xd78] sm:$0xff]
        %v1047 = vld [vmem:[#allocation2 + $0xd80] sm:$0xff]
        %v1048 = vld [vmem:[#allocation2 + $0xd88] sm:$0xff]
        %v1049 = vld [vmem:[#allocation2 + $0xd90] sm:$0xff]
        %v1050 = vld [vmem:[#allocation2 + $0xd98] sm:$0xff]
        %v1051 = vld [vmem:[#allocation2 + $0xda0] sm:$0xff]
        %v1052 = vld [vmem:[#allocation2 + $0xda8] sm:$0xff]
        %v1053 = vld [vmem:[#allocation2 + $0xdb0] sm:$0xff]
        %v1054 = vld [vmem:[#allocation2 + $0xdb8] sm:$0xff]
        %v1055 = vld [vmem:[#allocation2 + $0xdc0] sm:$0xff]
        %v1056 = vld [vmem:[#allocation2 + $0xdc8] sm:$0xff]
        %v1057 = vld [vmem:[#allocation2 + $0xdd0] sm:$0xff]
        %v1058 = vld [vmem:[#allocation2 + $0xdd8] sm:$0xff]
        %v1059 = vld [vmem:[#allocation2 + $0xde0] sm:$0xff]
        %v1060 = vld [vmem:[#allocation2 + $0xde8] sm:$0xff]
        %v1061 = vld [vmem:[#allocation2 + $0xdf0] sm:$0xff]
        %v1062 = vld [vmem:[#allocation2 + $0xdf8] sm:$0xff]
        %v1063 = vld [vmem:[#allocation2 + $0xe00] sm:$0xff]
        %v1064 = vld [vmem:[#allocation2 + $0xe08] sm:$0xff]
        %v1065 = vld [vmem:[#allocation2 + $0xe10] sm:$0xff]
        %v1066 = vld [vmem:[#allocation2 + $0xe18] sm:$0xff]
        %v1067 = vld [vmem:[#allocation2 + $0xe20] sm:$0xff]
        %v1068 = vld [vmem:[#allocation2 + $0xe28] sm:$0xff]
        %v1069 = vld [vmem:[#allocation2 + $0xe30] sm:$0xff]
        %v1070 = vld [vmem:[#allocation2 + $0xe38] sm:$0xff]
        %v1071 = vld [vmem:[#allocation2 + $0xe40] sm:$0xff]
        %v1072 = vld [vmem:[#allocation2 + $0xe48] sm:$0xff]
        %v1073 = vld [vmem:[#allocation2 + $0xe50] sm:$0xff]
        %v1074 = vld [vmem:[#allocation2 + $0xe58] sm:$0xff]
        %v1075 = vld [vmem:[#allocation2 + $0xe60] sm:$0xff]
        %v1076 = vld [vmem:[#allocation2 + $0xe68] sm:$0xff]
        %v1077 = vld [vmem:[#allocation2 + $0xe70] sm:$0xff]
        %v1078 = vld [vmem:[#allocation2 + $0xe78] sm:$0xff]
        %v1079 = vld [vmem:[#allocation2 + $0xe80] sm:$0xff]
        %v1080 = vld [vmem:[#allocation2 + $0xe88] sm:$0xff]
        %v1081 = vld [vmem:[#allocation2 + $0xe90] sm:$0xff]
        %v1082 = vld [vmem:[#allocation2 + $0xe98] sm:$0xff]
        %v1083 = vld [vmem:[#allocation2 + $0xea0] sm:$0xff]
        %v1084 = vld [vmem:[#allocation2 + $0xea8] sm:$0xff]
        %v1085 = vld [vmem:[#allocation2 + $0xeb0] sm:$0xff]
        %v1086 = vld [vmem:[#allocation2 + $0xeb8] sm:$0xff]
        %v1087 = vld [vmem:[#allocation2 + $0xec0] sm:$0xff]
        %v1088 = vld [vmem:[#allocation2 + $0xec8] sm:$0xff]
        %v1089 = vld [vmem:[#allocation2 + $0xed0] sm:$0xff]
        %v1090 = vld [vmem:[#allocation2 + $0xed8] sm:$0xff]
        %v1091 = vld [vmem:[#allocation2 + $0xee0] sm:$0xff]
        %v1092 = vld [vmem:[#allocation2 + $0xee8] sm:$0xff]
        %v1093 = vld [vmem:[#allocation2 + $0xef0] sm:$0xff]
        %v1094 = vld [vmem:[#allocation2 + $0xef8] sm:$0xff]
        %v1095 = vld [vmem:[#allocation2 + $0xf00] sm:$0xff]
        %v1096 = vld [vmem:[#allocation2 + $0xf08] sm:$0xff]
        %v1097 = vld [vmem:[#allocation2 + $0xf10] sm:$0xff]
        %v1098 = vld [vmem:[#allocation2 + $0xf18] sm:$0xff]
        %v1099 = vld [vmem:[#allocation2 + $0xf20] sm:$0xff]
        %v1100 = vld [vmem:[#allocation2 + $0xf28] sm:$0xff]
        %v1101 = vld [vmem:[#allocation2 + $0xf30] sm:$0xff]
        %v1102 = vld [vmem:[#allocation2 + $0xf38] sm:$0xff]
        %v1103 = vld [vmem:[#allocation2 + $0xf40] sm:$0xff]
        %v1104 = vld [vmem:[#allocation2 + $0xf48] sm:$0xff]
        %v1105 = vld [vmem:[#allocation2 + $0xf50] sm:$0xff]
        %v1106 = vld [vmem:[#allocation2 + $0xf58] sm:$0xff]
        %v1107 = vld [vmem:[#allocation2 + $0xf60] sm:$0xff]
        %v1108 = vld [vmem:[#allocation2 + $0xf68] sm:$0xff]
        %v1109 = vld [vmem:[#allocation2 + $0xf70] sm:$0xff]
        %v1110 = vld [vmem:[#allocation2 + $0xf78] sm:$0xff]
        %v1111 = vld [vmem:[#allocation2 + $0xf80] sm:$0xff]
        %v1112 = vld [vmem:[#allocation2 + $0xf88] sm:$0xff]
        %v1113 = vld [vmem:[#allocation2 + $0xf90] sm:$0xff]
        %v1114 = vld [vmem:[#allocation2 + $0xf98] sm:$0xff]
        %v1115 = vld [vmem:[#allocation2 + $0xfa0] sm:$0xff]
        %v1116 = vld [vmem:[#allocation2 + $0xfa8] sm:$0xff]
        %v1117 = vld [vmem:[#allocation2 + $0xfb0] sm:$0xff]
        %v1118 = vld [vmem:[#allocation2 + $0xfb8] sm:$0xff]
        %v1119 = vld [vmem:[#allocation2 + $0xfc0] sm:$0xff]
        %v1120 = vld [vmem:[#allocation2 + $0xfc8] sm:$0xff]
        %v1121 = vld [vmem:[#allocation2 + $0xfd0] sm:$0xff]
        %v1122 = vld [vmem:[#allocation2 + $0xfd8] sm:$0xff]
        %v1123 = vld [vmem:[#allocation2 + $0xfe0] sm:$0xff]
        %v1124 = vld [vmem:[#allocation2 + $0xfe8] sm:$0xff]
        %v1125 = vld [vmem:[#allocation2 + $0xff0] sm:$0xff]
        %v1126 = vld [vmem:[#allocation2 + $0xff8] sm:$0xff]
        %v1127 = vld [vmem:[#allocation5] sm:$0xf]
        %v1640 = vunpack.c.l.b16 %v615
        %v1641 = vunpack.c.h.b16 %v615
        %v1642 = vunpack.c.l.b16 %v616
        %v1643 = vunpack.c.h.b16 %v616
        %v1644 = vunpack.c.l.b16 %v617
        %v1645 = vunpack.c.h.b16 %v617
        %v1646 = vunpack.c.l.b16 %v618
        %v1647 = vunpack.c.h.b16 %v618
        %v1648 = vunpack.c.l.b16 %v619
        %v1649 = vunpack.c.h.b16 %v619
        %v1650 = vunpack.c.l.b16 %v620
        %v1651 = vunpack.c.h.b16 %v620
        %v1652 = vunpack.c.l.b16 %v621
        %v1653 = vunpack.c.h.b16 %v621
        %v1654 = vunpack.c.l.b16 %v622
        %v1655 = vunpack.c.h.b16 %v622
        %v1656 = vunpack.c.l.b16 %v623
        %v1657 = vunpack.c.h.b16 %v623
        %v1658 = vunpack.c.l.b16 %v624
        %v1659 = vunpack.c.h.b16 %v624
        %v1660 = vunpack.c.l.b16 %v625
        %v1661 = vunpack.c.h.b16 %v625
        %v1662 = vunpack.c.l.b16 %v626
        %v1663 = vunpack.c.h.b16 %v626
        %v1664 = vunpack.c.l.b16 %v627
        %v1665 = vunpack.c.h.b16 %v627
        %v1666 = vunpack.c.l.b16 %v628
        %v1667 = vunpack.c.h.b16 %v628
        %v1668 = vunpack.c.l.b16 %v629
        %v1669 = vunpack.c.h.b16 %v629
        %v1670 = vunpack.c.l.b16 %v630
        %v1671 = vunpack.c.h.b16 %v630
        %v1672 = vunpack.c.l.b16 %v631
        %v1673 = vunpack.c.h.b16 %v631
        %v1674 = vunpack.c.l.b16 %v632
        %v1675 = vunpack.c.h.b16 %v632
        %v1676 = vunpack.c.l.b16 %v633
        %v1677 = vunpack.c.h.b16 %v633
        %v1678 = vunpack.c.l.b16 %v634
        %v1679 = vunpack.c.h.b16 %v634
        %v1680 = vunpack.c.l.b16 %v635
        %v1681 = vunpack.c.h.b16 %v635
        %v1682 = vunpack.c.l.b16 %v636
        %v1683 = vunpack.c.h.b16 %v636
        %v1684 = vunpack.c.l.b16 %v637
        %v1685 = vunpack.c.h.b16 %v637
        %v1686 = vunpack.c.l.b16 %v638
        %v1687 = vunpack.c.h.b16 %v638
        %v1688 = vunpack.c.l.b16 %v639
        %v1689 = vunpack.c.h.b16 %v639
        %v1690 = vunpack.c.l.b16 %v640
        %v1691 = vunpack.c.h.b16 %v640
        %v1692 = vunpack.c.l.b16 %v641
        %v1693 = vunpack.c.h.b16 %v641
        %v1694 = vunpack.c.l.b16 %v642
        %v1695 = vunpack.c.h.b16 %v642
        %v1696 = vunpack.c.l.b16 %v643
        %v1697 = vunpack.c.h.b16 %v643
        %v1698 = vunpack.c.l.b16 %v644
        %v1699 = vunpack.c.h.b16 %v644
        %v1700 = vunpack.c.l.b16 %v645
        %v1701 = vunpack.c.h.b16 %v645
        %v1702 = vunpack.c.l.b16 %v646
        %v1703 = vunpack.c.h.b16 %v646
        %v1704 = vunpack.c.l.b16 %v647
        %v1705 = vunpack.c.h.b16 %v647
        %v1706 = vunpack.c.l.b16 %v648
        %v1707 = vunpack.c.h.b16 %v648
        %v1708 = vunpack.c.l.b16 %v649
        %v1709 = vunpack.c.h.b16 %v649
        %v1710 = vunpack.c.l.b16 %v650
        %v1711 = vunpack.c.h.b16 %v650
        %v1712 = vunpack.c.l.b16 %v651
        %v1713 = vunpack.c.h.b16 %v651
        %v1714 = vunpack.c.l.b16 %v652
        %v1715 = vunpack.c.h.b16 %v652
        %v1716 = vunpack.c.l.b16 %v653
        %v1717 = vunpack.c.h.b16 %v653
        %v1718 = vunpack.c.l.b16 %v654
        %v1719 = vunpack.c.h.b16 %v654
        %v1720 = vunpack.c.l.b16 %v655
        %v1721 = vunpack.c.h.b16 %v655
        %v1722 = vunpack.c.l.b16 %v656
        %v1723 = vunpack.c.h.b16 %v656
        %v1724 = vunpack.c.l.b16 %v657
        %v1725 = vunpack.c.h.b16 %v657
        %v1726 = vunpack.c.l.b16 %v658
        %v1727 = vunpack.c.h.b16 %v658
        %v1728 = vunpack.c.l.b16 %v659
        %v1729 = vunpack.c.h.b16 %v659
        %v1730 = vunpack.c.l.b16 %v660
        %v1731 = vunpack.c.h.b16 %v660
        %v1732 = vunpack.c.l.b16 %v661
        %v1733 = vunpack.c.h.b16 %v661
        %v1734 = vunpack.c.l.b16 %v662
        %v1735 = vunpack.c.h.b16 %v662
        %v1736 = vunpack.c.l.b16 %v663
        %v1737 = vunpack.c.h.b16 %v663
        %v1738 = vunpack.c.l.b16 %v664
        %v1739 = vunpack.c.h.b16 %v664
        %v1740 = vunpack.c.l.b16 %v665
        %v1741 = vunpack.c.h.b16 %v665
        %v1742 = vunpack.c.l.b16 %v666
        %v1743 = vunpack.c.h.b16 %v666
        %v1744 = vunpack.c.l.b16 %v667
        %v1745 = vunpack.c.h.b16 %v667
        %v1746 = vunpack.c.l.b16 %v668
        %v1747 = vunpack.c.h.b16 %v668
        %v1748 = vunpack.c.l.b16 %v669
        %v1749 = vunpack.c.h.b16 %v669
        %v1750 = vunpack.c.l.b16 %v670
        %v1751 = vunpack.c.h.b16 %v670
        %v1752 = vunpack.c.l.b16 %v671
        %v1753 = vunpack.c.h.b16 %v671
        %v1754 = vunpack.c.l.b16 %v672
        %v1755 = vunpack.c.h.b16 %v672
        %v1756 = vunpack.c.l.b16 %v673
        %v1757 = vunpack.c.h.b16 %v673
        %v1758 = vunpack.c.l.b16 %v674
        %v1759 = vunpack.c.h.b16 %v674
        %v1760 = vunpack.c.l.b16 %v675
        %v1761 = vunpack.c.h.b16 %v675
        %v1762 = vunpack.c.l.b16 %v676
        %v1763 = vunpack.c.h.b16 %v676
        %v1764 = vunpack.c.l.b16 %v677
        %v1765 = vunpack.c.h.b16 %v677
        %v1766 = vunpack.c.l.b16 %v678
        %v1767 = vunpack.c.h.b16 %v678
        %v1768 = vunpack.c.l.b16 %v679
        %v1769 = vunpack.c.h.b16 %v679
        %v1770 = vunpack.c.l.b16 %v680
        %v1771 = vunpack.c.h.b16 %v680
        %v1772 = vunpack.c.l.b16 %v681
        %v1773 = vunpack.c.h.b16 %v681
        %v1774 = vunpack.c.l.b16 %v682
        %v1775 = vunpack.c.h.b16 %v682
        %v1776 = vunpack.c.l.b16 %v683
        %v1777 = vunpack.c.h.b16 %v683
        %v1778 = vunpack.c.l.b16 %v684
        %v1779 = vunpack.c.h.b16 %v684
        %v1780 = vunpack.c.l.b16 %v685
        %v1781 = vunpack.c.h.b16 %v685
        %v1782 = vunpack.c.l.b16 %v686
        %v1783 = vunpack.c.h.b16 %v686
        %v1784 = vunpack.c.l.b16 %v687
        %v1785 = vunpack.c.h.b16 %v687
        %v1786 = vunpack.c.l.b16 %v688
        %v1787 = vunpack.c.h.b16 %v688
        %v1788 = vunpack.c.l.b16 %v689
        %v1789 = vunpack.c.h.b16 %v689
        %v1790 = vunpack.c.l.b16 %v690
        %v1791 = vunpack.c.h.b16 %v690
        %v1792 = vunpack.c.l.b16 %v691
        %v1793 = vunpack.c.h.b16 %v691
        %v1794 = vunpack.c.l.b16 %v692
        %v1795 = vunpack.c.h.b16 %v692
        %v1796 = vunpack.c.l.b16 %v693
        %v1797 = vunpack.c.h.b16 %v693
        %v1798 = vunpack.c.l.b16 %v694
        %v1799 = vunpack.c.h.b16 %v694
        %v1800 = vunpack.c.l.b16 %v695
        %v1801 = vunpack.c.h.b16 %v695
        %v1802 = vunpack.c.l.b16 %v696
        %v1803 = vunpack.c.h.b16 %v696
        %v1804 = vunpack.c.l.b16 %v697
        %v1805 = vunpack.c.h.b16 %v697
        %v1806 = vunpack.c.l.b16 %v698
        %v1807 = vunpack.c.h.b16 %v698
        %v1808 = vunpack.c.l.b16 %v699
        %v1809 = vunpack.c.h.b16 %v699
        %v1810 = vunpack.c.l.b16 %v700
        %v1811 = vunpack.c.h.b16 %v700
        %v1812 = vunpack.c.l.b16 %v701
        %v1813 = vunpack.c.h.b16 %v701
        %v1814 = vunpack.c.l.b16 %v702
        %v1815 = vunpack.c.h.b16 %v702
        %v1816 = vunpack.c.l.b16 %v703
        %v1817 = vunpack.c.h.b16 %v703
        %v1818 = vunpack.c.l.b16 %v704
        %v1819 = vunpack.c.h.b16 %v704
        %v1820 = vunpack.c.l.b16 %v705
        %v1821 = vunpack.c.h.b16 %v705
        %v1822 = vunpack.c.l.b16 %v706
        %v1823 = vunpack.c.h.b16 %v706
        %v1824 = vunpack.c.l.b16 %v707
        %v1825 = vunpack.c.h.b16 %v707
        %v1826 = vunpack.c.l.b16 %v708
        %v1827 = vunpack.c.h.b16 %v708
        %v1828 = vunpack.c.l.b16 %v709
        %v1829 = vunpack.c.h.b16 %v709
        %v1830 = vunpack.c.l.b16 %v710
        %v1831 = vunpack.c.h.b16 %v710
        %v1832 = vunpack.c.l.b16 %v711
        %v1833 = vunpack.c.h.b16 %v711
        %v1834 = vunpack.c.l.b16 %v712
        %v1835 = vunpack.c.h.b16 %v712
        %v1836 = vunpack.c.l.b16 %v713
        %v1837 = vunpack.c.h.b16 %v713
        %v1838 = vunpack.c.l.b16 %v714
        %v1839 = vunpack.c.h.b16 %v714
        %v1840 = vunpack.c.l.b16 %v715
        %v1841 = vunpack.c.h.b16 %v715
        %v1842 = vunpack.c.l.b16 %v716
        %v1843 = vunpack.c.h.b16 %v716
        %v1844 = vunpack.c.l.b16 %v717
        %v1845 = vunpack.c.h.b16 %v717
        %v1846 = vunpack.c.l.b16 %v718
        %v1847 = vunpack.c.h.b16 %v718
        %v1848 = vunpack.c.l.b16 %v719
        %v1849 = vunpack.c.h.b16 %v719
        %v1850 = vunpack.c.l.b16 %v720
        %v1851 = vunpack.c.h.b16 %v720
        %v1852 = vunpack.c.l.b16 %v721
        %v1853 = vunpack.c.h.b16 %v721
        %v1854 = vunpack.c.l.b16 %v722
        %v1855 = vunpack.c.h.b16 %v722
        %v1856 = vunpack.c.l.b16 %v723
        %v1857 = vunpack.c.h.b16 %v723
        %v1858 = vunpack.c.l.b16 %v724
        %v1859 = vunpack.c.h.b16 %v724
        %v1860 = vunpack.c.l.b16 %v725
        %v1861 = vunpack.c.h.b16 %v725
        %v1862 = vunpack.c.l.b16 %v726
        %v1863 = vunpack.c.h.b16 %v726
        %v1864 = vunpack.c.l.b16 %v727
        %v1865 = vunpack.c.h.b16 %v727
        %v1866 = vunpack.c.l.b16 %v728
        %v1867 = vunpack.c.h.b16 %v728
        %v1868 = vunpack.c.l.b16 %v729
        %v1869 = vunpack.c.h.b16 %v729
        %v1870 = vunpack.c.l.b16 %v730
        %v1871 = vunpack.c.h.b16 %v730
        %v1872 = vunpack.c.l.b16 %v731
        %v1873 = vunpack.c.h.b16 %v731
        %v1874 = vunpack.c.l.b16 %v732
        %v1875 = vunpack.c.h.b16 %v732
        %v1876 = vunpack.c.l.b16 %v733
        %v1877 = vunpack.c.h.b16 %v733
        %v1878 = vunpack.c.l.b16 %v734
        %v1879 = vunpack.c.h.b16 %v734
        %v1880 = vunpack.c.l.b16 %v735
        %v1881 = vunpack.c.h.b16 %v735
        %v1882 = vunpack.c.l.b16 %v736
        %v1883 = vunpack.c.h.b16 %v736
        %v1884 = vunpack.c.l.b16 %v737
        %v1885 = vunpack.c.h.b16 %v737
        %v1886 = vunpack.c.l.b16 %v738
        %v1887 = vunpack.c.h.b16 %v738
        %v1888 = vunpack.c.l.b16 %v739
        %v1889 = vunpack.c.h.b16 %v739
        %v1890 = vunpack.c.l.b16 %v740
        %v1891 = vunpack.c.h.b16 %v740
        %v1892 = vunpack.c.l.b16 %v741
        %v1893 = vunpack.c.h.b16 %v741
        %v1894 = vunpack.c.l.b16 %v742
        %v1895 = vunpack.c.h.b16 %v742
        %v1896 = vunpack.c.l.b16 %v743
        %v1897 = vunpack.c.h.b16 %v743
        %v1898 = vunpack.c.l.b16 %v744
        %v1899 = vunpack.c.h.b16 %v744
        %v1900 = vunpack.c.l.b16 %v745
        %v1901 = vunpack.c.h.b16 %v745
        %v1902 = vunpack.c.l.b16 %v746
        %v1903 = vunpack.c.h.b16 %v746
        %v1904 = vunpack.c.l.b16 %v747
        %v1905 = vunpack.c.h.b16 %v747
        %v1906 = vunpack.c.l.b16 %v748
        %v1907 = vunpack.c.h.b16 %v748
        %v1908 = vunpack.c.l.b16 %v749
        %v1909 = vunpack.c.h.b16 %v749
        %v1910 = vunpack.c.l.b16 %v750
        %v1911 = vunpack.c.h.b16 %v750
        %v1912 = vunpack.c.l.b16 %v751
        %v1913 = vunpack.c.h.b16 %v751
        %v1914 = vunpack.c.l.b16 %v752
        %v1915 = vunpack.c.h.b16 %v752
        %v1916 = vunpack.c.l.b16 %v753
        %v1917 = vunpack.c.h.b16 %v753
        %v1918 = vunpack.c.l.b16 %v754
        %v1919 = vunpack.c.h.b16 %v754
        %v1920 = vunpack.c.l.b16 %v755
        %v1921 = vunpack.c.h.b16 %v755
        %v1922 = vunpack.c.l.b16 %v756
        %v1923 = vunpack.c.h.b16 %v756
        %v1924 = vunpack.c.l.b16 %v757
        %v1925 = vunpack.c.h.b16 %v757
        %v1926 = vunpack.c.l.b16 %v758
        %v1927 = vunpack.c.h.b16 %v758
        %v1928 = vunpack.c.l.b16 %v759
        %v1929 = vunpack.c.h.b16 %v759
        %v1930 = vunpack.c.l.b16 %v760
        %v1931 = vunpack.c.h.b16 %v760
        %v1932 = vunpack.c.l.b16 %v761
        %v1933 = vunpack.c.h.b16 %v761
        %v1934 = vunpack.c.l.b16 %v762
        %v1935 = vunpack.c.h.b16 %v762
        %v1936 = vunpack.c.l.b16 %v763
        %v1937 = vunpack.c.h.b16 %v763
        %v1938 = vunpack.c.l.b16 %v764
        %v1939 = vunpack.c.h.b16 %v764
        %v1940 = vunpack.c.l.b16 %v765
        %v1941 = vunpack.c.h.b16 %v765
        %v1942 = vunpack.c.l.b16 %v766
        %v1943 = vunpack.c.h.b16 %v766
        %v1944 = vunpack.c.l.b16 %v767
        %v1945 = vunpack.c.h.b16 %v767
        %v1946 = vunpack.c.l.b16 %v768
        %v1947 = vunpack.c.h.b16 %v768
        %v1948 = vunpack.c.l.b16 %v769
        %v1949 = vunpack.c.h.b16 %v769
        %v1950 = vunpack.c.l.b16 %v770
        %v1951 = vunpack.c.h.b16 %v770
        %v1952 = vunpack.c.l.b16 %v771
        %v1953 = vunpack.c.h.b16 %v771
        %v1954 = vunpack.c.l.b16 %v772
        %v1955 = vunpack.c.h.b16 %v772
        %v1956 = vunpack.c.l.b16 %v773
        %v1957 = vunpack.c.h.b16 %v773
        %v1958 = vunpack.c.l.b16 %v774
        %v1959 = vunpack.c.h.b16 %v774
        %v1960 = vunpack.c.l.b16 %v775
        %v1961 = vunpack.c.h.b16 %v775
        %v1962 = vunpack.c.l.b16 %v776
        %v1963 = vunpack.c.h.b16 %v776
        %v1964 = vunpack.c.l.b16 %v777
        %v1965 = vunpack.c.h.b16 %v777
        %v1966 = vunpack.c.l.b16 %v778
        %v1967 = vunpack.c.h.b16 %v778
        %v1968 = vunpack.c.l.b16 %v779
        %v1969 = vunpack.c.h.b16 %v779
        %v1970 = vunpack.c.l.b16 %v780
        %v1971 = vunpack.c.h.b16 %v780
        %v1972 = vunpack.c.l.b16 %v781
        %v1973 = vunpack.c.h.b16 %v781
        %v1974 = vunpack.c.l.b16 %v782
        %v1975 = vunpack.c.h.b16 %v782
        %v1976 = vunpack.c.l.b16 %v783
        %v1977 = vunpack.c.h.b16 %v783
        %v1978 = vunpack.c.l.b16 %v784
        %v1979 = vunpack.c.h.b16 %v784
        %v1980 = vunpack.c.l.b16 %v785
        %v1981 = vunpack.c.h.b16 %v785
        %v1982 = vunpack.c.l.b16 %v786
        %v1983 = vunpack.c.h.b16 %v786
        %v1984 = vunpack.c.l.b16 %v787
        %v1985 = vunpack.c.h.b16 %v787
        %v1986 = vunpack.c.l.b16 %v788
        %v1987 = vunpack.c.h.b16 %v788
        %v1988 = vunpack.c.l.b16 %v789
        %v1989 = vunpack.c.h.b16 %v789
        %v1990 = vunpack.c.l.b16 %v790
        %v1991 = vunpack.c.h.b16 %v790
        %v1992 = vunpack.c.l.b16 %v791
        %v1993 = vunpack.c.h.b16 %v791
        %v1994 = vunpack.c.l.b16 %v792
        %v1995 = vunpack.c.h.b16 %v792
        %v1996 = vunpack.c.l.b16 %v793
        %v1997 = vunpack.c.h.b16 %v793
        %v1998 = vunpack.c.l.b16 %v794
        %v1999 = vunpack.c.h.b16 %v794
        %v2000 = vunpack.c.l.b16 %v795
        %v2001 = vunpack.c.h.b16 %v795
        %v2002 = vunpack.c.l.b16 %v796
        %v2003 = vunpack.c.h.b16 %v796
        %v2004 = vunpack.c.l.b16 %v797
        %v2005 = vunpack.c.h.b16 %v797
        %v2006 = vunpack.c.l.b16 %v798
        %v2007 = vunpack.c.h.b16 %v798
        %v2008 = vunpack.c.l.b16 %v799
        %v2009 = vunpack.c.h.b16 %v799
        %v2010 = vunpack.c.l.b16 %v800
        %v2011 = vunpack.c.h.b16 %v800
        %v2012 = vunpack.c.l.b16 %v801
        %v2013 = vunpack.c.h.b16 %v801
        %v2014 = vunpack.c.l.b16 %v802
        %v2015 = vunpack.c.h.b16 %v802
        %v2016 = vunpack.c.l.b16 %v803
        %v2017 = vunpack.c.h.b16 %v803
        %v2018 = vunpack.c.l.b16 %v804
        %v2019 = vunpack.c.h.b16 %v804
        %v2020 = vunpack.c.l.b16 %v805
        %v2021 = vunpack.c.h.b16 %v805
        %v2022 = vunpack.c.l.b16 %v806
        %v2023 = vunpack.c.h.b16 %v806
        %v2024 = vunpack.c.l.b16 %v807
        %v2025 = vunpack.c.h.b16 %v807
        %v2026 = vunpack.c.l.b16 %v808
        %v2027 = vunpack.c.h.b16 %v808
        %v2028 = vunpack.c.l.b16 %v809
        %v2029 = vunpack.c.h.b16 %v809
        %v2030 = vunpack.c.l.b16 %v810
        %v2031 = vunpack.c.h.b16 %v810
        %v2032 = vunpack.c.l.b16 %v811
        %v2033 = vunpack.c.h.b16 %v811
        %v2034 = vunpack.c.l.b16 %v812
        %v2035 = vunpack.c.h.b16 %v812
        %v2036 = vunpack.c.l.b16 %v813
        %v2037 = vunpack.c.h.b16 %v813
        %v2038 = vunpack.c.l.b16 %v814
        %v2039 = vunpack.c.h.b16 %v814
        %v2040 = vunpack.c.l.b16 %v815
        %v2041 = vunpack.c.h.b16 %v815
        %v2042 = vunpack.c.l.b16 %v816
        %v2043 = vunpack.c.h.b16 %v816
        %v2044 = vunpack.c.l.b16 %v817
        %v2045 = vunpack.c.h.b16 %v817
        %v2046 = vunpack.c.l.b16 %v818
        %v2047 = vunpack.c.h.b16 %v818
        %v2048 = vunpack.c.l.b16 %v819
        %v2049 = vunpack.c.h.b16 %v819
        %v2050 = vunpack.c.l.b16 %v820
        %v2051 = vunpack.c.h.b16 %v820
        %v2052 = vunpack.c.l.b16 %v821
        %v2053 = vunpack.c.h.b16 %v821
        %v2054 = vunpack.c.l.b16 %v822
        %v2055 = vunpack.c.h.b16 %v822
        %v2056 = vunpack.c.l.b16 %v823
        %v2057 = vunpack.c.h.b16 %v823
        %v2058 = vunpack.c.l.b16 %v824
        %v2059 = vunpack.c.h.b16 %v824
        %v2060 = vunpack.c.l.b16 %v825
        %v2061 = vunpack.c.h.b16 %v825
        %v2062 = vunpack.c.l.b16 %v826
        %v2063 = vunpack.c.h.b16 %v826
        %v2064 = vunpack.c.l.b16 %v827
        %v2065 = vunpack.c.h.b16 %v827
        %v2066 = vunpack.c.l.b16 %v828
        %v2067 = vunpack.c.h.b16 %v828
        %v2068 = vunpack.c.l.b16 %v829
        %v2069 = vunpack.c.h.b16 %v829
        %v2070 = vunpack.c.l.b16 %v830
        %v2071 = vunpack.c.h.b16 %v830
        %v2072 = vunpack.c.l.b16 %v831
        %v2073 = vunpack.c.h.b16 %v831
        %v2074 = vunpack.c.l.b16 %v832
        %v2075 = vunpack.c.h.b16 %v832
        %v2076 = vunpack.c.l.b16 %v833
        %v2077 = vunpack.c.h.b16 %v833
        %v2078 = vunpack.c.l.b16 %v834
        %v2079 = vunpack.c.h.b16 %v834
        %v2080 = vunpack.c.l.b16 %v835
        %v2081 = vunpack.c.h.b16 %v835
        %v2082 = vunpack.c.l.b16 %v836
        %v2083 = vunpack.c.h.b16 %v836
        %v2084 = vunpack.c.l.b16 %v837
        %v2085 = vunpack.c.h.b16 %v837
        %v2086 = vunpack.c.l.b16 %v838
        %v2087 = vunpack.c.h.b16 %v838
        %v2088 = vunpack.c.l.b16 %v839
        %v2089 = vunpack.c.h.b16 %v839
        %v2090 = vunpack.c.l.b16 %v840
        %v2091 = vunpack.c.h.b16 %v840
        %v2092 = vunpack.c.l.b16 %v841
        %v2093 = vunpack.c.h.b16 %v841
        %v2094 = vunpack.c.l.b16 %v842
        %v2095 = vunpack.c.h.b16 %v842
        %v2096 = vunpack.c.l.b16 %v843
        %v2097 = vunpack.c.h.b16 %v843
        %v2098 = vunpack.c.l.b16 %v844
        %v2099 = vunpack.c.h.b16 %v844
        %v2100 = vunpack.c.l.b16 %v845
        %v2101 = vunpack.c.h.b16 %v845
        %v2102 = vunpack.c.l.b16 %v846
        %v2103 = vunpack.c.h.b16 %v846
        %v2104 = vunpack.c.l.b16 %v847
        %v2105 = vunpack.c.h.b16 %v847
        %v2106 = vunpack.c.l.b16 %v848
        %v2107 = vunpack.c.h.b16 %v848
        %v2108 = vunpack.c.l.b16 %v849
        %v2109 = vunpack.c.h.b16 %v849
        %v2110 = vunpack.c.l.b16 %v850
        %v2111 = vunpack.c.h.b16 %v850
        %v2112 = vunpack.c.l.b16 %v851
        %v2113 = vunpack.c.h.b16 %v851
        %v2114 = vunpack.c.l.b16 %v852
        %v2115 = vunpack.c.h.b16 %v852
        %v2116 = vunpack.c.l.b16 %v853
        %v2117 = vunpack.c.h.b16 %v853
        %v2118 = vunpack.c.l.b16 %v854
        %v2119 = vunpack.c.h.b16 %v854
        %v2120 = vunpack.c.l.b16 %v855
        %v2121 = vunpack.c.h.b16 %v855
        %v2122 = vunpack.c.l.b16 %v856
        %v2123 = vunpack.c.h.b16 %v856
        %v2124 = vunpack.c.l.b16 %v857
        %v2125 = vunpack.c.h.b16 %v857
        %v2126 = vunpack.c.l.b16 %v858
        %v2127 = vunpack.c.h.b16 %v858
        %v2128 = vunpack.c.l.b16 %v859
        %v2129 = vunpack.c.h.b16 %v859
        %v2130 = vunpack.c.l.b16 %v860
        %v2131 = vunpack.c.h.b16 %v860
        %v2132 = vunpack.c.l.b16 %v861
        %v2133 = vunpack.c.h.b16 %v861
        %v2134 = vunpack.c.l.b16 %v862
        %v2135 = vunpack.c.h.b16 %v862
        %v2136 = vunpack.c.l.b16 %v863
        %v2137 = vunpack.c.h.b16 %v863
        %v2138 = vunpack.c.l.b16 %v864
        %v2139 = vunpack.c.h.b16 %v864
        %v2140 = vunpack.c.l.b16 %v865
        %v2141 = vunpack.c.h.b16 %v865
        %v2142 = vunpack.c.l.b16 %v866
        %v2143 = vunpack.c.h.b16 %v866
        %v2144 = vunpack.c.l.b16 %v867
        %v2145 = vunpack.c.h.b16 %v867
        %v2146 = vunpack.c.l.b16 %v868
        %v2147 = vunpack.c.h.b16 %v868
        %v2148 = vunpack.c.l.b16 %v869
        %v2149 = vunpack.c.h.b16 %v869
        %v2150 = vunpack.c.l.b16 %v870
        %v2151 = vunpack.c.h.b16 %v870
        %v2152 = vunpack.c.l.b16 %v871
        %v2153 = vunpack.c.h.b16 %v871
        %v2154 = vunpack.c.l.b16 %v872
        %v2155 = vunpack.c.h.b16 %v872
        %v2156 = vunpack.c.l.b16 %v873
        %v2157 = vunpack.c.h.b16 %v873
        %v2158 = vunpack.c.l.b16 %v874
        %v2159 = vunpack.c.h.b16 %v874
        %v2160 = vunpack.c.l.b16 %v875
        %v2161 = vunpack.c.h.b16 %v875
        %v2162 = vunpack.c.l.b16 %v876
        %v2163 = vunpack.c.h.b16 %v876
        %v2164 = vunpack.c.l.b16 %v877
        %v2165 = vunpack.c.h.b16 %v877
        %v2166 = vunpack.c.l.b16 %v878
        %v2167 = vunpack.c.h.b16 %v878
        %v2168 = vunpack.c.l.b16 %v879
        %v2169 = vunpack.c.h.b16 %v879
        %v2170 = vunpack.c.l.b16 %v880
        %v2171 = vunpack.c.h.b16 %v880
        %v2172 = vunpack.c.l.b16 %v881
        %v2173 = vunpack.c.h.b16 %v881
        %v2174 = vunpack.c.l.b16 %v882
        %v2175 = vunpack.c.h.b16 %v882
        %v2176 = vunpack.c.l.b16 %v883
        %v2177 = vunpack.c.h.b16 %v883
        %v2178 = vunpack.c.l.b16 %v884
        %v2179 = vunpack.c.h.b16 %v884
        %v2180 = vunpack.c.l.b16 %v885
        %v2181 = vunpack.c.h.b16 %v885
        %v2182 = vunpack.c.l.b16 %v886
        %v2183 = vunpack.c.h.b16 %v886
        %v2184 = vunpack.c.l.b16 %v887
        %v2185 = vunpack.c.h.b16 %v887
        %v2186 = vunpack.c.l.b16 %v888
        %v2187 = vunpack.c.h.b16 %v888
        %v2188 = vunpack.c.l.b16 %v889
        %v2189 = vunpack.c.h.b16 %v889
        %v2190 = vunpack.c.l.b16 %v890
        %v2191 = vunpack.c.h.b16 %v890
        %v2192 = vunpack.c.l.b16 %v891
        %v2193 = vunpack.c.h.b16 %v891
        %v2194 = vunpack.c.l.b16 %v892
        %v2195 = vunpack.c.h.b16 %v892
        %v2196 = vunpack.c.l.b16 %v893
        %v2197 = vunpack.c.h.b16 %v893
        %v2198 = vunpack.c.l.b16 %v894
        %v2199 = vunpack.c.h.b16 %v894
        %v2200 = vunpack.c.l.b16 %v895
        %v2201 = vunpack.c.h.b16 %v895
        %v2202 = vunpack.c.l.b16 %v896
        %v2203 = vunpack.c.h.b16 %v896
        %v2204 = vunpack.c.l.b16 %v897
        %v2205 = vunpack.c.h.b16 %v897
        %v2206 = vunpack.c.l.b16 %v898
        %v2207 = vunpack.c.h.b16 %v898
        %v2208 = vunpack.c.l.b16 %v899
        %v2209 = vunpack.c.h.b16 %v899
        %v2210 = vunpack.c.l.b16 %v900
        %v2211 = vunpack.c.h.b16 %v900
        %v2212 = vunpack.c.l.b16 %v901
        %v2213 = vunpack.c.h.b16 %v901
        %v2214 = vunpack.c.l.b16 %v902
        %v2215 = vunpack.c.h.b16 %v902
        %v2216 = vunpack.c.l.b16 %v903
        %v2217 = vunpack.c.h.b16 %v903
        %v2218 = vunpack.c.l.b16 %v904
        %v2219 = vunpack.c.h.b16 %v904
        %v2220 = vunpack.c.l.b16 %v905
        %v2221 = vunpack.c.h.b16 %v905
        %v2222 = vunpack.c.l.b16 %v906
        %v2223 = vunpack.c.h.b16 %v906
        %v2224 = vunpack.c.l.b16 %v907
        %v2225 = vunpack.c.h.b16 %v907
        %v2226 = vunpack.c.l.b16 %v908
        %v2227 = vunpack.c.h.b16 %v908
        %v2228 = vunpack.c.l.b16 %v909
        %v2229 = vunpack.c.h.b16 %v909
        %v2230 = vunpack.c.l.b16 %v910
        %v2231 = vunpack.c.h.b16 %v910
        %v2232 = vunpack.c.l.b16 %v911
        %v2233 = vunpack.c.h.b16 %v911
        %v2234 = vunpack.c.l.b16 %v912
        %v2235 = vunpack.c.h.b16 %v912
        %v2236 = vunpack.c.l.b16 %v913
        %v2237 = vunpack.c.h.b16 %v913
        %v2238 = vunpack.c.l.b16 %v914
        %v2239 = vunpack.c.h.b16 %v914
        %v2240 = vunpack.c.l.b16 %v915
        %v2241 = vunpack.c.h.b16 %v915
        %v2242 = vunpack.c.l.b16 %v916
        %v2243 = vunpack.c.h.b16 %v916
        %v2244 = vunpack.c.l.b16 %v917
        %v2245 = vunpack.c.h.b16 %v917
        %v2246 = vunpack.c.l.b16 %v918
        %v2247 = vunpack.c.h.b16 %v918
        %v2248 = vunpack.c.l.b16 %v919
        %v2249 = vunpack.c.h.b16 %v919
        %v2250 = vunpack.c.l.b16 %v920
        %v2251 = vunpack.c.h.b16 %v920
        %v2252 = vunpack.c.l.b16 %v921
        %v2253 = vunpack.c.h.b16 %v921
        %v2254 = vunpack.c.l.b16 %v922
        %v2255 = vunpack.c.h.b16 %v922
        %v2256 = vunpack.c.l.b16 %v923
        %v2257 = vunpack.c.h.b16 %v923
        %v2258 = vunpack.c.l.b16 %v924
        %v2259 = vunpack.c.h.b16 %v924
        %v2260 = vunpack.c.l.b16 %v925
        %v2261 = vunpack.c.h.b16 %v925
        %v2262 = vunpack.c.l.b16 %v926
        %v2263 = vunpack.c.h.b16 %v926
        %v2264 = vunpack.c.l.b16 %v927
        %v2265 = vunpack.c.h.b16 %v927
        %v2266 = vunpack.c.l.b16 %v928
        %v2267 = vunpack.c.h.b16 %v928
        %v2268 = vunpack.c.l.b16 %v929
        %v2269 = vunpack.c.h.b16 %v929
        %v2270 = vunpack.c.l.b16 %v930
        %v2271 = vunpack.c.h.b16 %v930
        %v2272 = vunpack.c.l.b16 %v931
        %v2273 = vunpack.c.h.b16 %v931
        %v2274 = vunpack.c.l.b16 %v932
        %v2275 = vunpack.c.h.b16 %v932
        %v2276 = vunpack.c.l.b16 %v933
        %v2277 = vunpack.c.h.b16 %v933
        %v2278 = vunpack.c.l.b16 %v934
        %v2279 = vunpack.c.h.b16 %v934
        %v2280 = vunpack.c.l.b16 %v935
        %v2281 = vunpack.c.h.b16 %v935
        %v2282 = vunpack.c.l.b16 %v936
        %v2283 = vunpack.c.h.b16 %v936
        %v2284 = vunpack.c.l.b16 %v937
        %v2285 = vunpack.c.h.b16 %v937
        %v2286 = vunpack.c.l.b16 %v938
        %v2287 = vunpack.c.h.b16 %v938
        %v2288 = vunpack.c.l.b16 %v939
        %v2289 = vunpack.c.h.b16 %v939
        %v2290 = vunpack.c.l.b16 %v940
        %v2291 = vunpack.c.h.b16 %v940
        %v2292 = vunpack.c.l.b16 %v941
        %v2293 = vunpack.c.h.b16 %v941
        %v2294 = vunpack.c.l.b16 %v942
        %v2295 = vunpack.c.h.b16 %v942
        %v2296 = vunpack.c.l.b16 %v943
        %v2297 = vunpack.c.h.b16 %v943
        %v2298 = vunpack.c.l.b16 %v944
        %v2299 = vunpack.c.h.b16 %v944
        %v2300 = vunpack.c.l.b16 %v945
        %v2301 = vunpack.c.h.b16 %v945
        %v2302 = vunpack.c.l.b16 %v946
        %v2303 = vunpack.c.h.b16 %v946
        %v2304 = vunpack.c.l.b16 %v947
        %v2305 = vunpack.c.h.b16 %v947
        %v2306 = vunpack.c.l.b16 %v948
        %v2307 = vunpack.c.h.b16 %v948
        %v2308 = vunpack.c.l.b16 %v949
        %v2309 = vunpack.c.h.b16 %v949
        %v2310 = vunpack.c.l.b16 %v950
        %v2311 = vunpack.c.h.b16 %v950
        %v2312 = vunpack.c.l.b16 %v951
        %v2313 = vunpack.c.h.b16 %v951
        %v2314 = vunpack.c.l.b16 %v952
        %v2315 = vunpack.c.h.b16 %v952
        %v2316 = vunpack.c.l.b16 %v953
        %v2317 = vunpack.c.h.b16 %v953
        %v2318 = vunpack.c.l.b16 %v954
        %v2319 = vunpack.c.h.b16 %v954
        %v2320 = vunpack.c.l.b16 %v955
        %v2321 = vunpack.c.h.b16 %v955
        %v2322 = vunpack.c.l.b16 %v956
        %v2323 = vunpack.c.h.b16 %v956
        %v2324 = vunpack.c.l.b16 %v957
        %v2325 = vunpack.c.h.b16 %v957
        %v2326 = vunpack.c.l.b16 %v958
        %v2327 = vunpack.c.h.b16 %v958
        %v2328 = vunpack.c.l.b16 %v959
        %v2329 = vunpack.c.h.b16 %v959
        %v2330 = vunpack.c.l.b16 %v960
        %v2331 = vunpack.c.h.b16 %v960
        %v2332 = vunpack.c.l.b16 %v961
        %v2333 = vunpack.c.h.b16 %v961
        %v2334 = vunpack.c.l.b16 %v962
        %v2335 = vunpack.c.h.b16 %v962
        %v2336 = vunpack.c.l.b16 %v963
        %v2337 = vunpack.c.h.b16 %v963
        %v2338 = vunpack.c.l.b16 %v964
        %v2339 = vunpack.c.h.b16 %v964
        %v2340 = vunpack.c.l.b16 %v965
        %v2341 = vunpack.c.h.b16 %v965
        %v2342 = vunpack.c.l.b16 %v966
        %v2343 = vunpack.c.h.b16 %v966
        %v2344 = vunpack.c.l.b16 %v967
        %v2345 = vunpack.c.h.b16 %v967
        %v2346 = vunpack.c.l.b16 %v968
        %v2347 = vunpack.c.h.b16 %v968
        %v2348 = vunpack.c.l.b16 %v969
        %v2349 = vunpack.c.h.b16 %v969
        %v2350 = vunpack.c.l.b16 %v970
        %v2351 = vunpack.c.h.b16 %v970
        %v2352 = vunpack.c.l.b16 %v971
        %v2353 = vunpack.c.h.b16 %v971
        %v2354 = vunpack.c.l.b16 %v972
        %v2355 = vunpack.c.h.b16 %v972
        %v2356 = vunpack.c.l.b16 %v973
        %v2357 = vunpack.c.h.b16 %v973
        %v2358 = vunpack.c.l.b16 %v974
        %v2359 = vunpack.c.h.b16 %v974
        %v2360 = vunpack.c.l.b16 %v975
        %v2361 = vunpack.c.h.b16 %v975
        %v2362 = vunpack.c.l.b16 %v976
        %v2363 = vunpack.c.h.b16 %v976
        %v2364 = vunpack.c.l.b16 %v977
        %v2365 = vunpack.c.h.b16 %v977
        %v2366 = vunpack.c.l.b16 %v978
        %v2367 = vunpack.c.h.b16 %v978
        %v2368 = vunpack.c.l.b16 %v979
        %v2369 = vunpack.c.h.b16 %v979
        %v2370 = vunpack.c.l.b16 %v980
        %v2371 = vunpack.c.h.b16 %v980
        %v2372 = vunpack.c.l.b16 %v981
        %v2373 = vunpack.c.h.b16 %v981
        %v2374 = vunpack.c.l.b16 %v982
        %v2375 = vunpack.c.h.b16 %v982
        %v2376 = vunpack.c.l.b16 %v983
        %v2377 = vunpack.c.h.b16 %v983
        %v2378 = vunpack.c.l.b16 %v984
        %v2379 = vunpack.c.h.b16 %v984
        %v2380 = vunpack.c.l.b16 %v985
        %v2381 = vunpack.c.h.b16 %v985
        %v2382 = vunpack.c.l.b16 %v986
        %v2383 = vunpack.c.h.b16 %v986
        %v2384 = vunpack.c.l.b16 %v987
        %v2385 = vunpack.c.h.b16 %v987
        %v2386 = vunpack.c.l.b16 %v988
        %v2387 = vunpack.c.h.b16 %v988
        %v2388 = vunpack.c.l.b16 %v989
        %v2389 = vunpack.c.h.b16 %v989
        %v2390 = vunpack.c.l.b16 %v990
        %v2391 = vunpack.c.h.b16 %v990
        %v2392 = vunpack.c.l.b16 %v991
        %v2393 = vunpack.c.h.b16 %v991
        %v2394 = vunpack.c.l.b16 %v992
        %v2395 = vunpack.c.h.b16 %v992
        %v2396 = vunpack.c.l.b16 %v993
        %v2397 = vunpack.c.h.b16 %v993
        %v2398 = vunpack.c.l.b16 %v994
        %v2399 = vunpack.c.h.b16 %v994
        %v2400 = vunpack.c.l.b16 %v995
        %v2401 = vunpack.c.h.b16 %v995
        %v2402 = vunpack.c.l.b16 %v996
        %v2403 = vunpack.c.h.b16 %v996
        %v2404 = vunpack.c.l.b16 %v997
        %v2405 = vunpack.c.h.b16 %v997
        %v2406 = vunpack.c.l.b16 %v998
        %v2407 = vunpack.c.h.b16 %v998
        %v2408 = vunpack.c.l.b16 %v999
        %v2409 = vunpack.c.h.b16 %v999
        %v2410 = vunpack.c.l.b16 %v1000
        %v2411 = vunpack.c.h.b16 %v1000
        %v2412 = vunpack.c.l.b16 %v1001
        %v2413 = vunpack.c.h.b16 %v1001
        %v2414 = vunpack.c.l.b16 %v1002
        %v2415 = vunpack.c.h.b16 %v1002
        %v2416 = vunpack.c.l.b16 %v1003
        %v2417 = vunpack.c.h.b16 %v1003
        %v2418 = vunpack.c.l.b16 %v1004
        %v2419 = vunpack.c.h.b16 %v1004
        %v2420 = vunpack.c.l.b16 %v1005
        %v2421 = vunpack.c.h.b16 %v1005
        %v2422 = vunpack.c.l.b16 %v1006
        %v2423 = vunpack.c.h.b16 %v1006
        %v2424 = vunpack.c.l.b16 %v1007
        %v2425 = vunpack.c.h.b16 %v1007
        %v2426 = vunpack.c.l.b16 %v1008
        %v2427 = vunpack.c.h.b16 %v1008
        %v2428 = vunpack.c.l.b16 %v1009
        %v2429 = vunpack.c.h.b16 %v1009
        %v2430 = vunpack.c.l.b16 %v1010
        %v2431 = vunpack.c.h.b16 %v1010
        %v2432 = vunpack.c.l.b16 %v1011
        %v2433 = vunpack.c.h.b16 %v1011
        %v2434 = vunpack.c.l.b16 %v1012
        %v2435 = vunpack.c.h.b16 %v1012
        %v2436 = vunpack.c.l.b16 %v1013
        %v2437 = vunpack.c.h.b16 %v1013
        %v2438 = vunpack.c.l.b16 %v1014
        %v2439 = vunpack.c.h.b16 %v1014
        %v2440 = vunpack.c.l.b16 %v1015
        %v2441 = vunpack.c.h.b16 %v1015
        %v2442 = vunpack.c.l.b16 %v1016
        %v2443 = vunpack.c.h.b16 %v1016
        %v2444 = vunpack.c.l.b16 %v1017
        %v2445 = vunpack.c.h.b16 %v1017
        %v2446 = vunpack.c.l.b16 %v1018
        %v2447 = vunpack.c.h.b16 %v1018
        %v2448 = vunpack.c.l.b16 %v1019
        %v2449 = vunpack.c.h.b16 %v1019
        %v2450 = vunpack.c.l.b16 %v1020
        %v2451 = vunpack.c.h.b16 %v1020
        %v2452 = vunpack.c.l.b16 %v1021
        %v2453 = vunpack.c.h.b16 %v1021
        %v2454 = vunpack.c.l.b16 %v1022
        %v2455 = vunpack.c.h.b16 %v1022
        %v2456 = vunpack.c.l.b16 %v1023
        %v2457 = vunpack.c.h.b16 %v1023
        %v2458 = vunpack.c.l.b16 %v1024
        %v2459 = vunpack.c.h.b16 %v1024
        %v2460 = vunpack.c.l.b16 %v1025
        %v2461 = vunpack.c.h.b16 %v1025
        %v2462 = vunpack.c.l.b16 %v1026
        %v2463 = vunpack.c.h.b16 %v1026
        %v2464 = vunpack.c.l.b16 %v1027
        %v2465 = vunpack.c.h.b16 %v1027
        %v2466 = vunpack.c.l.b16 %v1028
        %v2467 = vunpack.c.h.b16 %v1028
        %v2468 = vunpack.c.l.b16 %v1029
        %v2469 = vunpack.c.h.b16 %v1029
        %v2470 = vunpack.c.l.b16 %v1030
        %v2471 = vunpack.c.h.b16 %v1030
        %v2472 = vunpack.c.l.b16 %v1031
        %v2473 = vunpack.c.h.b16 %v1031
        %v2474 = vunpack.c.l.b16 %v1032
        %v2475 = vunpack.c.h.b16 %v1032
        %v2476 = vunpack.c.l.b16 %v1033
        %v2477 = vunpack.c.h.b16 %v1033
        %v2478 = vunpack.c.l.b16 %v1034
        %v2479 = vunpack.c.h.b16 %v1034
        %v2480 = vunpack.c.l.b16 %v1035
        %v2481 = vunpack.c.h.b16 %v1035
        %v2482 = vunpack.c.l.b16 %v1036
        %v2483 = vunpack.c.h.b16 %v1036
        %v2484 = vunpack.c.l.b16 %v1037
        %v2485 = vunpack.c.h.b16 %v1037
        %v2486 = vunpack.c.l.b16 %v1038
        %v2487 = vunpack.c.h.b16 %v1038
        %v2488 = vunpack.c.l.b16 %v1039
        %v2489 = vunpack.c.h.b16 %v1039
        %v2490 = vunpack.c.l.b16 %v1040
        %v2491 = vunpack.c.h.b16 %v1040
        %v2492 = vunpack.c.l.b16 %v1041
        %v2493 = vunpack.c.h.b16 %v1041
        %v2494 = vunpack.c.l.b16 %v1042
        %v2495 = vunpack.c.h.b16 %v1042
        %v2496 = vunpack.c.l.b16 %v1043
        %v2497 = vunpack.c.h.b16 %v1043
        %v2498 = vunpack.c.l.b16 %v1044
        %v2499 = vunpack.c.h.b16 %v1044
        %v2500 = vunpack.c.l.b16 %v1045
        %v2501 = vunpack.c.h.b16 %v1045
        %v2502 = vunpack.c.l.b16 %v1046
        %v2503 = vunpack.c.h.b16 %v1046
        %v2504 = vunpack.c.l.b16 %v1047
        %v2505 = vunpack.c.h.b16 %v1047
        %v2506 = vunpack.c.l.b16 %v1048
        %v2507 = vunpack.c.h.b16 %v1048
        %v2508 = vunpack.c.l.b16 %v1049
        %v2509 = vunpack.c.h.b16 %v1049
        %v2510 = vunpack.c.l.b16 %v1050
        %v2511 = vunpack.c.h.b16 %v1050
        %v2512 = vunpack.c.l.b16 %v1051
        %v2513 = vunpack.c.h.b16 %v1051
        %v2514 = vunpack.c.l.b16 %v1052
        %v2515 = vunpack.c.h.b16 %v1052
        %v2516 = vunpack.c.l.b16 %v1053
        %v2517 = vunpack.c.h.b16 %v1053
        %v2518 = vunpack.c.l.b16 %v1054
        %v2519 = vunpack.c.h.b16 %v1054
        %v2520 = vunpack.c.l.b16 %v1055
        %v2521 = vunpack.c.h.b16 %v1055
        %v2522 = vunpack.c.l.b16 %v1056
        %v2523 = vunpack.c.h.b16 %v1056
        %v2524 = vunpack.c.l.b16 %v1057
        %v2525 = vunpack.c.h.b16 %v1057
        %v2526 = vunpack.c.l.b16 %v1058
        %v2527 = vunpack.c.h.b16 %v1058
        %v2528 = vunpack.c.l.b16 %v1059
        %v2529 = vunpack.c.h.b16 %v1059
        %v2530 = vunpack.c.l.b16 %v1060
        %v2531 = vunpack.c.h.b16 %v1060
        %v2532 = vunpack.c.l.b16 %v1061
        %v2533 = vunpack.c.h.b16 %v1061
        %v2534 = vunpack.c.l.b16 %v1062
        %v2535 = vunpack.c.h.b16 %v1062
        %v2536 = vunpack.c.l.b16 %v1063
        %v2537 = vunpack.c.h.b16 %v1063
        %v2538 = vunpack.c.l.b16 %v1064
        %v2539 = vunpack.c.h.b16 %v1064
        %v2540 = vunpack.c.l.b16 %v1065
        %v2541 = vunpack.c.h.b16 %v1065
        %v2542 = vunpack.c.l.b16 %v1066
        %v2543 = vunpack.c.h.b16 %v1066
        %v2544 = vunpack.c.l.b16 %v1067
        %v2545 = vunpack.c.h.b16 %v1067
        %v2546 = vunpack.c.l.b16 %v1068
        %v2547 = vunpack.c.h.b16 %v1068
        %v2548 = vunpack.c.l.b16 %v1069
        %v2549 = vunpack.c.h.b16 %v1069
        %v2550 = vunpack.c.l.b16 %v1070
        %v2551 = vunpack.c.h.b16 %v1070
        %v2552 = vunpack.c.l.b16 %v1071
        %v2553 = vunpack.c.h.b16 %v1071
        %v2554 = vunpack.c.l.b16 %v1072
        %v2555 = vunpack.c.h.b16 %v1072
        %v2556 = vunpack.c.l.b16 %v1073
        %v2557 = vunpack.c.h.b16 %v1073
        %v2558 = vunpack.c.l.b16 %v1074
        %v2559 = vunpack.c.h.b16 %v1074
        %v2560 = vunpack.c.l.b16 %v1075
        %v2561 = vunpack.c.h.b16 %v1075
        %v2562 = vunpack.c.l.b16 %v1076
        %v2563 = vunpack.c.h.b16 %v1076
        %v2564 = vunpack.c.l.b16 %v1077
        %v2565 = vunpack.c.h.b16 %v1077
        %v2566 = vunpack.c.l.b16 %v1078
        %v2567 = vunpack.c.h.b16 %v1078
        %v2568 = vunpack.c.l.b16 %v1079
        %v2569 = vunpack.c.h.b16 %v1079
        %v2570 = vunpack.c.l.b16 %v1080
        %v2571 = vunpack.c.h.b16 %v1080
        %v2572 = vunpack.c.l.b16 %v1081
        %v2573 = vunpack.c.h.b16 %v1081
        %v2574 = vunpack.c.l.b16 %v1082
        %v2575 = vunpack.c.h.b16 %v1082
        %v2576 = vunpack.c.l.b16 %v1083
        %v2577 = vunpack.c.h.b16 %v1083
        %v2578 = vunpack.c.l.b16 %v1084
        %v2579 = vunpack.c.h.b16 %v1084
        %v2580 = vunpack.c.l.b16 %v1085
        %v2581 = vunpack.c.h.b16 %v1085
        %v2582 = vunpack.c.l.b16 %v1086
        %v2583 = vunpack.c.h.b16 %v1086
        %v2584 = vunpack.c.l.b16 %v1087
        %v2585 = vunpack.c.h.b16 %v1087
        %v2586 = vunpack.c.l.b16 %v1088
        %v2587 = vunpack.c.h.b16 %v1088
        %v2588 = vunpack.c.l.b16 %v1089
        %v2589 = vunpack.c.h.b16 %v1089
        %v2590 = vunpack.c.l.b16 %v1090
        %v2591 = vunpack.c.h.b16 %v1090
        %v2592 = vunpack.c.l.b16 %v1091
        %v2593 = vunpack.c.h.b16 %v1091
        %v2594 = vunpack.c.l.b16 %v1092
        %v2595 = vunpack.c.h.b16 %v1092
        %v2596 = vunpack.c.l.b16 %v1093
        %v2597 = vunpack.c.h.b16 %v1093
        %v2598 = vunpack.c.l.b16 %v1094
        %v2599 = vunpack.c.h.b16 %v1094
        %v2600 = vunpack.c.l.b16 %v1095
        %v2601 = vunpack.c.h.b16 %v1095
        %v2602 = vunpack.c.l.b16 %v1096
        %v2603 = vunpack.c.h.b16 %v1096
        %v2604 = vunpack.c.l.b16 %v1097
        %v2605 = vunpack.c.h.b16 %v1097
        %v2606 = vunpack.c.l.b16 %v1098
        %v2607 = vunpack.c.h.b16 %v1098
        %v2608 = vunpack.c.l.b16 %v1099
        %v2609 = vunpack.c.h.b16 %v1099
        %v2610 = vunpack.c.l.b16 %v1100
        %v2611 = vunpack.c.h.b16 %v1100
        %v2612 = vunpack.c.l.b16 %v1101
        %v2613 = vunpack.c.h.b16 %v1101
        %v2614 = vunpack.c.l.b16 %v1102
        %v2615 = vunpack.c.h.b16 %v1102
        %v2616 = vunpack.c.l.b16 %v1103
        %v2617 = vunpack.c.h.b16 %v1103
        %v2618 = vunpack.c.l.b16 %v1104
        %v2619 = vunpack.c.h.b16 %v1104
        %v2620 = vunpack.c.l.b16 %v1105
        %v2621 = vunpack.c.h.b16 %v1105
        %v2622 = vunpack.c.l.b16 %v1106
        %v2623 = vunpack.c.h.b16 %v1106
        %v2624 = vunpack.c.l.b16 %v1107
        %v2625 = vunpack.c.h.b16 %v1107
        %v2626 = vunpack.c.l.b16 %v1108
        %v2627 = vunpack.c.h.b16 %v1108
        %v2628 = vunpack.c.l.b16 %v1109
        %v2629 = vunpack.c.h.b16 %v1109
        %v2630 = vunpack.c.l.b16 %v1110
        %v2631 = vunpack.c.h.b16 %v1110
        %v2632 = vunpack.c.l.b16 %v1111
        %v2633 = vunpack.c.h.b16 %v1111
        %v2634 = vunpack.c.l.b16 %v1112
        %v2635 = vunpack.c.h.b16 %v1112
        %v2636 = vunpack.c.l.b16 %v1113
        %v2637 = vunpack.c.h.b16 %v1113
        %v2638 = vunpack.c.l.b16 %v1114
        %v2639 = vunpack.c.h.b16 %v1114
        %v2640 = vunpack.c.l.b16 %v1115
        %v2641 = vunpack.c.h.b16 %v1115
        %v2642 = vunpack.c.l.b16 %v1116
        %v2643 = vunpack.c.h.b16 %v1116
        %v2644 = vunpack.c.l.b16 %v1117
        %v2645 = vunpack.c.h.b16 %v1117
        %v2646 = vunpack.c.l.b16 %v1118
        %v2647 = vunpack.c.h.b16 %v1118
        %v2648 = vunpack.c.l.b16 %v1119
        %v2649 = vunpack.c.h.b16 %v1119
        %v2650 = vunpack.c.l.b16 %v1120
        %v2651 = vunpack.c.h.b16 %v1120
        %v2652 = vunpack.c.l.b16 %v1121
        %v2653 = vunpack.c.h.b16 %v1121
        %v2654 = vunpack.c.l.b16 %v1122
        %v2655 = vunpack.c.h.b16 %v1122
        %v2656 = vunpack.c.l.b16 %v1123
        %v2657 = vunpack.c.h.b16 %v1123
        %v2658 = vunpack.c.l.b16 %v1124
        %v2659 = vunpack.c.h.b16 %v1124
        %v2660 = vunpack.c.l.b16 %v1125
        %v2661 = vunpack.c.h.b16 %v1125
        %v2662 = vunpack.c.l.b16 %v1126
        %v2663 = vunpack.c.h.b16 %v1126
        %v2664 = vpack.c.b16 %v1644, %v1640
        %v2665 = vpack.c.b16 %v1645, %v1641
        %v2666 = vpack.c.b16 %v1646, %v1642
        %v2667 = vpack.c.b16 %v1647, %v1643
        %v2668 = vpack.c.b16 %v1652, %v1648
        %v2669 = vpack.c.b16 %v1653, %v1649
        %v2670 = vpack.c.b16 %v1654, %v1650
        %v2671 = vpack.c.b16 %v1655, %v1651
        %v2672 = vpack.c.b16 %v1660, %v1656
        %v2673 = vpack.c.b16 %v1661, %v1657
        %v2674 = vpack.c.b16 %v1662, %v1658
        %v2675 = vpack.c.b16 %v1663, %v1659
        %v2676 = vpack.c.b16 %v1668, %v1664
        %v2677 = vpack.c.b16 %v1669, %v1665
        %v2678 = vpack.c.b16 %v1670, %v1666
        %v2679 = vpack.c.b16 %v1671, %v1667
        %v2680 = vpack.c.b16 %v1676, %v1672
        %v2681 = vpack.c.b16 %v1677, %v1673
        %v2682 = vpack.c.b16 %v1678, %v1674
        %v2683 = vpack.c.b16 %v1679, %v1675
        %v2684 = vpack.c.b16 %v1684, %v1680
        %v2685 = vpack.c.b16 %v1685, %v1681
        %v2686 = vpack.c.b16 %v1686, %v1682
        %v2687 = vpack.c.b16 %v1687, %v1683
        %v2688 = vpack.c.b16 %v1692, %v1688
        %v2689 = vpack.c.b16 %v1693, %v1689
        %v2690 = vpack.c.b16 %v1694, %v1690
        %v2691 = vpack.c.b16 %v1695, %v1691
        %v2692 = vpack.c.b16 %v1700, %v1696
        %v2693 = vpack.c.b16 %v1701, %v1697
        %v2694 = vpack.c.b16 %v1702, %v1698
        %v2695 = vpack.c.b16 %v1703, %v1699
        %v2696 = vpack.c.b16 %v1708, %v1704
        %v2697 = vpack.c.b16 %v1709, %v1705
        %v2698 = vpack.c.b16 %v1710, %v1706
        %v2699 = vpack.c.b16 %v1711, %v1707
        %v2700 = vpack.c.b16 %v1716, %v1712
        %v2701 = vpack.c.b16 %v1717, %v1713
        %v2702 = vpack.c.b16 %v1718, %v1714
        %v2703 = vpack.c.b16 %v1719, %v1715
        %v2704 = vpack.c.b16 %v1724, %v1720
        %v2705 = vpack.c.b16 %v1725, %v1721
        %v2706 = vpack.c.b16 %v1726, %v1722
        %v2707 = vpack.c.b16 %v1727, %v1723
        %v2708 = vpack.c.b16 %v1732, %v1728
        %v2709 = vpack.c.b16 %v1733, %v1729
        %v2710 = vpack.c.b16 %v1734, %v1730
        %v2711 = vpack.c.b16 %v1735, %v1731
        %v2712 = vpack.c.b16 %v1740, %v1736
        %v2713 = vpack.c.b16 %v1741, %v1737
        %v2714 = vpack.c.b16 %v1742, %v1738
        %v2715 = vpack.c.b16 %v1743, %v1739
        %v2716 = vpack.c.b16 %v1748, %v1744
        %v2717 = vpack.c.b16 %v1749, %v1745
        %v2718 = vpack.c.b16 %v1750, %v1746
        %v2719 = vpack.c.b16 %v1751, %v1747
        %v2720 = vpack.c.b16 %v1756, %v1752
        %v2721 = vpack.c.b16 %v1757, %v1753
        %v2722 = vpack.c.b16 %v1758, %v1754
        %v2723 = vpack.c.b16 %v1759, %v1755
        %v2724 = vpack.c.b16 %v1764, %v1760
        %v2725 = vpack.c.b16 %v1765, %v1761
        %v2726 = vpack.c.b16 %v1766, %v1762
        %v2727 = vpack.c.b16 %v1767, %v1763
        %v2728 = vpack.c.b16 %v1772, %v1768
        %v2729 = vpack.c.b16 %v1773, %v1769
        %v2730 = vpack.c.b16 %v1774, %v1770
        %v2731 = vpack.c.b16 %v1775, %v1771
        %v2732 = vpack.c.b16 %v1780, %v1776
        %v2733 = vpack.c.b16 %v1781, %v1777
        %v2734 = vpack.c.b16 %v1782, %v1778
        %v2735 = vpack.c.b16 %v1783, %v1779
        %v2736 = vpack.c.b16 %v1788, %v1784
        %v2737 = vpack.c.b16 %v1789, %v1785
        %v2738 = vpack.c.b16 %v1790, %v1786
        %v2739 = vpack.c.b16 %v1791, %v1787
        %v2740 = vpack.c.b16 %v1796, %v1792
        %v2741 = vpack.c.b16 %v1797, %v1793
        %v2742 = vpack.c.b16 %v1798, %v1794
        %v2743 = vpack.c.b16 %v1799, %v1795
        %v2744 = vpack.c.b16 %v1804, %v1800
        %v2745 = vpack.c.b16 %v1805, %v1801
        %v2746 = vpack.c.b16 %v1806, %v1802
        %v2747 = vpack.c.b16 %v1807, %v1803
        %v2748 = vpack.c.b16 %v1812, %v1808
        %v2749 = vpack.c.b16 %v1813, %v1809
        %v2750 = vpack.c.b16 %v1814, %v1810
        %v2751 = vpack.c.b16 %v1815, %v1811
        %v2752 = vpack.c.b16 %v1820, %v1816
        %v2753 = vpack.c.b16 %v1821, %v1817
        %v2754 = vpack.c.b16 %v1822, %v1818
        %v2755 = vpack.c.b16 %v1823, %v1819
        %v2756 = vpack.c.b16 %v1828, %v1824
        %v2757 = vpack.c.b16 %v1829, %v1825
        %v2758 = vpack.c.b16 %v1830, %v1826
        %v2759 = vpack.c.b16 %v1831, %v1827
        %v2760 = vpack.c.b16 %v1836, %v1832
        %v2761 = vpack.c.b16 %v1837, %v1833
        %v2762 = vpack.c.b16 %v1838, %v1834
        %v2763 = vpack.c.b16 %v1839, %v1835
        %v2764 = vpack.c.b16 %v1844, %v1840
        %v2765 = vpack.c.b16 %v1845, %v1841
        %v2766 = vpack.c.b16 %v1846, %v1842
        %v2767 = vpack.c.b16 %v1847, %v1843
        %v2768 = vpack.c.b16 %v1852, %v1848
        %v2769 = vpack.c.b16 %v1853, %v1849
        %v2770 = vpack.c.b16 %v1854, %v1850
        %v2771 = vpack.c.b16 %v1855, %v1851
        %v2772 = vpack.c.b16 %v1860, %v1856
        %v2773 = vpack.c.b16 %v1861, %v1857
        %v2774 = vpack.c.b16 %v1862, %v1858
        %v2775 = vpack.c.b16 %v1863, %v1859
        %v2776 = vpack.c.b16 %v1868, %v1864
        %v2777 = vpack.c.b16 %v1869, %v1865
        %v2778 = vpack.c.b16 %v1870, %v1866
        %v2779 = vpack.c.b16 %v1871, %v1867
        %v2780 = vpack.c.b16 %v1876, %v1872
        %v2781 = vpack.c.b16 %v1877, %v1873
        %v2782 = vpack.c.b16 %v1878, %v1874
        %v2783 = vpack.c.b16 %v1879, %v1875
        %v2784 = vpack.c.b16 %v1884, %v1880
        %v2785 = vpack.c.b16 %v1885, %v1881
        %v2786 = vpack.c.b16 %v1886, %v1882
        %v2787 = vpack.c.b16 %v1887, %v1883
        %v2788 = vpack.c.b16 %v1892, %v1888
        %v2789 = vpack.c.b16 %v1893, %v1889
        %v2790 = vpack.c.b16 %v1894, %v1890
        %v2791 = vpack.c.b16 %v1895, %v1891
        %v2792 = vpack.c.b16 %v1900, %v1896
        %v2793 = vpack.c.b16 %v1901, %v1897
        %v2794 = vpack.c.b16 %v1902, %v1898
        %v2795 = vpack.c.b16 %v1903, %v1899
        %v2796 = vpack.c.b16 %v1908, %v1904
        %v2797 = vpack.c.b16 %v1909, %v1905
        %v2798 = vpack.c.b16 %v1910, %v1906
        %v2799 = vpack.c.b16 %v1911, %v1907
        %v2800 = vpack.c.b16 %v1916, %v1912
        %v2801 = vpack.c.b16 %v1917, %v1913
        %v2802 = vpack.c.b16 %v1918, %v1914
        %v2803 = vpack.c.b16 %v1919, %v1915
        %v2804 = vpack.c.b16 %v1924, %v1920
        %v2805 = vpack.c.b16 %v1925, %v1921
        %v2806 = vpack.c.b16 %v1926, %v1922
        %v2807 = vpack.c.b16 %v1927, %v1923
        %v2808 = vpack.c.b16 %v1932, %v1928
        %v2809 = vpack.c.b16 %v1933, %v1929
        %v2810 = vpack.c.b16 %v1934, %v1930
        %v2811 = vpack.c.b16 %v1935, %v1931
        %v2812 = vpack.c.b16 %v1940, %v1936
        %v2813 = vpack.c.b16 %v1941, %v1937
        %v2814 = vpack.c.b16 %v1942, %v1938
        %v2815 = vpack.c.b16 %v1943, %v1939
        %v2816 = vpack.c.b16 %v1948, %v1944
        %v2817 = vpack.c.b16 %v1949, %v1945
        %v2818 = vpack.c.b16 %v1950, %v1946
        %v2819 = vpack.c.b16 %v1951, %v1947
        %v2820 = vpack.c.b16 %v1956, %v1952
        %v2821 = vpack.c.b16 %v1957, %v1953
        %v2822 = vpack.c.b16 %v1958, %v1954
        %v2823 = vpack.c.b16 %v1959, %v1955
        %v2824 = vpack.c.b16 %v1964, %v1960
        %v2825 = vpack.c.b16 %v1965, %v1961
        %v2826 = vpack.c.b16 %v1966, %v1962
        %v2827 = vpack.c.b16 %v1967, %v1963
        %v2828 = vpack.c.b16 %v1972, %v1968
        %v2829 = vpack.c.b16 %v1973, %v1969
        %v2830 = vpack.c.b16 %v1974, %v1970
        %v2831 = vpack.c.b16 %v1975, %v1971
        %v2832 = vpack.c.b16 %v1980, %v1976
        %v2833 = vpack.c.b16 %v1981, %v1977
        %v2834 = vpack.c.b16 %v1982, %v1978
        %v2835 = vpack.c.b16 %v1983, %v1979
        %v2836 = vpack.c.b16 %v1988, %v1984
        %v2837 = vpack.c.b16 %v1989, %v1985
        %v2838 = vpack.c.b16 %v1990, %v1986
        %v2839 = vpack.c.b16 %v1991, %v1987
        %v2840 = vpack.c.b16 %v1996, %v1992
        %v2841 = vpack.c.b16 %v1997, %v1993
        %v2842 = vpack.c.b16 %v1998, %v1994
        %v2843 = vpack.c.b16 %v1999, %v1995
        %v2844 = vpack.c.b16 %v2004, %v2000
        %v2845 = vpack.c.b16 %v2005, %v2001
        %v2846 = vpack.c.b16 %v2006, %v2002
        %v2847 = vpack.c.b16 %v2007, %v2003
        %v2848 = vpack.c.b16 %v2012, %v2008
        %v2849 = vpack.c.b16 %v2013, %v2009
        %v2850 = vpack.c.b16 %v2014, %v2010
        %v2851 = vpack.c.b16 %v2015, %v2011
        %v2852 = vpack.c.b16 %v2020, %v2016
        %v2853 = vpack.c.b16 %v2021, %v2017
        %v2854 = vpack.c.b16 %v2022, %v2018
        %v2855 = vpack.c.b16 %v2023, %v2019
        %v2856 = vpack.c.b16 %v2028, %v2024
        %v2857 = vpack.c.b16 %v2029, %v2025
        %v2858 = vpack.c.b16 %v2030, %v2026
        %v2859 = vpack.c.b16 %v2031, %v2027
        %v2860 = vpack.c.b16 %v2036, %v2032
        %v2861 = vpack.c.b16 %v2037, %v2033
        %v2862 = vpack.c.b16 %v2038, %v2034
        %v2863 = vpack.c.b16 %v2039, %v2035
        %v2864 = vpack.c.b16 %v2044, %v2040
        %v2865 = vpack.c.b16 %v2045, %v2041
        %v2866 = vpack.c.b16 %v2046, %v2042
        %v2867 = vpack.c.b16 %v2047, %v2043
        %v2868 = vpack.c.b16 %v2052, %v2048
        %v2869 = vpack.c.b16 %v2053, %v2049
        %v2870 = vpack.c.b16 %v2054, %v2050
        %v2871 = vpack.c.b16 %v2055, %v2051
        %v2872 = vpack.c.b16 %v2060, %v2056
        %v2873 = vpack.c.b16 %v2061, %v2057
        %v2874 = vpack.c.b16 %v2062, %v2058
        %v2875 = vpack.c.b16 %v2063, %v2059
        %v2876 = vpack.c.b16 %v2068, %v2064
        %v2877 = vpack.c.b16 %v2069, %v2065
        %v2878 = vpack.c.b16 %v2070, %v2066
        %v2879 = vpack.c.b16 %v2071, %v2067
        %v2880 = vpack.c.b16 %v2076, %v2072
        %v2881 = vpack.c.b16 %v2077, %v2073
        %v2882 = vpack.c.b16 %v2078, %v2074
        %v2883 = vpack.c.b16 %v2079, %v2075
        %v2884 = vpack.c.b16 %v2084, %v2080
        %v2885 = vpack.c.b16 %v2085, %v2081
        %v2886 = vpack.c.b16 %v2086, %v2082
        %v2887 = vpack.c.b16 %v2087, %v2083
        %v2888 = vpack.c.b16 %v2092, %v2088
        %v2889 = vpack.c.b16 %v2093, %v2089
        %v2890 = vpack.c.b16 %v2094, %v2090
        %v2891 = vpack.c.b16 %v2095, %v2091
        %v2892 = vpack.c.b16 %v2100, %v2096
        %v2893 = vpack.c.b16 %v2101, %v2097
        %v2894 = vpack.c.b16 %v2102, %v2098
        %v2895 = vpack.c.b16 %v2103, %v2099
        %v2896 = vpack.c.b16 %v2108, %v2104
        %v2897 = vpack.c.b16 %v2109, %v2105
        %v2898 = vpack.c.b16 %v2110, %v2106
        %v2899 = vpack.c.b16 %v2111, %v2107
        %v2900 = vpack.c.b16 %v2116, %v2112
        %v2901 = vpack.c.b16 %v2117, %v2113
        %v2902 = vpack.c.b16 %v2118, %v2114
        %v2903 = vpack.c.b16 %v2119, %v2115
        %v2904 = vpack.c.b16 %v2124, %v2120
        %v2905 = vpack.c.b16 %v2125, %v2121
        %v2906 = vpack.c.b16 %v2126, %v2122
        %v2907 = vpack.c.b16 %v2127, %v2123
        %v2908 = vpack.c.b16 %v2132, %v2128
        %v2909 = vpack.c.b16 %v2133, %v2129
        %v2910 = vpack.c.b16 %v2134, %v2130
        %v2911 = vpack.c.b16 %v2135, %v2131
        %v2912 = vpack.c.b16 %v2140, %v2136
        %v2913 = vpack.c.b16 %v2141, %v2137
        %v2914 = vpack.c.b16 %v2142, %v2138
        %v2915 = vpack.c.b16 %v2143, %v2139
        %v2916 = vpack.c.b16 %v2148, %v2144
        %v2917 = vpack.c.b16 %v2149, %v2145
        %v2918 = vpack.c.b16 %v2150, %v2146
        %v2919 = vpack.c.b16 %v2151, %v2147
        %v2920 = vpack.c.b16 %v2156, %v2152
        %v2921 = vpack.c.b16 %v2157, %v2153
        %v2922 = vpack.c.b16 %v2158, %v2154
        %v2923 = vpack.c.b16 %v2159, %v2155
        %v2924 = vpack.c.b16 %v2164, %v2160
        %v2925 = vpack.c.b16 %v2165, %v2161
        %v2926 = vpack.c.b16 %v2166, %v2162
        %v2927 = vpack.c.b16 %v2167, %v2163
        %v2928 = vpack.c.b16 %v2172, %v2168
        %v2929 = vpack.c.b16 %v2173, %v2169
        %v2930 = vpack.c.b16 %v2174, %v2170
        %v2931 = vpack.c.b16 %v2175, %v2171
        %v2932 = vpack.c.b16 %v2180, %v2176
        %v2933 = vpack.c.b16 %v2181, %v2177
        %v2934 = vpack.c.b16 %v2182, %v2178
        %v2935 = vpack.c.b16 %v2183, %v2179
        %v2936 = vpack.c.b16 %v2188, %v2184
        %v2937 = vpack.c.b16 %v2189, %v2185
        %v2938 = vpack.c.b16 %v2190, %v2186
        %v2939 = vpack.c.b16 %v2191, %v2187
        %v2940 = vpack.c.b16 %v2196, %v2192
        %v2941 = vpack.c.b16 %v2197, %v2193
        %v2942 = vpack.c.b16 %v2198, %v2194
        %v2943 = vpack.c.b16 %v2199, %v2195
        %v2944 = vpack.c.b16 %v2204, %v2200
        %v2945 = vpack.c.b16 %v2205, %v2201
        %v2946 = vpack.c.b16 %v2206, %v2202
        %v2947 = vpack.c.b16 %v2207, %v2203
        %v2948 = vpack.c.b16 %v2212, %v2208
        %v2949 = vpack.c.b16 %v2213, %v2209
        %v2950 = vpack.c.b16 %v2214, %v2210
        %v2951 = vpack.c.b16 %v2215, %v2211
        %v2952 = vpack.c.b16 %v2220, %v2216
        %v2953 = vpack.c.b16 %v2221, %v2217
        %v2954 = vpack.c.b16 %v2222, %v2218
        %v2955 = vpack.c.b16 %v2223, %v2219
        %v2956 = vpack.c.b16 %v2228, %v2224
        %v2957 = vpack.c.b16 %v2229, %v2225
        %v2958 = vpack.c.b16 %v2230, %v2226
        %v2959 = vpack.c.b16 %v2231, %v2227
        %v2960 = vpack.c.b16 %v2236, %v2232
        %v2961 = vpack.c.b16 %v2237, %v2233
        %v2962 = vpack.c.b16 %v2238, %v2234
        %v2963 = vpack.c.b16 %v2239, %v2235
        %v2964 = vpack.c.b16 %v2244, %v2240
        %v2965 = vpack.c.b16 %v2245, %v2241
        %v2966 = vpack.c.b16 %v2246, %v2242
        %v2967 = vpack.c.b16 %v2247, %v2243
        %v2968 = vpack.c.b16 %v2252, %v2248
        %v2969 = vpack.c.b16 %v2253, %v2249
        %v2970 = vpack.c.b16 %v2254, %v2250
        %v2971 = vpack.c.b16 %v2255, %v2251
        %v2972 = vpack.c.b16 %v2260, %v2256
        %v2973 = vpack.c.b16 %v2261, %v2257
        %v2974 = vpack.c.b16 %v2262, %v2258
        %v2975 = vpack.c.b16 %v2263, %v2259
        %v2976 = vpack.c.b16 %v2268, %v2264
        %v2977 = vpack.c.b16 %v2269, %v2265
        %v2978 = vpack.c.b16 %v2270, %v2266
        %v2979 = vpack.c.b16 %v2271, %v2267
        %v2980 = vpack.c.b16 %v2276, %v2272
        %v2981 = vpack.c.b16 %v2277, %v2273
        %v2982 = vpack.c.b16 %v2278, %v2274
        %v2983 = vpack.c.b16 %v2279, %v2275
        %v2984 = vpack.c.b16 %v2284, %v2280
        %v2985 = vpack.c.b16 %v2285, %v2281
        %v2986 = vpack.c.b16 %v2286, %v2282
        %v2987 = vpack.c.b16 %v2287, %v2283
        %v2988 = vpack.c.b16 %v2292, %v2288
        %v2989 = vpack.c.b16 %v2293, %v2289
        %v2990 = vpack.c.b16 %v2294, %v2290
        %v2991 = vpack.c.b16 %v2295, %v2291
        %v2992 = vpack.c.b16 %v2300, %v2296
        %v2993 = vpack.c.b16 %v2301, %v2297
        %v2994 = vpack.c.b16 %v2302, %v2298
        %v2995 = vpack.c.b16 %v2303, %v2299
        %v2996 = vpack.c.b16 %v2308, %v2304
        %v2997 = vpack.c.b16 %v2309, %v2305
        %v2998 = vpack.c.b16 %v2310, %v2306
        %v2999 = vpack.c.b16 %v2311, %v2307
        %v3000 = vpack.c.b16 %v2316, %v2312
        %v3001 = vpack.c.b16 %v2317, %v2313
        %v3002 = vpack.c.b16 %v2318, %v2314
        %v3003 = vpack.c.b16 %v2319, %v2315
        %v3004 = vpack.c.b16 %v2324, %v2320
        %v3005 = vpack.c.b16 %v2325, %v2321
        %v3006 = vpack.c.b16 %v2326, %v2322
        %v3007 = vpack.c.b16 %v2327, %v2323
        %v3008 = vpack.c.b16 %v2332, %v2328
        %v3009 = vpack.c.b16 %v2333, %v2329
        %v3010 = vpack.c.b16 %v2334, %v2330
        %v3011 = vpack.c.b16 %v2335, %v2331
        %v3012 = vpack.c.b16 %v2340, %v2336
        %v3013 = vpack.c.b16 %v2341, %v2337
        %v3014 = vpack.c.b16 %v2342, %v2338
        %v3015 = vpack.c.b16 %v2343, %v2339
        %v3016 = vpack.c.b16 %v2348, %v2344
        %v3017 = vpack.c.b16 %v2349, %v2345
        %v3018 = vpack.c.b16 %v2350, %v2346
        %v3019 = vpack.c.b16 %v2351, %v2347
        %v3020 = vpack.c.b16 %v2356, %v2352
        %v3021 = vpack.c.b16 %v2357, %v2353
        %v3022 = vpack.c.b16 %v2358, %v2354
        %v3023 = vpack.c.b16 %v2359, %v2355
        %v3024 = vpack.c.b16 %v2364, %v2360
        %v3025 = vpack.c.b16 %v2365, %v2361
        %v3026 = vpack.c.b16 %v2366, %v2362
        %v3027 = vpack.c.b16 %v2367, %v2363
        %v3028 = vpack.c.b16 %v2372, %v2368
        %v3029 = vpack.c.b16 %v2373, %v2369
        %v3030 = vpack.c.b16 %v2374, %v2370
        %v3031 = vpack.c.b16 %v2375, %v2371
        %v3032 = vpack.c.b16 %v2380, %v2376
        %v3033 = vpack.c.b16 %v2381, %v2377
        %v3034 = vpack.c.b16 %v2382, %v2378
        %v3035 = vpack.c.b16 %v2383, %v2379
        %v3036 = vpack.c.b16 %v2388, %v2384
        %v3037 = vpack.c.b16 %v2389, %v2385
        %v3038 = vpack.c.b16 %v2390, %v2386
        %v3039 = vpack.c.b16 %v2391, %v2387
        %v3040 = vpack.c.b16 %v2396, %v2392
        %v3041 = vpack.c.b16 %v2397, %v2393
        %v3042 = vpack.c.b16 %v2398, %v2394
        %v3043 = vpack.c.b16 %v2399, %v2395
        %v3044 = vpack.c.b16 %v2404, %v2400
        %v3045 = vpack.c.b16 %v2405, %v2401
        %v3046 = vpack.c.b16 %v2406, %v2402
        %v3047 = vpack.c.b16 %v2407, %v2403
        %v3048 = vpack.c.b16 %v2412, %v2408
        %v3049 = vpack.c.b16 %v2413, %v2409
        %v3050 = vpack.c.b16 %v2414, %v2410
        %v3051 = vpack.c.b16 %v2415, %v2411
        %v3052 = vpack.c.b16 %v2420, %v2416
        %v3053 = vpack.c.b16 %v2421, %v2417
        %v3054 = vpack.c.b16 %v2422, %v2418
        %v3055 = vpack.c.b16 %v2423, %v2419
        %v3056 = vpack.c.b16 %v2428, %v2424
        %v3057 = vpack.c.b16 %v2429, %v2425
        %v3058 = vpack.c.b16 %v2430, %v2426
        %v3059 = vpack.c.b16 %v2431, %v2427
        %v3060 = vpack.c.b16 %v2436, %v2432
        %v3061 = vpack.c.b16 %v2437, %v2433
        %v3062 = vpack.c.b16 %v2438, %v2434
        %v3063 = vpack.c.b16 %v2439, %v2435
        %v3064 = vpack.c.b16 %v2444, %v2440
        %v3065 = vpack.c.b16 %v2445, %v2441
        %v3066 = vpack.c.b16 %v2446, %v2442
        %v3067 = vpack.c.b16 %v2447, %v2443
        %v3068 = vpack.c.b16 %v2452, %v2448
        %v3069 = vpack.c.b16 %v2453, %v2449
        %v3070 = vpack.c.b16 %v2454, %v2450
        %v3071 = vpack.c.b16 %v2455, %v2451
        %v3072 = vpack.c.b16 %v2460, %v2456
        %v3073 = vpack.c.b16 %v2461, %v2457
        %v3074 = vpack.c.b16 %v2462, %v2458
        %v3075 = vpack.c.b16 %v2463, %v2459
        %v3076 = vpack.c.b16 %v2468, %v2464
        %v3077 = vpack.c.b16 %v2469, %v2465
        %v3078 = vpack.c.b16 %v2470, %v2466
        %v3079 = vpack.c.b16 %v2471, %v2467
        %v3080 = vpack.c.b16 %v2476, %v2472
        %v3081 = vpack.c.b16 %v2477, %v2473
        %v3082 = vpack.c.b16 %v2478, %v2474
        %v3083 = vpack.c.b16 %v2479, %v2475
        %v3084 = vpack.c.b16 %v2484, %v2480
        %v3085 = vpack.c.b16 %v2485, %v2481
        %v3086 = vpack.c.b16 %v2486, %v2482
        %v3087 = vpack.c.b16 %v2487, %v2483
        %v3088 = vpack.c.b16 %v2492, %v2488
        %v3089 = vpack.c.b16 %v2493, %v2489
        %v3090 = vpack.c.b16 %v2494, %v2490
        %v3091 = vpack.c.b16 %v2495, %v2491
        %v3092 = vpack.c.b16 %v2500, %v2496
        %v3093 = vpack.c.b16 %v2501, %v2497
        %v3094 = vpack.c.b16 %v2502, %v2498
        %v3095 = vpack.c.b16 %v2503, %v2499
        %v3096 = vpack.c.b16 %v2508, %v2504
        %v3097 = vpack.c.b16 %v2509, %v2505
        %v3098 = vpack.c.b16 %v2510, %v2506
        %v3099 = vpack.c.b16 %v2511, %v2507
        %v3100 = vpack.c.b16 %v2516, %v2512
        %v3101 = vpack.c.b16 %v2517, %v2513
        %v3102 = vpack.c.b16 %v2518, %v2514
        %v3103 = vpack.c.b16 %v2519, %v2515
        %v3104 = vpack.c.b16 %v2524, %v2520
        %v3105 = vpack.c.b16 %v2525, %v2521
        %v3106 = vpack.c.b16 %v2526, %v2522
        %v3107 = vpack.c.b16 %v2527, %v2523
        %v3108 = vpack.c.b16 %v2532, %v2528
        %v3109 = vpack.c.b16 %v2533, %v2529
        %v3110 = vpack.c.b16 %v2534, %v2530
        %v3111 = vpack.c.b16 %v2535, %v2531
        %v3112 = vpack.c.b16 %v2540, %v2536
        %v3113 = vpack.c.b16 %v2541, %v2537
        %v3114 = vpack.c.b16 %v2542, %v2538
        %v3115 = vpack.c.b16 %v2543, %v2539
        %v3116 = vpack.c.b16 %v2548, %v2544
        %v3117 = vpack.c.b16 %v2549, %v2545
        %v3118 = vpack.c.b16 %v2550, %v2546
        %v3119 = vpack.c.b16 %v2551, %v2547
        %v3120 = vpack.c.b16 %v2556, %v2552
        %v3121 = vpack.c.b16 %v2557, %v2553
        %v3122 = vpack.c.b16 %v2558, %v2554
        %v3123 = vpack.c.b16 %v2559, %v2555
        %v3124 = vpack.c.b16 %v2564, %v2560
        %v3125 = vpack.c.b16 %v2565, %v2561
        %v3126 = vpack.c.b16 %v2566, %v2562
        %v3127 = vpack.c.b16 %v2567, %v2563
        %v3128 = vpack.c.b16 %v2572, %v2568
        %v3129 = vpack.c.b16 %v2573, %v2569
        %v3130 = vpack.c.b16 %v2574, %v2570
        %v3131 = vpack.c.b16 %v2575, %v2571
        %v3132 = vpack.c.b16 %v2580, %v2576
        %v3133 = vpack.c.b16 %v2581, %v2577
        %v3134 = vpack.c.b16 %v2582, %v2578
        %v3135 = vpack.c.b16 %v2583, %v2579
        %v3136 = vpack.c.b16 %v2588, %v2584
        %v3137 = vpack.c.b16 %v2589, %v2585
        %v3138 = vpack.c.b16 %v2590, %v2586
        %v3139 = vpack.c.b16 %v2591, %v2587
        %v3140 = vpack.c.b16 %v2596, %v2592
        %v3141 = vpack.c.b16 %v2597, %v2593
        %v3142 = vpack.c.b16 %v2598, %v2594
        %v3143 = vpack.c.b16 %v2599, %v2595
        %v3144 = vpack.c.b16 %v2604, %v2600
        %v3145 = vpack.c.b16 %v2605, %v2601
        %v3146 = vpack.c.b16 %v2606, %v2602
        %v3147 = vpack.c.b16 %v2607, %v2603
        %v3148 = vpack.c.b16 %v2612, %v2608
        %v3149 = vpack.c.b16 %v2613, %v2609
        %v3150 = vpack.c.b16 %v2614, %v2610
        %v3151 = vpack.c.b16 %v2615, %v2611
        %v3152 = vpack.c.b16 %v2620, %v2616
        %v3153 = vpack.c.b16 %v2621, %v2617
        %v3154 = vpack.c.b16 %v2622, %v2618
        %v3155 = vpack.c.b16 %v2623, %v2619
        %v3156 = vpack.c.b16 %v2628, %v2624
        %v3157 = vpack.c.b16 %v2629, %v2625
        %v3158 = vpack.c.b16 %v2630, %v2626
        %v3159 = vpack.c.b16 %v2631, %v2627
        %v3160 = vpack.c.b16 %v2636, %v2632
        %v3161 = vpack.c.b16 %v2637, %v2633
        %v3162 = vpack.c.b16 %v2638, %v2634
        %v3163 = vpack.c.b16 %v2639, %v2635
        %v3164 = vpack.c.b16 %v2644, %v2640
        %v3165 = vpack.c.b16 %v2645, %v2641
        %v3166 = vpack.c.b16 %v2646, %v2642
        %v3167 = vpack.c.b16 %v2647, %v2643
        %v3168 = vpack.c.b16 %v2652, %v2648
        %v3169 = vpack.c.b16 %v2653, %v2649
        %v3170 = vpack.c.b16 %v2654, %v2650
        %v3171 = vpack.c.b16 %v2655, %v2651
        %v3172 = vpack.c.b16 %v2660, %v2656
        %v3173 = vpack.c.b16 %v2661, %v2657
        %v3174 = vpack.c.b16 %v2662, %v2658
        %v3175 = vpack.c.b16 %v2663, %v2659
        %v3689 = vlaneseq
        %v3690 = vshrl.u32 %v3689, 7
        %v3691 = vsub.s32 0, %v3690
        %v3692 = vrot.slane %v1127, %v3691
        %v3693 = vlaneseq
        %v3694 = vshrl.u32 %v3693, 7
        %v3695 = vsub.s32 1, %v3694
        %v3696 = vrot.slane %v1127, %v3695
        %v3697 = vlaneseq
        %v3698 = vshrl.u32 %v3697, 7
        %v3699 = vsub.s32 2, %v3698
        %v3700 = vrot.slane %v1127, %v3699
        %v3701 = vlaneseq
        %v3702 = vshrl.u32 %v3701, 7
        %v3703 = vsub.s32 3, %v3702
        %v3704 = vrot.slane %v1127, %v3703
        %3709 = vmatprep.subr.bf16.mxu0 %v2665
        %3710 = vmatpush1.bf16.msra.mxu0 %v2664
        %3711 = vmatprep.subr.bf16.mxu0 %v2669
        %3712 = vmatpush1.bf16.msra.mxu0 %v2668
        %3713 = vmatprep.subr.bf16.mxu0 %v2673
        %3714 = vmatpush1.bf16.msra.mxu0 %v2672
        %3715 = vmatprep.subr.bf16.mxu0 %v2677
        %3716 = vmatpush1.bf16.msra.mxu0 %v2676
        %3717 = vmatprep.subr.bf16.mxu0 %v2681
        %3718 = vmatpush1.bf16.msra.mxu0 %v2680
        %3719 = vmatprep.subr.bf16.mxu0 %v2685
        %3720 = vmatpush1.bf16.msra.mxu0 %v2684
        %3721 = vmatprep.subr.bf16.mxu0 %v2689
        %3722 = vmatpush1.bf16.msra.mxu0 %v2688
        %3723 = vmatprep.subr.bf16.mxu0 %v2693
        %3724 = vmatpush1.bf16.msra.mxu0 %v2692
        %3725 = vmatprep.subr.bf16.mxu0 %v2697
        %3726 = vmatpush1.bf16.msra.mxu0 %v2696
        %3727 = vmatprep.subr.bf16.mxu0 %v2701
        %3728 = vmatpush1.bf16.msra.mxu0 %v2700
        %3729 = vmatprep.subr.bf16.mxu0 %v2705
        %3730 = vmatpush1.bf16.msra.mxu0 %v2704
        %3731 = vmatprep.subr.bf16.mxu0 %v2709
        %3732 = vmatpush1.bf16.msra.mxu0 %v2708
        %3733 = vmatprep.subr.bf16.mxu0 %v2713
        %3734 = vmatpush1.bf16.msra.mxu0 %v2712
        %3735 = vmatprep.subr.bf16.mxu0 %v2717
        %3736 = vmatpush1.bf16.msra.mxu0 %v2716
        %3737 = vmatprep.subr.bf16.mxu0 %v2721
        %3738 = vmatpush1.bf16.msra.mxu0 %v2720
        %3739 = vmatprep.subr.bf16.mxu0 %v2725
        %3740 = vmatpush1.bf16.msra.mxu0 %v2724
        %3741 = vmatprep.mubr.bf16.mxu0 %v600
        %3742 = vmatmul.mubr.bf16.gmra.mrb[0].mxu0 %v599
        %v3743 = vpop.f32.mrb[0].mxu0
        %v3744 = vadd.f32 %v3692, %v3743
        %v3745 = vpop.f32.mrb[0].mxu0
        %v3746 = vadd.f32 %v3696, %v3745
        %v3747 = vpop.f32.mrb[0].mxu0
        %v3748 = vpop.f32.mrb[0].mxu0
        %3749 = vdwg.mxu0
        %3750 = vmatprep.subr.bf16.mxu0 %v2729
        %3751 = vmatpush1.bf16.msra.mxu0 %v2728
        %3752 = vmatprep.subr.bf16.mxu0 %v2733
        %3753 = vmatpush1.bf16.msra.mxu0 %v2732
        %3754 = vmatprep.subr.bf16.mxu0 %v2737
        %3755 = vmatpush1.bf16.msra.mxu0 %v2736
        %3756 = vmatprep.subr.bf16.mxu0 %v2741
        %3757 = vmatpush1.bf16.msra.mxu0 %v2740
        %3758 = vmatprep.subr.bf16.mxu0 %v2745
        %3759 = vmatpush1.bf16.msra.mxu0 %v2744
        %3760 = vmatprep.subr.bf16.mxu0 %v2749
        %3761 = vmatpush1.bf16.msra.mxu0 %v2748
        %3762 = vmatprep.subr.bf16.mxu0 %v2753
        %3763 = vmatpush1.bf16.msra.mxu0 %v2752
        %3764 = vmatprep.subr.bf16.mxu0 %v2757
        %3765 = vmatpush1.bf16.msra.mxu0 %v2756
        %3766 = vmatprep.subr.bf16.mxu0 %v2761
        %3767 = vmatpush1.bf16.msra.mxu0 %v2760
        %3768 = vmatprep.subr.bf16.mxu0 %v2765
        %3769 = vmatpush1.bf16.msra.mxu0 %v2764
        %3770 = vmatprep.subr.bf16.mxu0 %v2769
        %3771 = vmatpush1.bf16.msra.mxu0 %v2768
        %3772 = vmatprep.subr.bf16.mxu0 %v2773
        %3773 = vmatpush1.bf16.msra.mxu0 %v2772
        %3774 = vmatprep.subr.bf16.mxu0 %v2777
        %3775 = vmatpush1.bf16.msra.mxu0 %v2776
        %3776 = vmatprep.subr.bf16.mxu0 %v2781
        %3777 = vmatpush1.bf16.msra.mxu0 %v2780
        %3778 = vmatprep.subr.bf16.mxu0 %v2785
        %3779 = vmatpush1.bf16.msra.mxu0 %v2784
        %3780 = vmatprep.subr.bf16.mxu0 %v2789
        %3781 = vmatpush1.bf16.msra.mxu0 %v2788
        %3782 = vmatprep.mubr.bf16.mxu0 %v602
        %3783 = vmatmul.mubr.bf16.gmra.mrb[0].mxu0 %v601
        %v3784 = vpop.f32.mrb[0].mxu0
        %v3785 = vadd.f32 %v3744, %v3784
        %v3786 = vpop.f32.mrb[0].mxu0
        %v3787 = vadd.f32 %v3746, %v3786
        %v3788 = vpop.f32.mrb[0].mxu0
        %v3789 = vpop.f32.mrb[0].mxu0
        %3790 = vdwg.mxu0
        %3791 = vmatprep.subr.bf16.mxu0 %v2793
        %3792 = vmatpush1.bf16.msra.mxu0 %v2792
        %3793 = vmatprep.subr.bf16.mxu0 %v2797
        %3794 = vmatpush1.bf16.msra.mxu0 %v2796
        %3795 = vmatprep.subr.bf16.mxu0 %v2801
        %3796 = vmatpush1.bf16.msra.mxu0 %v2800
        %3797 = vmatprep.subr.bf16.mxu0 %v2805
        %3798 = vmatpush1.bf16.msra.mxu0 %v2804
        %3799 = vmatprep.subr.bf16.mxu0 %v2809
        %3800 = vmatpush1.bf16.msra.mxu0 %v2808
        %3801 = vmatprep.subr.bf16.mxu0 %v2813
        %3802 = vmatpush1.bf16.msra.mxu0 %v2812
        %3803 = vmatprep.subr.bf16.mxu0 %v2817
        %3804 = vmatpush1.bf16.msra.mxu0 %v2816
        %3805 = vmatprep.subr.bf16.mxu0 %v2821
        %3806 = vmatpush1.bf16.msra.mxu0 %v2820
        %3807 = vmatprep.subr.bf16.mxu0 %v2825
        %3808 = vmatpush1.bf16.msra.mxu0 %v2824
        %3809 = vmatprep.subr.bf16.mxu0 %v2829
        %3810 = vmatpush1.bf16.msra.mxu0 %v2828
        %3811 = vmatprep.subr.bf16.mxu0 %v2833
        %3812 = vmatpush1.bf16.msra.mxu0 %v2832
        %3813 = vmatprep.subr.bf16.mxu0 %v2837
        %3814 = vmatpush1.bf16.msra.mxu0 %v2836
        %3815 = vmatprep.subr.bf16.mxu0 %v2841
        %3816 = vmatpush1.bf16.msra.mxu0 %v2840
        %3817 = vmatprep.subr.bf16.mxu0 %v2845
        %3818 = vmatpush1.bf16.msra.mxu0 %v2844
        %3819 = vmatprep.subr.bf16.mxu0 %v2849
        %3820 = vmatpush1.bf16.msra.mxu0 %v2848
        %3821 = vmatprep.subr.bf16.mxu0 %v2853
        %3822 = vmatpush1.bf16.msra.mxu0 %v2852
        %3823 = vmatprep.mubr.bf16.mxu0 %v604
        %3824 = vmatmul.mubr.bf16.gmra.mrb[0].mxu0 %v603
        %v3825 = vpop.f32.mrb[0].mxu0
        %v3826 = vadd.f32 %v3785, %v3825
        %v3827 = vpop.f32.mrb[0].mxu0
        %v3828 = vadd.f32 %v3787, %v3827
        %v3829 = vpop.f32.mrb[0].mxu0
        %v3830 = vpop.f32.mrb[0].mxu0
        %3831 = vdwg.mxu0
        %3832 = vmatprep.subr.bf16.mxu0 %v2857
        %3833 = vmatpush1.bf16.msra.mxu0 %v2856
        %3834 = vmatprep.subr.bf16.mxu0 %v2861
        %3835 = vmatpush1.bf16.msra.mxu0 %v2860
        %3836 = vmatprep.subr.bf16.mxu0 %v2865
        %3837 = vmatpush1.bf16.msra.mxu0 %v2864
        %3838 = vmatprep.subr.bf16.mxu0 %v2869
        %3839 = vmatpush1.bf16.msra.mxu0 %v2868
        %3840 = vmatprep.subr.bf16.mxu0 %v2873
        %3841 = vmatpush1.bf16.msra.mxu0 %v2872
        %3842 = vmatprep.subr.bf16.mxu0 %v2877
        %3843 = vmatpush1.bf16.msra.mxu0 %v2876
        %3844 = vmatprep.subr.bf16.mxu0 %v2881
        %3845 = vmatpush1.bf16.msra.mxu0 %v2880
        %3846 = vmatprep.subr.bf16.mxu0 %v2885
        %3847 = vmatpush1.bf16.msra.mxu0 %v2884
        %3848 = vmatprep.subr.bf16.mxu0 %v2889
        %3849 = vmatpush1.bf16.msra.mxu0 %v2888
        %3850 = vmatprep.subr.bf16.mxu0 %v2893
        %3851 = vmatpush1.bf16.msra.mxu0 %v2892
        %3852 = vmatprep.subr.bf16.mxu0 %v2897
        %3853 = vmatpush1.bf16.msra.mxu0 %v2896
        %3854 = vmatprep.subr.bf16.mxu0 %v2901
        %3855 = vmatpush1.bf16.msra.mxu0 %v2900
        %3856 = vmatprep.subr.bf16.mxu0 %v2905
        %3857 = vmatpush1.bf16.msra.mxu0 %v2904
        %3858 = vmatprep.subr.bf16.mxu0 %v2909
        %3859 = vmatpush1.bf16.msra.mxu0 %v2908
        %3860 = vmatprep.subr.bf16.mxu0 %v2913
        %3861 = vmatpush1.bf16.msra.mxu0 %v2912
        %3862 = vmatprep.subr.bf16.mxu0 %v2917
        %3863 = vmatpush1.bf16.msra.mxu0 %v2916
        %3864 = vmatprep.mubr.bf16.mxu0 %v606
        %3865 = vmatmul.mubr.bf16.gmra.mrb[0].mxu0 %v605
        %v3866 = vpop.f32.mrb[0].mxu0
        %v3867 = vadd.f32 %v3826, %v3866
        %v3868 = vpop.f32.mrb[0].mxu0
        %v3869 = vadd.f32 %v3828, %v3868
        %v3870 = vpop.f32.mrb[0].mxu0
        %v3871 = vpop.f32.mrb[0].mxu0
        %3872 = vdwg.mxu0
        %3873 = vmatprep.subr.bf16.mxu0 %v2921
        %3874 = vmatpush1.bf16.msra.mxu0 %v2920
        %3875 = vmatprep.subr.bf16.mxu0 %v2925
        %3876 = vmatpush1.bf16.msra.mxu0 %v2924
        %3877 = vmatprep.subr.bf16.mxu0 %v2929
        %3878 = vmatpush1.bf16.msra.mxu0 %v2928
        %3879 = vmatprep.subr.bf16.mxu0 %v2933
        %3880 = vmatpush1.bf16.msra.mxu0 %v2932
        %3881 = vmatprep.subr.bf16.mxu0 %v2937
        %3882 = vmatpush1.bf16.msra.mxu0 %v2936
        %3883 = vmatprep.subr.bf16.mxu0 %v2941
        %3884 = vmatpush1.bf16.msra.mxu0 %v2940
        %3885 = vmatprep.subr.bf16.mxu0 %v2945
        %3886 = vmatpush1.bf16.msra.mxu0 %v2944
        %3887 = vmatprep.subr.bf16.mxu0 %v2949
        %3888 = vmatpush1.bf16.msra.mxu0 %v2948
        %3889 = vmatprep.subr.bf16.mxu0 %v2953
        %3890 = vmatpush1.bf16.msra.mxu0 %v2952
        %3891 = vmatprep.subr.bf16.mxu0 %v2957
        %3892 = vmatpush1.bf16.msra.mxu0 %v2956
        %3893 = vmatprep.subr.bf16.mxu0 %v2961
        %3894 = vmatpush1.bf16.msra.mxu0 %v2960
        %3895 = vmatprep.subr.bf16.mxu0 %v2965
        %3896 = vmatpush1.bf16.msra.mxu0 %v2964
        %3897 = vmatprep.subr.bf16.mxu0 %v2969
        %3898 = vmatpush1.bf16.msra.mxu0 %v2968
        %3899 = vmatprep.subr.bf16.mxu0 %v2973
        %3900 = vmatpush1.bf16.msra.mxu0 %v2972
        %3901 = vmatprep.subr.bf16.mxu0 %v2977
        %3902 = vmatpush1.bf16.msra.mxu0 %v2976
        %3903 = vmatprep.subr.bf16.mxu0 %v2981
        %3904 = vmatpush1.bf16.msra.mxu0 %v2980
        %3905 = vmatprep.mubr.bf16.mxu0 %v608
        %3906 = vmatmul.mubr.bf16.gmra.mrb[0].mxu0 %v607
        %v3907 = vpop.f32.mrb[0].mxu0
        %v3908 = vadd.f32 %v3867, %v3907
        %v3909 = vpop.f32.mrb[0].mxu0
        %v3910 = vadd.f32 %v3869, %v3909
        %v3911 = vpop.f32.mrb[0].mxu0
        %v3912 = vpop.f32.mrb[0].mxu0
        %3913 = vdwg.mxu0
        %3914 = vmatprep.subr.bf16.mxu0 %v2985
        %3915 = vmatpush1.bf16.msra.mxu0 %v2984
        %3916 = vmatprep.subr.bf16.mxu0 %v2989
        %3917 = vmatpush1.bf16.msra.mxu0 %v2988
        %3918 = vmatprep.subr.bf16.mxu0 %v2993
        %3919 = vmatpush1.bf16.msra.mxu0 %v2992
        %3920 = vmatprep.subr.bf16.mxu0 %v2997
        %3921 = vmatpush1.bf16.msra.mxu0 %v2996
        %3922 = vmatprep.subr.bf16.mxu0 %v3001
        %3923 = vmatpush1.bf16.msra.mxu0 %v3000
        %3924 = vmatprep.subr.bf16.mxu0 %v3005
        %3925 = vmatpush1.bf16.msra.mxu0 %v3004
        %3926 = vmatprep.subr.bf16.mxu0 %v3009
        %3927 = vmatpush1.bf16.msra.mxu0 %v3008
        %3928 = vmatprep.subr.bf16.mxu0 %v3013
        %3929 = vmatpush1.bf16.msra.mxu0 %v3012
        %3930 = vmatprep.subr.bf16.mxu0 %v3017
        %3931 = vmatpush1.bf16.msra.mxu0 %v3016
        %3932 = vmatprep.subr.bf16.mxu0 %v3021
        %3933 = vmatpush1.bf16.msra.mxu0 %v3020
        %3934 = vmatprep.subr.bf16.mxu0 %v3025
        %3935 = vmatpush1.bf16.msra.mxu0 %v3024
        %3936 = vmatprep.subr.bf16.mxu0 %v3029
        %3937 = vmatpush1.bf16.msra.mxu0 %v3028
        %3938 = vmatprep.subr.bf16.mxu0 %v3033
        %3939 = vmatpush1.bf16.msra.mxu0 %v3032
        %3940 = vmatprep.subr.bf16.mxu0 %v3037
        %3941 = vmatpush1.bf16.msra.mxu0 %v3036
        %3942 = vmatprep.subr.bf16.mxu0 %v3041
        %3943 = vmatpush1.bf16.msra.mxu0 %v3040
        %3944 = vmatprep.subr.bf16.mxu0 %v3045
        %3945 = vmatpush1.bf16.msra.mxu0 %v3044
        %3946 = vmatprep.mubr.bf16.mxu0 %v610
        %3947 = vmatmul.mubr.bf16.gmra.mrb[0].mxu0 %v609
        %v3948 = vpop.f32.mrb[0].mxu0
        %v3949 = vadd.f32 %v3908, %v3948
        %v3950 = vpop.f32.mrb[0].mxu0
        %v3951 = vadd.f32 %v3910, %v3950
        %v3952 = vpop.f32.mrb[0].mxu0
        %v3953 = vpop.f32.mrb[0].mxu0
        %3954 = vdwg.mxu0
        %3955 = vmatprep.subr.bf16.mxu0 %v3049
        %3956 = vmatpush1.bf16.msra.mxu0 %v3048
        %3957 = vmatprep.subr.bf16.mxu0 %v3053
        %3958 = vmatpush1.bf16.msra.mxu0 %v3052
        %3959 = vmatprep.subr.bf16.mxu0 %v3057
        %3960 = vmatpush1.bf16.msra.mxu0 %v3056
        %3961 = vmatprep.subr.bf16.mxu0 %v3061
        %3962 = vmatpush1.bf16.msra.mxu0 %v3060
        %3963 = vmatprep.subr.bf16.mxu0 %v3065
        %3964 = vmatpush1.bf16.msra.mxu0 %v3064
        %3965 = vmatprep.subr.bf16.mxu0 %v3069
        %3966 = vmatpush1.bf16.msra.mxu0 %v3068
        %3967 = vmatprep.subr.bf16.mxu0 %v3073
        %3968 = vmatpush1.bf16.msra.mxu0 %v3072
        %3969 = vmatprep.subr.bf16.mxu0 %v3077
        %3970 = vmatpush1.bf16.msra.mxu0 %v3076
        %3971 = vmatprep.subr.bf16.mxu0 %v3081
        %3972 = vmatpush1.bf16.msra.mxu0 %v3080
        %3973 = vmatprep.subr.bf16.mxu0 %v3085
        %3974 = vmatpush1.bf16.msra.mxu0 %v3084
        %3975 = vmatprep.subr.bf16.mxu0 %v3089
        %3976 = vmatpush1.bf16.msra.mxu0 %v3088
        %3977 = vmatprep.subr.bf16.mxu0 %v3093
        %3978 = vmatpush1.bf16.msra.mxu0 %v3092
        %3979 = vmatprep.subr.bf16.mxu0 %v3097
        %3980 = vmatpush1.bf16.msra.mxu0 %v3096
        %3981 = vmatprep.subr.bf16.mxu0 %v3101
        %3982 = vmatpush1.bf16.msra.mxu0 %v3100
        %3983 = vmatprep.subr.bf16.mxu0 %v3105
        %3984 = vmatpush1.bf16.msra.mxu0 %v3104
        %3985 = vmatprep.subr.bf16.mxu0 %v3109
        %3986 = vmatpush1.bf16.msra.mxu0 %v3108
        %3987 = vmatprep.mubr.bf16.mxu0 %v612
        %3988 = vmatmul.mubr.bf16.gmra.mrb[0].mxu0 %v611
        %v3989 = vpop.f32.mrb[0].mxu0
        %v3990 = vadd.f32 %v3949, %v3989
        %v3991 = vpop.f32.mrb[0].mxu0
        %v3992 = vadd.f32 %v3951, %v3991
        %v3993 = vpop.f32.mrb[0].mxu0
        %v3994 = vpop.f32.mrb[0].mxu0
        %3995 = vdwg.mxu0
        %3996 = vmatprep.subr.bf16.mxu0 %v3113
        %3997 = vmatpush1.bf16.msra.mxu0 %v3112
        %3998 = vmatprep.subr.bf16.mxu0 %v3117
        %3999 = vmatpush1.bf16.msra.mxu0 %v3116
        %4000 = vmatprep.subr.bf16.mxu0 %v3121
        %4001 = vmatpush1.bf16.msra.mxu0 %v3120
        %4002 = vmatprep.subr.bf16.mxu0 %v3125
        %4003 = vmatpush1.bf16.msra.mxu0 %v3124
        %4004 = vmatprep.subr.bf16.mxu0 %v3129
        %4005 = vmatpush1.bf16.msra.mxu0 %v3128
        %4006 = vmatprep.subr.bf16.mxu0 %v3133
        %4007 = vmatpush1.bf16.msra.mxu0 %v3132
        %4008 = vmatprep.subr.bf16.mxu0 %v3137
        %4009 = vmatpush1.bf16.msra.mxu0 %v3136
        %4010 = vmatprep.subr.bf16.mxu0 %v3141
        %4011 = vmatpush1.bf16.msra.mxu0 %v3140
        %4012 = vmatprep.subr.bf16.mxu0 %v3145
        %4013 = vmatpush1.bf16.msra.mxu0 %v3144
        %4014 = vmatprep.subr.bf16.mxu0 %v3149
        %4015 = vmatpush1.bf16.msra.mxu0 %v3148
        %4016 = vmatprep.subr.bf16.mxu0 %v3153
        %4017 = vmatpush1.bf16.msra.mxu0 %v3152
        %4018 = vmatprep.subr.bf16.mxu0 %v3157
        %4019 = vmatpush1.bf16.msra.mxu0 %v3156
        %4020 = vmatprep.subr.bf16.mxu0 %v3161
        %4021 = vmatpush1.bf16.msra.mxu0 %v3160
        %4022 = vmatprep.subr.bf16.mxu0 %v3165
        %4023 = vmatpush1.bf16.msra.mxu0 %v3164
        %4024 = vmatprep.subr.bf16.mxu0 %v3169
        %4025 = vmatpush1.bf16.msra.mxu0 %v3168
        %4026 = vmatprep.subr.bf16.mxu0 %v3173
        %4027 = vmatpush1.bf16.msra.mxu0 %v3172
        %4028 = vmatprep.mubr.bf16.mxu0 %v614
        %4029 = vmatmul.mubr.bf16.gmra.mrb[0].mxu0 %v613
        %v4030 = vpop.f32.mrb[0].mxu0
        %v4031 = vadd.f32 %v3990, %v4030
        %v4032 = vpop.f32.mrb[0].mxu0
        %v4033 = vadd.f32 %v3992, %v4032
        %v4034 = vpop.f32.mrb[0].mxu0
        %v4035 = vpop.f32.mrb[0].mxu0
        %4036 = vdwg.mxu0
        %4037 = vmatprep.subr.bf16.mxu0 %v2667
        %4038 = vmatpush1.bf16.msra.mxu0 %v2666
        %4039 = vmatprep.subr.bf16.mxu0 %v2671
        %4040 = vmatpush1.bf16.msra.mxu0 %v2670
        %4041 = vmatprep.subr.bf16.mxu0 %v2675
        %4042 = vmatpush1.bf16.msra.mxu0 %v2674
        %4043 = vmatprep.subr.bf16.mxu0 %v2679
        %4044 = vmatpush1.bf16.msra.mxu0 %v2678
        %4045 = vmatprep.subr.bf16.mxu0 %v2683
        %4046 = vmatpush1.bf16.msra.mxu0 %v2682
        %4047 = vmatprep.subr.bf16.mxu0 %v2687
        %4048 = vmatpush1.bf16.msra.mxu0 %v2686
        %4049 = vmatprep.subr.bf16.mxu0 %v2691
        %4050 = vmatpush1.bf16.msra.mxu0 %v2690
        %4051 = vmatprep.subr.bf16.mxu0 %v2695
        %4052 = vmatpush1.bf16.msra.mxu0 %v2694
        %4053 = vmatprep.subr.bf16.mxu0 %v2699
        %4054 = vmatpush1.bf16.msra.mxu0 %v2698
        %4055 = vmatprep.subr.bf16.mxu0 %v2703
        %4056 = vmatpush1.bf16.msra.mxu0 %v2702
        %4057 = vmatprep.subr.bf16.mxu0 %v2707
        %4058 = vmatpush1.bf16.msra.mxu0 %v2706
        %4059 = vmatprep.subr.bf16.mxu0 %v2711
        %4060 = vmatpush1.bf16.msra.mxu0 %v2710
        %4061 = vmatprep.subr.bf16.mxu0 %v2715
        %4062 = vmatpush1.bf16.msra.mxu0 %v2714
        %4063 = vmatprep.subr.bf16.mxu0 %v2719
        %4064 = vmatpush1.bf16.msra.mxu0 %v2718
        %4065 = vmatprep.subr.bf16.mxu0 %v2723
        %4066 = vmatpush1.bf16.msra.mxu0 %v2722
        %4067 = vmatprep.subr.bf16.mxu0 %v2727
        %4068 = vmatpush1.bf16.msra.mxu0 %v2726
        %4069 = vmatprep.mubr.bf16.mxu0 %v600
        %4070 = vmatmul.mubr.bf16.gmra.mrb[0].mxu0 %v599
        %v4071 = vpop.f32.mrb[0].mxu0
        %v4072 = vadd.f32 %v3700, %v4071
        %v4073 = vpop.f32.mrb[0].mxu0
        %v4074 = vadd.f32 %v3704, %v4073
        %v4075 = vpop.f32.mrb[0].mxu0
        %v4076 = vpop.f32.mrb[0].mxu0
        %4077 = vdwg.mxu0
        %4078 = vmatprep.subr.bf16.mxu0 %v2731
        %4079 = vmatpush1.bf16.msra.mxu0 %v2730
        %4080 = vmatprep.subr.bf16.mxu0 %v2735
        %4081 = vmatpush1.bf16.msra.mxu0 %v2734
        %4082 = vmatprep.subr.bf16.mxu0 %v2739
        %4083 = vmatpush1.bf16.msra.mxu0 %v2738
        %4084 = vmatprep.subr.bf16.mxu0 %v2743
        %4085 = vmatpush1.bf16.msra.mxu0 %v2742
        %4086 = vmatprep.subr.bf16.mxu0 %v2747
        %4087 = vmatpush1.bf16.msra.mxu0 %v2746
        %4088 = vmatprep.subr.bf16.mxu0 %v2751
        %4089 = vmatpush1.bf16.msra.mxu0 %v2750
        %4090 = vmatprep.subr.bf16.mxu0 %v2755
        %4091 = vmatpush1.bf16.msra.mxu0 %v2754
        %4092 = vmatprep.subr.bf16.mxu0 %v2759
        %4093 = vmatpush1.bf16.msra.mxu0 %v2758
        %4094 = vmatprep.subr.bf16.mxu0 %v2763
        %4095 = vmatpush1.bf16.msra.mxu0 %v2762
        %4096 = vmatprep.subr.bf16.mxu0 %v2767
        %4097 = vmatpush1.bf16.msra.mxu0 %v2766
        %4098 = vmatprep.subr.bf16.mxu0 %v2771
        %4099 = vmatpush1.bf16.msra.mxu0 %v2770
        %4100 = vmatprep.subr.bf16.mxu0 %v2775
        %4101 = vmatpush1.bf16.msra.mxu0 %v2774
        %4102 = vmatprep.subr.bf16.mxu0 %v2779
        %4103 = vmatpush1.bf16.msra.mxu0 %v2778
        %4104 = vmatprep.subr.bf16.mxu0 %v2783
        %4105 = vmatpush1.bf16.msra.mxu0 %v2782
        %4106 = vmatprep.subr.bf16.mxu0 %v2787
        %4107 = vmatpush1.bf16.msra.mxu0 %v2786
        %4108 = vmatprep.subr.bf16.mxu0 %v2791
        %4109 = vmatpush1.bf16.msra.mxu0 %v2790
        %4110 = vmatprep.mubr.bf16.mxu0 %v602
        %4111 = vmatmul.mubr.bf16.gmra.mrb[0].mxu0 %v601
        %v4112 = vpop.f32.mrb[0].mxu0
        %v4113 = vadd.f32 %v4072, %v4112
        %v4114 = vpop.f32.mrb[0].mxu0
        %v4115 = vadd.f32 %v4074, %v4114
        %v4116 = vpop.f32.mrb[0].mxu0
        %v4117 = vpop.f32.mrb[0].mxu0
        %4118 = vdwg.mxu0
        %4119 = vmatprep.subr.bf16.mxu0 %v2795
        %4120 = vmatpush1.bf16.msra.mxu0 %v2794
        %4121 = vmatprep.subr.bf16.mxu0 %v2799
        %4122 = vmatpush1.bf16.msra.mxu0 %v2798
        %4123 = vmatprep.subr.bf16.mxu0 %v2803
        %4124 = vmatpush1.bf16.msra.mxu0 %v2802
        %4125 = vmatprep.subr.bf16.mxu0 %v2807
        %4126 = vmatpush1.bf16.msra.mxu0 %v2806
        %4127 = vmatprep.subr.bf16.mxu0 %v2811
        %4128 = vmatpush1.bf16.msra.mxu0 %v2810
        %4129 = vmatprep.subr.bf16.mxu0 %v2815
        %4130 = vmatpush1.bf16.msra.mxu0 %v2814
        %4131 = vmatprep.subr.bf16.mxu0 %v2819
        %4132 = vmatpush1.bf16.msra.mxu0 %v2818
        %4133 = vmatprep.subr.bf16.mxu0 %v2823
        %4134 = vmatpush1.bf16.msra.mxu0 %v2822
        %4135 = vmatprep.subr.bf16.mxu0 %v2827
        %4136 = vmatpush1.bf16.msra.mxu0 %v2826
        %4137 = vmatprep.subr.bf16.mxu0 %v2831
        %4138 = vmatpush1.bf16.msra.mxu0 %v2830
        %4139 = vmatprep.subr.bf16.mxu0 %v2835
        %4140 = vmatpush1.bf16.msra.mxu0 %v2834
        %4141 = vmatprep.subr.bf16.mxu0 %v2839
        %4142 = vmatpush1.bf16.msra.mxu0 %v2838
        %4143 = vmatprep.subr.bf16.mxu0 %v2843
        %4144 = vmatpush1.bf16.msra.mxu0 %v2842
        %4145 = vmatprep.subr.bf16.mxu0 %v2847
        %4146 = vmatpush1.bf16.msra.mxu0 %v2846
        %4147 = vmatprep.subr.bf16.mxu0 %v2851
        %4148 = vmatpush1.bf16.msra.mxu0 %v2850
        %4149 = vmatprep.subr.bf16.mxu0 %v2855
        %4150 = vmatpush1.bf16.msra.mxu0 %v2854
        %4151 = vmatprep.mubr.bf16.mxu0 %v604
        %4152 = vmatmul.mubr.bf16.gmra.mrb[0].mxu0 %v603
        %v4153 = vpop.f32.mrb[0].mxu0
        %v4154 = vadd.f32 %v4113, %v4153
        %v4155 = vpop.f32.mrb[0].mxu0
        %v4156 = vadd.f32 %v4115, %v4155
        %v4157 = vpop.f32.mrb[0].mxu0
        %v4158 = vpop.f32.mrb[0].mxu0
        %4159 = vdwg.mxu0
        %4160 = vmatprep.subr.bf16.mxu0 %v2859
        %4161 = vmatpush1.bf16.msra.mxu0 %v2858
        %4162 = vmatprep.subr.bf16.mxu0 %v2863
        %4163 = vmatpush1.bf16.msra.mxu0 %v2862
        %4164 = vmatprep.subr.bf16.mxu0 %v2867
        %4165 = vmatpush1.bf16.msra.mxu0 %v2866
        %4166 = vmatprep.subr.bf16.mxu0 %v2871
        %4167 = vmatpush1.bf16.msra.mxu0 %v2870
        %4168 = vmatprep.subr.bf16.mxu0 %v2875
        %4169 = vmatpush1.bf16.msra.mxu0 %v2874
        %4170 = vmatprep.subr.bf16.mxu0 %v2879
        %4171 = vmatpush1.bf16.msra.mxu0 %v2878
        %4172 = vmatprep.subr.bf16.mxu0 %v2883
        %4173 = vmatpush1.bf16.msra.mxu0 %v2882
        %4174 = vmatprep.subr.bf16.mxu0 %v2887
        %4175 = vmatpush1.bf16.msra.mxu0 %v2886
        %4176 = vmatprep.subr.bf16.mxu0 %v2891
        %4177 = vmatpush1.bf16.msra.mxu0 %v2890
        %4178 = vmatprep.subr.bf16.mxu0 %v2895
        %4179 = vmatpush1.bf16.msra.mxu0 %v2894
        %4180 = vmatprep.subr.bf16.mxu0 %v2899
        %4181 = vmatpush1.bf16.msra.mxu0 %v2898
        %4182 = vmatprep.subr.bf16.mxu0 %v2903
        %4183 = vmatpush1.bf16.msra.mxu0 %v2902
        %4184 = vmatprep.subr.bf16.mxu0 %v2907
        %4185 = vmatpush1.bf16.msra.mxu0 %v2906
        %4186 = vmatprep.subr.bf16.mxu0 %v2911
        %4187 = vmatpush1.bf16.msra.mxu0 %v2910
        %4188 = vmatprep.subr.bf16.mxu0 %v2915
        %4189 = vmatpush1.bf16.msra.mxu0 %v2914
        %4190 = vmatprep.subr.bf16.mxu0 %v2919
        %4191 = vmatpush1.bf16.msra.mxu0 %v2918
        %4192 = vmatprep.mubr.bf16.mxu0 %v606
        %4193 = vmatmul.mubr.bf16.gmra.mrb[0].mxu0 %v605
        %v4194 = vpop.f32.mrb[0].mxu0
        %v4195 = vadd.f32 %v4154, %v4194
        %v4196 = vpop.f32.mrb[0].mxu0
        %v4197 = vadd.f32 %v4156, %v4196
        %v4198 = vpop.f32.mrb[0].mxu0
        %v4199 = vpop.f32.mrb[0].mxu0
        %4200 = vdwg.mxu0
        %4201 = vmatprep.subr.bf16.mxu0 %v2923
        %4202 = vmatpush1.bf16.msra.mxu0 %v2922
        %4203 = vmatprep.subr.bf16.mxu0 %v2927
        %4204 = vmatpush1.bf16.msra.mxu0 %v2926
        %4205 = vmatprep.subr.bf16.mxu0 %v2931
        %4206 = vmatpush1.bf16.msra.mxu0 %v2930
        %4207 = vmatprep.subr.bf16.mxu0 %v2935
        %4208 = vmatpush1.bf16.msra.mxu0 %v2934
        %4209 = vmatprep.subr.bf16.mxu0 %v2939
        %4210 = vmatpush1.bf16.msra.mxu0 %v2938
        %4211 = vmatprep.subr.bf16.mxu0 %v2943
        %4212 = vmatpush1.bf16.msra.mxu0 %v2942
        %4213 = vmatprep.subr.bf16.mxu0 %v2947
        %4214 = vmatpush1.bf16.msra.mxu0 %v2946
        %4215 = vmatprep.subr.bf16.mxu0 %v2951
        %4216 = vmatpush1.bf16.msra.mxu0 %v2950
        %4217 = vmatprep.subr.bf16.mxu0 %v2955
        %4218 = vmatpush1.bf16.msra.mxu0 %v2954
        %4219 = vmatprep.subr.bf16.mxu0 %v2959
        %4220 = vmatpush1.bf16.msra.mxu0 %v2958
        %4221 = vmatprep.subr.bf16.mxu0 %v2963
        %4222 = vmatpush1.bf16.msra.mxu0 %v2962
        %4223 = vmatprep.subr.bf16.mxu0 %v2967
        %4224 = vmatpush1.bf16.msra.mxu0 %v2966
        %4225 = vmatprep.subr.bf16.mxu0 %v2971
        %4226 = vmatpush1.bf16.msra.mxu0 %v2970
        %4227 = vmatprep.subr.bf16.mxu0 %v2975
        %4228 = vmatpush1.bf16.msra.mxu0 %v2974
        %4229 = vmatprep.subr.bf16.mxu0 %v2979
        %4230 = vmatpush1.bf16.msra.mxu0 %v2978
        %4231 = vmatprep.subr.bf16.mxu0 %v2983
        %4232 = vmatpush1.bf16.msra.mxu0 %v2982
        %4233 = vmatprep.mubr.bf16.mxu0 %v608
        %4234 = vmatmul.mubr.bf16.gmra.mrb[0].mxu0 %v607
        %v4235 = vpop.f32.mrb[0].mxu0
        %v4236 = vadd.f32 %v4195, %v4235
        %v4237 = vpop.f32.mrb[0].mxu0
        %v4238 = vadd.f32 %v4197, %v4237
        %v4239 = vpop.f32.mrb[0].mxu0
        %v4240 = vpop.f32.mrb[0].mxu0
        %4241 = vdwg.mxu0
        %4242 = vmatprep.subr.bf16.mxu0 %v2987
        %4243 = vmatpush1.bf16.msra.mxu0 %v2986
        %4244 = vmatprep.subr.bf16.mxu0 %v2991
        %4245 = vmatpush1.bf16.msra.mxu0 %v2990
        %4246 = vmatprep.subr.bf16.mxu0 %v2995
        %4247 = vmatpush1.bf16.msra.mxu0 %v2994
        %4248 = vmatprep.subr.bf16.mxu0 %v2999
        %4249 = vmatpush1.bf16.msra.mxu0 %v2998
        %4250 = vmatprep.subr.bf16.mxu0 %v3003
        %4251 = vmatpush1.bf16.msra.mxu0 %v3002
        %4252 = vmatprep.subr.bf16.mxu0 %v3007
        %4253 = vmatpush1.bf16.msra.mxu0 %v3006
        %4254 = vmatprep.subr.bf16.mxu0 %v3011
        %4255 = vmatpush1.bf16.msra.mxu0 %v3010
        %4256 = vmatprep.subr.bf16.mxu0 %v3015
        %4257 = vmatpush1.bf16.msra.mxu0 %v3014
        %4258 = vmatprep.subr.bf16.mxu0 %v3019
        %4259 = vmatpush1.bf16.msra.mxu0 %v3018
        %4260 = vmatprep.subr.bf16.mxu0 %v3023
        %4261 = vmatpush1.bf16.msra.mxu0 %v3022
        %4262 = vmatprep.subr.bf16.mxu0 %v3027
        %4263 = vmatpush1.bf16.msra.mxu0 %v3026
        %4264 = vmatprep.subr.bf16.mxu0 %v3031
        %4265 = vmatpush1.bf16.msra.mxu0 %v3030
        %4266 = vmatprep.subr.bf16.mxu0 %v3035
        %4267 = vmatpush1.bf16.msra.mxu0 %v3034
        %4268 = vmatprep.subr.bf16.mxu0 %v3039
        %4269 = vmatpush1.bf16.msra.mxu0 %v3038
        %4270 = vmatprep.subr.bf16.mxu0 %v3043
        %4271 = vmatpush1.bf16.msra.mxu0 %v3042
        %4272 = vmatprep.subr.bf16.mxu0 %v3047
        %4273 = vmatpush1.bf16.msra.mxu0 %v3046
        %4274 = vmatprep.mubr.bf16.mxu0 %v610
        %4275 = vmatmul.mubr.bf16.gmra.mrb[0].mxu0 %v609
        %v4276 = vpop.f32.mrb[0].mxu0
        %v4277 = vadd.f32 %v4236, %v4276
        %v4278 = vpop.f32.mrb[0].mxu0
        %v4279 = vadd.f32 %v4238, %v4278
        %v4280 = vpop.f32.mrb[0].mxu0
        %v4281 = vpop.f32.mrb[0].mxu0
        %4282 = vdwg.mxu0
        %4283 = vmatprep.subr.bf16.mxu0 %v3051
        %4284 = vmatpush1.bf16.msra.mxu0 %v3050
        %4285 = vmatprep.subr.bf16.mxu0 %v3055
        %4286 = vmatpush1.bf16.msra.mxu0 %v3054
        %4287 = vmatprep.subr.bf16.mxu0 %v3059
        %4288 = vmatpush1.bf16.msra.mxu0 %v3058
        %4289 = vmatprep.subr.bf16.mxu0 %v3063
        %4290 = vmatpush1.bf16.msra.mxu0 %v3062
        %4291 = vmatprep.subr.bf16.mxu0 %v3067
        %4292 = vmatpush1.bf16.msra.mxu0 %v3066
        %4293 = vmatprep.subr.bf16.mxu0 %v3071
        %4294 = vmatpush1.bf16.msra.mxu0 %v3070
        %4295 = vmatprep.subr.bf16.mxu0 %v3075
        %4296 = vmatpush1.bf16.msra.mxu0 %v3074
        %4297 = vmatprep.subr.bf16.mxu0 %v3079
        %4298 = vmatpush1.bf16.msra.mxu0 %v3078
        %4299 = vmatprep.subr.bf16.mxu0 %v3083
        %4300 = vmatpush1.bf16.msra.mxu0 %v3082
        %4301 = vmatprep.subr.bf16.mxu0 %v3087
        %4302 = vmatpush1.bf16.msra.mxu0 %v3086
        %4303 = vmatprep.subr.bf16.mxu0 %v3091
        %4304 = vmatpush1.bf16.msra.mxu0 %v3090
        %4305 = vmatprep.subr.bf16.mxu0 %v3095
        %4306 = vmatpush1.bf16.msra.mxu0 %v3094
        %4307 = vmatprep.subr.bf16.mxu0 %v3099
        %4308 = vmatpush1.bf16.msra.mxu0 %v3098
        %4309 = vmatprep.subr.bf16.mxu0 %v3103
        %4310 = vmatpush1.bf16.msra.mxu0 %v3102
        %4311 = vmatprep.subr.bf16.mxu0 %v3107
        %4312 = vmatpush1.bf16.msra.mxu0 %v3106
        %4313 = vmatprep.subr.bf16.mxu0 %v3111
        %4314 = vmatpush1.bf16.msra.mxu0 %v3110
        %4315 = vmatprep.mubr.bf16.mxu0 %v612
        %4316 = vmatmul.mubr.bf16.gmra.mrb[0].mxu0 %v611
        %v4317 = vpop.f32.mrb[0].mxu0
        %v4318 = vadd.f32 %v4277, %v4317
        %v4319 = vpop.f32.mrb[0].mxu0
        %v4320 = vadd.f32 %v4279, %v4319
        %v4321 = vpop.f32.mrb[0].mxu0
        %v4322 = vpop.f32.mrb[0].mxu0
        %4323 = vdwg.mxu0
        %4324 = vmatprep.subr.bf16.mxu0 %v3115
        %4325 = vmatpush1.bf16.msra.mxu0 %v3114
        %4326 = vmatprep.subr.bf16.mxu0 %v3119
        %4327 = vmatpush1.bf16.msra.mxu0 %v3118
        %4328 = vmatprep.subr.bf16.mxu0 %v3123
        %4329 = vmatpush1.bf16.msra.mxu0 %v3122
        %4330 = vmatprep.subr.bf16.mxu0 %v3127
        %4331 = vmatpush1.bf16.msra.mxu0 %v3126
        %4332 = vmatprep.subr.bf16.mxu0 %v3131
        %4333 = vmatpush1.bf16.msra.mxu0 %v3130
        %4334 = vmatprep.subr.bf16.mxu0 %v3135
        %4335 = vmatpush1.bf16.msra.mxu0 %v3134
        %4336 = vmatprep.subr.bf16.mxu0 %v3139
        %4337 = vmatpush1.bf16.msra.mxu0 %v3138
        %4338 = vmatprep.subr.bf16.mxu0 %v3143
        %4339 = vmatpush1.bf16.msra.mxu0 %v3142
        %4340 = vmatprep.subr.bf16.mxu0 %v3147
        %4341 = vmatpush1.bf16.msra.mxu0 %v3146
        %4342 = vmatprep.subr.bf16.mxu0 %v3151
        %4343 = vmatpush1.bf16.msra.mxu0 %v3150
        %4344 = vmatprep.subr.bf16.mxu0 %v3155
        %4345 = vmatpush1.bf16.msra.mxu0 %v3154
        %4346 = vmatprep.subr.bf16.mxu0 %v3159
        %4347 = vmatpush1.bf16.msra.mxu0 %v3158
        %4348 = vmatprep.subr.bf16.mxu0 %v3163
        %4349 = vmatpush1.bf16.msra.mxu0 %v3162
        %4350 = vmatprep.subr.bf16.mxu0 %v3167
        %4351 = vmatpush1.bf16.msra.mxu0 %v3166
        %4352 = vmatprep.subr.bf16.mxu0 %v3171
        %4353 = vmatpush1.bf16.msra.mxu0 %v3170
        %4354 = vmatprep.subr.bf16.mxu0 %v3175
        %4355 = vmatpush1.bf16.msra.mxu0 %v3174
        %4356 = vmatprep.mubr.bf16.mxu0 %v614
        %4357 = vmatmul.mubr.bf16.gmra.mrb[0].mxu0 %v613
        %v4358 = vpop.f32.mrb[0].mxu0
        %v4359 = vadd.f32 %v4318, %v4358
        %v4360 = vpop.f32.mrb[0].mxu0
        %v4361 = vadd.f32 %v4320, %v4360
        %v4362 = vpop.f32.mrb[0].mxu0
        %v4363 = vpop.f32.mrb[0].mxu0
        %4364 = vdwg.mxu0
        %v4365 = vmax.f32 %v4031, 0.0
        %v4366 = vmax.f32 %v4033, 0.0
        %v4367 = vmax.f32 %v4359, 0.0
        %v4368 = vmax.f32 %v4361, 0.0
        %v4369 = vld [vmem:[%s3] sm:$0xff]
        %v4370 = vld [vmem:[%s3 + $0x8] sm:$0xff]
        %v4371 = vld [vmem:[%s3 + $0x10] sm:$0xff]
        %v4372 = vld [vmem:[%s3 + $0x18] sm:$0xff]
        %v4373 = vld [vmem:[%s3 + $0x20] sm:$0xff]
        %v4374 = vld [vmem:[%s3 + $0x28] sm:$0xff]
        %v4375 = vld [vmem:[%s3 + $0x30] sm:$0xff]
        %v4376 = vld [vmem:[%s3 + $0x38] sm:$0xff]
        %v4377 = vld [vmem:[%s3 + $0x40] sm:$0xff]
        %v4378 = vld [vmem:[%s3 + $0x48] sm:$0xff]
        %v4379 = vld [vmem:[%s3 + $0x50] sm:$0xff]
        %v4380 = vld [vmem:[%s3 + $0x58] sm:$0xff]
        %v4381 = vld [vmem:[%s3 + $0x60] sm:$0xff]
        %v4382 = vld [vmem:[%s3 + $0x68] sm:$0xff]
        %v4383 = vld [vmem:[%s3 + $0x70] sm:$0xff]
        %v4384 = vld [vmem:[%s3 + $0x78] sm:$0xff]
        %v4385 = vld [vmem:[%s3 + $0x80] sm:$0xff]
        %v4386 = vld [vmem:[%s3 + $0x88] sm:$0xff]
        %v4387 = vld [vmem:[%s3 + $0x90] sm:$0xff]
        %v4388 = vld [vmem:[%s3 + $0x98] sm:$0xff]
        %v4389 = vld [vmem:[%s3 + $0xa0] sm:$0xff]
        %v4390 = vld [vmem:[%s3 + $0xa8] sm:$0xff]
        %v4391 = vld [vmem:[%s3 + $0xb0] sm:$0xff]
        %v4392 = vld [vmem:[%s3 + $0xb8] sm:$0xff]
        %v4393 = vld [vmem:[%s3 + $0xc0] sm:$0xff]
        %v4394 = vld [vmem:[%s3 + $0xc8] sm:$0xff]
        %v4395 = vld [vmem:[%s3 + $0xd0] sm:$0xff]
        %v4396 = vld [vmem:[%s3 + $0xd8] sm:$0xff]
        %v4397 = vld [vmem:[%s3 + $0xe0] sm:$0xff]
        %v4398 = vld [vmem:[%s3 + $0xe8] sm:$0xff]
        %v4399 = vld [vmem:[%s3 + $0xf0] sm:$0xff]
        %v4400 = vld [vmem:[%s3 + $0xf8] sm:$0xff]
        %v4401 = vld [vmem:[%s3 + $0x100] sm:$0xff]
        %v4402 = vld [vmem:[%s3 + $0x108] sm:$0xff]
        %v4403 = vld [vmem:[%s3 + $0x110] sm:$0xff]
        %v4404 = vld [vmem:[%s3 + $0x118] sm:$0xff]
        %v4405 = vld [vmem:[%s3 + $0x120] sm:$0xff]
        %v4406 = vld [vmem:[%s3 + $0x128] sm:$0xff]
        %v4407 = vld [vmem:[%s3 + $0x130] sm:$0xff]
        %v4408 = vld [vmem:[%s3 + $0x138] sm:$0xff]
        %v4409 = vld [vmem:[%s3 + $0x140] sm:$0xff]
        %v4410 = vld [vmem:[%s3 + $0x148] sm:$0xff]
        %v4411 = vld [vmem:[%s3 + $0x150] sm:$0xff]
        %v4412 = vld [vmem:[%s3 + $0x158] sm:$0xff]
        %v4413 = vld [vmem:[%s3 + $0x160] sm:$0xff]
        %v4414 = vld [vmem:[%s3 + $0x168] sm:$0xff]
        %v4415 = vld [vmem:[%s3 + $0x170] sm:$0xff]
        %v4416 = vld [vmem:[%s3 + $0x178] sm:$0xff]
        %v4417 = vld [vmem:[%s3 + $0x180] sm:$0xff]
        %v4418 = vld [vmem:[%s3 + $0x188] sm:$0xff]
        %v4419 = vld [vmem:[%s3 + $0x190] sm:$0xff]
        %v4420 = vld [vmem:[%s3 + $0x198] sm:$0xff]
        %v4421 = vld [vmem:[%s3 + $0x1a0] sm:$0xff]
        %v4422 = vld [vmem:[%s3 + $0x1a8] sm:$0xff]
        %v4423 = vld [vmem:[%s3 + $0x1b0] sm:$0xff]
        %v4424 = vld [vmem:[%s3 + $0x1b8] sm:$0xff]
        %v4425 = vld [vmem:[%s3 + $0x1c0] sm:$0xff]
        %v4426 = vld [vmem:[%s3 + $0x1c8] sm:$0xff]
        %v4427 = vld [vmem:[%s3 + $0x1d0] sm:$0xff]
        %v4428 = vld [vmem:[%s3 + $0x1d8] sm:$0xff]
        %v4429 = vld [vmem:[%s3 + $0x1e0] sm:$0xff]
        %v4430 = vld [vmem:[%s3 + $0x1e8] sm:$0xff]
        %v4431 = vld [vmem:[%s3 + $0x1f0] sm:$0xff]
        %v4432 = vld [vmem:[%s3 + $0x1f8] sm:$0xff]
        %v4433 = vld [vmem:[#allocation7] sm:$0x1]
        %4434 = vmatprep.subr.mxu0 0.0
        %4435 = vmatpush1.msra.mxu0 %v4369
        %4436 = vmatprep.subr.mxu0 0.0
        %4437 = vmatpush1.msra.mxu0 %v4370
        %4438 = vmatprep.subr.mxu0 0.0
        %4439 = vmatpush1.msra.mxu0 %v4371
        %4440 = vmatprep.subr.mxu0 0.0
        %4441 = vmatpush1.msra.mxu0 %v4372
        %4442 = vmatprep.subr.mxu0 0.0
        %4443 = vmatpush1.msra.mxu0 %v4373
        %4444 = vmatprep.subr.mxu0 0.0
        %4445 = vmatpush1.msra.mxu0 %v4374
        %4446 = vmatprep.subr.mxu0 0.0
        %4447 = vmatpush1.msra.mxu0 %v4375
        %4448 = vmatprep.subr.mxu0 0.0
        %4449 = vmatpush1.msra.mxu0 %v4376
        %4450 = vmatprep.subr.mxu0 0.0
        %4451 = vmatpush1.msra.mxu0 %v4377
        %4452 = vmatprep.subr.mxu0 0.0
        %4453 = vmatpush1.msra.mxu0 %v4378
        %4454 = vmatprep.subr.mxu0 0.0
        %4455 = vmatpush1.msra.mxu0 %v4379
        %4456 = vmatprep.subr.mxu0 0.0
        %4457 = vmatpush1.msra.mxu0 %v4380
        %4458 = vmatprep.subr.mxu0 0.0
        %4459 = vmatpush1.msra.mxu0 %v4381
        %4460 = vmatprep.subr.mxu0 0.0
        %4461 = vmatpush1.msra.mxu0 %v4382
        %4462 = vmatprep.subr.mxu0 0.0
        %4463 = vmatpush1.msra.mxu0 %v4383
        %4464 = vmatprep.subr.mxu0 0.0
        %4465 = vmatpush1.msra.mxu0 %v4384
        %4466 = vmatprep.subr.mxu0 0.0
        %4467 = vmatpush1.msra.mxu0 %v4385
        %4468 = vmatprep.subr.mxu0 0.0
        %4469 = vmatpush1.msra.mxu0 %v4386
        %4470 = vmatprep.subr.mxu0 0.0
        %4471 = vmatpush1.msra.mxu0 %v4387
        %4472 = vmatprep.subr.mxu0 0.0
        %4473 = vmatpush1.msra.mxu0 %v4388
        %4474 = vmatprep.subr.mxu0 0.0
        %4475 = vmatpush1.msra.mxu0 %v4389
        %4476 = vmatprep.subr.mxu0 0.0
        %4477 = vmatpush1.msra.mxu0 %v4390
        %4478 = vmatprep.subr.mxu0 0.0
        %4479 = vmatpush1.msra.mxu0 %v4391
        %4480 = vmatprep.subr.mxu0 0.0
        %4481 = vmatpush1.msra.mxu0 %v4392
        %4482 = vmatprep.subr.mxu0 0.0
        %4483 = vmatpush1.msra.mxu0 %v4393
        %4484 = vmatprep.subr.mxu0 0.0
        %4485 = vmatpush1.msra.mxu0 %v4394
        %4486 = vmatprep.subr.mxu0 0.0
        %4487 = vmatpush1.msra.mxu0 %v4395
        %4488 = vmatprep.subr.mxu0 0.0
        %4489 = vmatpush1.msra.mxu0 %v4396
        %4490 = vmatprep.subr.mxu0 0.0
        %4491 = vmatpush1.msra.mxu0 %v4397
        %4492 = vmatprep.subr.mxu0 0.0
        %4493 = vmatpush1.msra.mxu0 %v4398
        %4494 = vmatprep.subr.mxu0 0.0
        %4495 = vmatpush1.msra.mxu0 %v4399
        %4496 = vmatprep.subr.mxu0 0.0
        %4497 = vmatpush1.msra.mxu0 %v4400
        %4498 = vmatprep.mubr.f32.mxu0 %v4366
        %4499 = vmatmul.mubr.f32.gmra.mrb[0].mxu0 %v4365
        %v4500 = vpop.f32.mrb[0].mxu0
        %v4501 = vadd.f32 %v4433, %v4500
        %v4502 = vpop.f32.mrb[0].mxu0
        %4503 = vdwg.mxu0
        %4504 = vmatprep.subr.mxu0 0.0
        %4505 = vmatpush1.msra.mxu0 %v4401
        %4506 = vmatprep.subr.mxu0 0.0
        %4507 = vmatpush1.msra.mxu0 %v4402
        %4508 = vmatprep.subr.mxu0 0.0
        %4509 = vmatpush1.msra.mxu0 %v4403
        %4510 = vmatprep.subr.mxu0 0.0
        %4511 = vmatpush1.msra.mxu0 %v4404
        %4512 = vmatprep.subr.mxu0 0.0
        %4513 = vmatpush1.msra.mxu0 %v4405
        %4514 = vmatprep.subr.mxu0 0.0
        %4515 = vmatpush1.msra.mxu0 %v4406
        %4516 = vmatprep.subr.mxu0 0.0
        %4517 = vmatpush1.msra.mxu0 %v4407
        %4518 = vmatprep.subr.mxu0 0.0
        %4519 = vmatpush1.msra.mxu0 %v4408
        %4520 = vmatprep.subr.mxu0 0.0
        %4521 = vmatpush1.msra.mxu0 %v4409
        %4522 = vmatprep.subr.mxu0 0.0
        %4523 = vmatpush1.msra.mxu0 %v4410
        %4524 = vmatprep.subr.mxu0 0.0
        %4525 = vmatpush1.msra.mxu0 %v4411
        %4526 = vmatprep.subr.mxu0 0.0
        %4527 = vmatpush1.msra.mxu0 %v4412
        %4528 = vmatprep.subr.mxu0 0.0
        %4529 = vmatpush1.msra.mxu0 %v4413
        %4530 = vmatprep.subr.mxu0 0.0
        %4531 = vmatpush1.msra.mxu0 %v4414
        %4532 = vmatprep.subr.mxu0 0.0
        %4533 = vmatpush1.msra.mxu0 %v4415
        %4534 = vmatprep.subr.mxu0 0.0
        %4535 = vmatpush1.msra.mxu0 %v4416
        %4536 = vmatprep.subr.mxu0 0.0
        %4537 = vmatpush1.msra.mxu0 %v4417
        %4538 = vmatprep.subr.mxu0 0.0
        %4539 = vmatpush1.msra.mxu0 %v4418
        %4540 = vmatprep.subr.mxu0 0.0
        %4541 = vmatpush1.msra.mxu0 %v4419
        %4542 = vmatprep.subr.mxu0 0.0
        %4543 = vmatpush1.msra.mxu0 %v4420
        %4544 = vmatprep.subr.mxu0 0.0
        %4545 = vmatpush1.msra.mxu0 %v4421
        %4546 = vmatprep.subr.mxu0 0.0
        %4547 = vmatpush1.msra.mxu0 %v4422
        %4548 = vmatprep.subr.mxu0 0.0
        %4549 = vmatpush1.msra.mxu0 %v4423
        %4550 = vmatprep.subr.mxu0 0.0
        %4551 = vmatpush1.msra.mxu0 %v4424
        %4552 = vmatprep.subr.mxu0 0.0
        %4553 = vmatpush1.msra.mxu0 %v4425
        %4554 = vmatprep.subr.mxu0 0.0
        %4555 = vmatpush1.msra.mxu0 %v4426
        %4556 = vmatprep.subr.mxu0 0.0
        %4557 = vmatpush1.msra.mxu0 %v4427
        %4558 = vmatprep.subr.mxu0 0.0
        %4559 = vmatpush1.msra.mxu0 %v4428
        %4560 = vmatprep.subr.mxu0 0.0
        %4561 = vmatpush1.msra.mxu0 %v4429
        %4562 = vmatprep.subr.mxu0 0.0
        %4563 = vmatpush1.msra.mxu0 %v4430
        %4564 = vmatprep.subr.mxu0 0.0
        %4565 = vmatpush1.msra.mxu0 %v4431
        %4566 = vmatprep.subr.mxu0 0.0
        %4567 = vmatpush1.msra.mxu0 %v4432
        %4568 = vmatprep.mubr.f32.mxu0 %v4368
        %4569 = vmatmul.mubr.f32.gmra.mrb[0].mxu0 %v4367
        %v4570 = vpop.f32.mrb[0].mxu0
        %v4571 = vadd.f32 %v4501, %v4570
        %v4572 = vpop.f32.mrb[0].mxu0
        %4573 = vdwg.mxu0
        %vm4574 = vcmask 8192
        %4575 = vst.msk [vmem:[%s256] sm:$0x1] %vm4574, %v4571
        %s4576 = sand.u32 %s139, 1
        %s4577 = scalar_lea.sflag [#allocation4], %s4576
        %s4578 = sand.u32 %s139, 1
        %s4579 = scalar_lea.vmem [#allocation8], %s4578
        // Predicated region
        $region53: #{tpu_custom_call.1} parent=39 // pred_check
          %p4580 = pneg %p149
        $region54: #{tpu_custom_call.1} parent=39 // pred_check_branch
          %4582 = sbr.rel (%p4580) target = $region56
        $region55: #{tpu_custom_call.1} parent=39 // pred_region
          %s4584 = ssub.s32 16, 16
          %4585 = vsyncadd %s4577, %s4584
          %s4586 = smul.addr %s21, 16
          %s4587 = scalar_lea.hbm %s5, %s4586
          %s4589 = sshll.u32 %s4579, 4
          %s4590 = int_to_ptr.vmem [resolvable:$true] %s4589
          %4592 = dma.vmem_to_hbm [thread:$0]  %s4590, 16, %s4587, %s4577
        $region56: #{tpu_custom_call.1} parent=39 // pred_fallthru
          _
      $region40: #{tpu_custom_call.1} parent=5 // pred_fallthru
        _
      %p4593 = scmp.le.s32.totalorder 2, %s16
      // Predicated region
      $region57: #{tpu_custom_call.1} parent=5 // pred_check
        %p4594 = pneg %p4593
      $region58: #{tpu_custom_call.1} parent=5 // pred_check_branch
        %4596 = sbr.rel (%p4594) target = $region60
      $region59: #{tpu_custom_call.1} parent=5 // pred_region
        %s4597 = ssub.s32 %s16, 2
        // Predicated region
        $region61: #{tpu_custom_call.1} parent=59 // pred_check
          %p4598 = pneg %p155
        $region62: #{tpu_custom_call.1} parent=59 // pred_check_branch
          %4600 = sbr.rel (%p4598) target = $region64
        $region63: #{tpu_custom_call.1} parent=59 // pred_region
          %s4601 = sand.u32 %s140, 1
          %s4602 = scalar_lea.sflag [#allocation4], %s4601
          %s4603 = sand.u32 %s140, 1
          %s4604 = scalar_lea.vmem [#allocation8], %s4603
          %4605 = dma.done %s4602, 16
        $region64: #{tpu_custom_call.1} parent=59 // pred_fallthru
          _
      $region60: #{tpu_custom_call.1} parent=5 // pred_fallthru
        _
    $region6: #{tpu_custom_call.1} parent=1 // loop_footer
      %s20 = sadd.s32 1, %s16
    $region7: #{tpu_custom_call.1} parent=1 // loop_footer_branch
      %15 = sbr.rel target = $region3
    $region8: #{tpu_custom_call.1} parent=1 // loop_exit
      _
    %4606 = vsyncpa [#allocation3], 1
    %s4607 = scalar_lea.sflag [#allocation3], 1
    %4608 = vsyncpa %s4607, 1
    %4609 = vsyncpa [#allocation6], 1
    %4610 = vsyncpa [#allocation4], 1
    %s4611 = scalar_lea.sflag [#allocation4], 1
    %4612 = vsyncpa %s4611, 1

</llo_original>
